<compile_context>
chip_gen: v6e
topology: v6e:2x2x1
jax: 0.10.0
libtpu: 0.0.40
codegen_flags: <defaults>
</compile_context>

<pallas_src>
import math
import numpy as np
import jax
import jax.numpy as jnp
from jax import lax
from jax.experimental import pallas as pl
from jax.experimental.pallas import tpu as pltpu

# ---------------- configuration (GhostBottleneck defaults: kernel=3, stride=2, use_se=1) --
B = 2
CIN = 16                  # inp
HID = 32                  # hidden_dim
OUP = 16                  # oup
H = W = 16
HW = H * W
STRIDE = 2
HO = (H + 2 - 3) // STRIDE + 1
WO = (W + 2 - 3) // STRIDE + 1
HWO = HO * WO
CM1 = math.ceil(HID / 2)  # GhostModule1 init_channels
CM2 = math.ceil(OUP / 2)  # GhostModule2 init_channels
SER = HID // 4            # SE reduction channels
BN_EPS = 1e-5
# TODO(synk): only the default config branch (stride=2, use_se=1, 2*CM1==HID, 2*CM2==OUP)
# of GhostBottleneck is built here; the stride=1 identity-shortcut and use_se=0 variants
# are not instantiated.

# 3x3 tap offsets: tap index t = a*3 + b  ->  (da, db) = (a-1, b-1)
_TAP_OFFS = tuple((a - 1, b - 1) for a in range(3) for b in range(3))


# ---------------- small constant tables (built once per trace; all tiny) -----------------
def _tap_masks(h, w, b_blk):
    """(9, b_blk*h*w) 0/1 masks: mask[t, p] = 1 iff tap t of pixel p stays inside its image."""
    hw = h * w
    lane = np.arange(b_blk * hw)
    p = lane % hw
    i, j = p // w, p % w
    m = np.zeros((9, b_blk * hw), np.float32)
    for t, (da, db) in enumerate(_TAP_OFFS):
        m[t] = ((i + da >= 0) & (i + da < h) & (j + db >= 0) & (j + db < w)).astype(np.float32)
    return m


def _subsample_matrix(b_blk):
    """(b_blk*HW, b_blk*HWO) 0/1 selection: full-res pixel (2i, 2j) -> half-res pixel (i, j)."""
    s = np.zeros((b_blk * HW, b_blk * HWO), np.float32)
    for b in range(b_blk):
        for io in range(HO):
            for jo in range(WO):
                s[b * HW + (io * STRIDE) * W + jo * STRIDE,
                  b * HWO + io * WO + jo] = 1.0
    return s


def _pool_matrices(b_blk):
    """avg: (b_blk*HWO, b_blk) per-image mean;  exp: (b_blk, b_blk*HWO) per-image broadcast."""
    avg = np.zeros((b_blk * HWO, b_blk), np.float32)
    for b in range(b_blk):
        avg[b * HWO:(b + 1) * HWO, b] = 1.0 / HWO
    return avg, (avg > 0).astype(np.float32).T


# ---------------- Pallas kernel ----------------
def _dw3x3(x, w_taps, mask_ref, row_w):
    """Depthwise 3x3 'same' conv, stride 1, on (C, L) activations whose lane axis is
    b_blk images laid out contiguously (per-image row width row_w).
    w_taps: (C, 9) per-channel taps; mask_ref: (9, L) 0/1 tap-validity masks.
    Uses pltpu.roll lane shifts + masks + FMAs -- no shift-matrix matmul."""
    L = x.shape[1]
    acc = x * w_taps[:, 4:5]                               # centre tap: no shift, no mask
    for t, (da, db) in enumerate(_TAP_OFFS):
        if da == 0 and db == 0:
            continue
        off = da * row_w + db                              # want shifted[p] = x[p + off]
        shifted = pltpu.roll(x, (-off) % L, axis=1)        # np.roll convention
        acc = acc + shifted * mask_ref[t:t + 1, :] * w_taps[:, t:t + 1]
    return acc


def ghost_bottleneck_kernel(
        x_ref, mfull_ref, mhalf_ref, sel_ref, avg_ref, exp_ref,
        wp1_ref, bp1_ref, wc1_ref, bc1_ref,                 # GhostModule1 primary / cheap (BN folded)
        wda_ref, bda_ref, wdb_ref, bdb_ref,                 # strided depthwise 3x3, split per ghost half
        wfc1_ref, bfc1_ref, wfc2_ref, bfc2_ref,             # SE layer FCs
        wp2_ref, bp2_ref, wc2_ref, bc2_ref,                 # GhostModule2 primary / cheap (BN folded)
        wsd_ref, bsd_ref, wsp_ref, bsp_ref,                 # shortcut depthwise / pointwise (BN folded)
        o_ref):
    x = x_ref[...]                                          # (CIN, L)   L = b_blk*HW lanes
    sel = sel_ref[...]                                      # (L, LO)    LO = b_blk*HWO lanes

    # ---- GhostModule 1 (1x1 primary conv + depthwise cheap op, relu=True) ----
    x1 = jnp.maximum(
        jnp.dot(wp1_ref[...], x, preferred_element_type=jnp.float32) + bp1_ref[...], 0.0)
    x2 = jnp.maximum(_dw3x3(x1, wc1_ref[...], mfull_ref, W) + bc1_ref[...], 0.0)   # (CM1, L)

    # ---- depthwise 3x3 stride-2 + BN (no relu), evaluated per ghost half (no concat) ----
    d1 = jnp.dot(_dw3x3(x1, wda_ref[...], mfull_ref, W), sel,
                 preferred_element_type=jnp.float32) + bda_ref[...]                 # (CM1, LO)
    d2 = jnp.dot(_dw3x3(x2, wdb_ref[...], mfull_ref, W), sel,
                 preferred_element_type=jnp.float32) + bdb_ref[...]                 # (CM1, LO)
    d = jnp.concatenate([d1, d2], axis=0)                   # (HID, LO) half-res, 4 vregs

    # ---- SE: per-image avg pool -> fc -> relu -> fc -> clamp(0,1) gate (N = b_blk cols) --
    pooled = jnp.dot(d, avg_ref[...], preferred_element_type=jnp.float32)           # (HID, b_blk)
    hvec = jnp.maximum(
        jnp.dot(wfc1_ref[...], pooled, preferred_element_type=jnp.float32) + bfc1_ref[...], 0.0)
    gate = jnp.clip(
        jnp.dot(wfc2_ref[...], hvec, preferred_element_type=jnp.float32) + bfc2_ref[...],
        0.0, 1.0)                                                                    # (HID, b_blk)
    d = d * jnp.dot(gate, exp_ref[...], preferred_element_type=jnp.float32)          # per-image gate

    # ---- GhostModule 2 (hidden_dim -> oup, relu=False) ----
    y1 = jnp.dot(wp2_ref[...], d, preferred_element_type=jnp.float32) + bp2_ref[...]  # (CM2, LO)
    y2 = _dw3x3(y1, wc2_ref[...], mhalf_ref, WO) + bc2_ref[...]                       # (CM2, LO)

    # ---- shortcut: depthwise 3x3 s2 + BN + ReLU, then 1x1 conv + BN ----
    scd = jnp.maximum(
        jnp.dot(_dw3x3(x, wsd_ref[...], mfull_ref, W), sel,
                preferred_element_type=jnp.float32) + bsd_ref[...], 0.0)               # (CIN, LO)
    sc = jnp.dot(wsp_ref[...], scd, preferred_element_type=jnp.float32) + bsp_ref[...] # (OUP, LO)

    # write the two ghost halves directly at aligned sublane offsets (no output concat)
    o_ref[0:CM2, :] = (y1 + sc[0:CM2, :]).astype(o_ref.dtype)
    o_ref[CM2:OUP, :] = (y2 + sc[CM2:OUP, :]).astype(o_ref.dtype)


# ---------------- wrapper ----------------
def _fold_bn(bn):
    gamma, beta, mean, var = bn
    scale = gamma / jnp.sqrt(var + BN_EPS)
    return scale, beta - scale * mean


def _const_spec(arr):
    nd = arr.ndim
    return pl.BlockSpec(arr.shape, lambda g, _nd=nd: (0,) * _nd)


def ghost_bottleneck_forward(x, p, b_blk=None):
    bsz = x.shape[0]
    if b_blk is None:
        # fold 2 images into lanes -> 128-lane-dense half-res tiles and output stores.
        # TODO(synk): on v7x (2 TensorCores) pick b_blk so that bsz // b_blk >= 2 grid steps.
        b_blk = min(bsz, 2)
    assert bsz % b_blk == 0
    L, LO = b_blk * HW, b_blk * HWO
    nsteps = bsz // b_blk

    # activations: channels on sublanes, (image, spatial) contiguous on lanes
    xl = jnp.transpose(x, (1, 0, 2, 3)).reshape(CIN, bsz * HW)

    mfull = jnp.asarray(_tap_masks(H, W, b_blk))            # (9, L)
    mhalf = jnp.asarray(_tap_masks(HO, WO, b_blk))          # (9, LO)
    sel = jnp.asarray(_subsample_matrix(b_blk))             # (L, LO)
    avg_np, exp_np = _pool_matrices(b_blk)
    avg_m, exp_m = jnp.asarray(avg_np), jnp.asarray(exp_np)

    # fold eval-mode BatchNorm into the conv weights / biases
    sp1, bp1 = _fold_bn(p["gm1_p_bn"]); wp1 = p["gm1_pw"] * sp1[:, None]
    sc1, bc1 = _fold_bn(p["gm1_c_bn"]); wc1 = p["gm1_cw"].reshape(CM1, 9) * sc1[:, None]
    sd,  bd  = _fold_bn(p["dw_bn"]);    wd  = p["dw_w"].reshape(HID, 9) * sd[:, None]
    sp2, bp2 = _fold_bn(p["gm2_p_bn"]); wp2 = p["gm2_pw"] * sp2[:, None]
    sc2, bc2 = _fold_bn(p["gm2_c_bn"]); wc2 = p["gm2_cw"].reshape(CM2, 9) * sc2[:, None]
    ssd, bsd = _fold_bn(p["sc_dw_bn"]); wsd = p["sc_dw_w"].reshape(CIN, 9) * ssd[:, None]
    ssp, bsp = _fold_bn(p["sc_pw_bn"]); wsp = p["sc_pw"] * ssp[:, None]

    col = lambda v: v.reshape(-1, 1)
    inputs = [
        xl, mfull, mhalf, sel, avg_m, exp_m,
        wp1, col(bp1), wc1, col(bc1),
        wd[:CM1], col(bd[:CM1]), wd[CM1:], col(bd[CM1:]),        # dw weights pre-split per half
        p["se_fc1_w"], col(p["se_fc1_b"]), p["se_fc2_w"], col(p["se_fc2_b"]),
        wp2, col(bp2), wc2, col(bc2),
        wsd, col(bsd), wsp, col(bsp),
    ]
    in_specs = [pl.BlockSpec((CIN, L), lambda g: (0, g))]
    in_specs += [_const_spec(a) for a in inputs[1:]]

    # rough per-call cost so XLA schedules around a known-cheap custom call
    mm_flops = 2 * (CM1 * CIN * L + (HID + CIN) * L * LO + CM2 * HID * LO + OUP * CIN * LO
                    + HID * LO * b_blk + SER * HID * b_blk + HID * SER * b_blk
                    + HID * b_blk * LO)
    dw_flops = 27 * ((CM1 + HID + CIN) * L + CM2 * LO)
    const_bytes = 4 * sum(int(a.size) for a in inputs[1:])
    cost = pl.CostEstimate(
        flops=int(nsteps * (mm_flops + dw_flops)),
        transcendentals=0,
        bytes_accessed=int(4 * xl.size + 4 * OUP * bsz * HWO + const_bytes))

    out = pl.pallas_call(
        ghost_bottleneck_kernel,
        out_shape=jax.ShapeDtypeStruct((OUP, bsz * HWO), x.dtype),
        grid=(nsteps,),
        in_specs=in_specs,
        out_specs=pl.BlockSpec((OUP, LO), lambda g: (0, g)),
        compiler_params=pltpu.CompilerParams(dimension_semantics=("parallel",)),
        cost_estimate=cost,
    )(*inputs)
    # (OUP, bsz*HWO) -> (bsz, OUP, HO, WO)
    return jnp.transpose(out.reshape(OUP, bsz, HO, WO), (1, 0, 2, 3))


# ---------------- pure-JAX reference (lax.conv, for correctness check) ----------------
def _conv(x, w, stride=1, padding=0, groups=1):
    return lax.conv_general_dilated(
        x, w, window_strides=(stride, stride),
        padding=((padding, padding), (padding, padding)),
        dimension_numbers=("NCHW", "OIHW", "NCHW"),
        feature_group_count=groups,
        precision=lax.Precision.HIGHEST)


def _bn(x, bn):
    gamma, beta, mean, var = bn
    scale = gamma / jnp.sqrt(var + BN_EPS)
    return x * scale[None, :, None, None] + (beta - scale * mean)[None, :, None, None]


def reference_forward(x, p):
    x1 = jax.nn.relu(_bn(_conv(x, p["gm1_pw"][:, :, None, None]), p["gm1_p_bn"]))
    x2 = jax.nn.relu(_bn(_conv(x1, p["gm1_cw"][:, None, :, :], padding=1, groups=CM1),
                         p["gm1_c_bn"]))
    g1 = jnp.concatenate([x1, x2], axis=1)[:, :HID]
    d = _bn(_conv(g1, p["dw_w"][:, None, :, :], stride=STRIDE, padding=1, groups=HID),
            p["dw_bn"])
    pooled = jnp.mean(d, axis=(2, 3))
    hvec = jax.nn.relu(jnp.dot(pooled, p["se_fc1_w"].T,
                               precision=lax.Precision.HIGHEST) + p["se_fc1_b"])
    gate = jnp.dot(hvec, p["se_fc2_w"].T, precision=lax.Precision.HIGHEST) + p["se_fc2_b"]
    gate = jnp.clip(gate, 0.0, 1.0)
    d = d * gate[:, :, None, None]
    y1 = _bn(_conv(d, p["gm2_pw"][:, :, None, None]), p["gm2_p_bn"])
    y2 = _bn(_conv(y1, p["gm2_cw"][:, None, :, :], padding=1, groups=CM2), p["gm2_c_bn"])
    g2 = jnp.concatenate([y1, y2], axis=1)[:, :OUP]
    s = jax.nn.relu(_bn(_conv(x, p["sc_dw_w"][:, None, :, :], stride=STRIDE, padding=1,
                              groups=CIN), p["sc_dw_bn"]))
    s = _bn(_conv(s, p["sc_pw"][:, :, None, None]), p["sc_pw_bn"])
    return g2 + s


# ---------------- deterministic parameter init (PyTorch layout, eval-mode BN stats) ----
def init_params(key):
    ks = jax.random.split(key, 18)
    scl = 0.1

    def bn(k, c):
        k1, k2, k3, k4 = jax.random.split(k, 4)
        return (jax.random.uniform(k1, (c,), jnp.float32, 0.5, 1.5),
                scl * jax.random.normal(k2, (c,), jnp.float32),
                scl * jax.random.normal(k3, (c,), jnp.float32),
                jax.random.uniform(k4, (c,), jnp.float32, 0.5, 1.5))

    return {
        "gm1_pw": scl * jax.random.normal(ks[0], (CM1, CIN), jnp.float32),
        "gm1_p_bn": bn(ks[1], CM1),
        "gm1_cw": scl * jax.random.normal(ks[2], (CM1, 3, 3), jnp.float32),
        "gm1_c_bn": bn(ks[3], CM1),
        "dw_w": scl * jax.random.normal(ks[4], (HID, 3, 3), jnp.float32),
        "dw_bn": bn(ks[5], HID),
        "se_fc1_w": scl * jax.random.normal(ks[6], (SER, HID), jnp.float32),
        "se_fc1_b": scl * jax.random.normal(ks[7], (SER,), jnp.float32),
        "se_fc2_w": scl * jax.random.normal(ks[8], (HID, SER), jnp.float32),
        "se_fc2_b": 0.5 + 0.5 * jax.random.normal(ks[9], (HID,), jnp.float32),
        "gm2_pw": scl * jax.random.normal(ks[10], (CM2, HID), jnp.float32),
        "gm2_p_bn": bn(ks[11], CM2),
        "gm2_cw": scl * jax.random.normal(ks[12], (CM2, 3, 3), jnp.float32),
        "gm2_c_bn": bn(ks[13], CM2),
        "sc_dw_w": scl * jax.random.normal(ks[14], (CIN, 3, 3), jnp.float32),
        "sc_dw_bn": bn(ks[15], CIN),
        "sc_pw": scl * jax.random.normal(ks[16], (OUP, CIN), jnp.float32),
        "sc_pw_bn": bn(ks[17], OUP),
    }


if __name__ == "__main__":
    key = jax.random.PRNGKey(0)
    kx, kp = jax.random.split(key)
    x = jax.random.normal(kx, (B, CIN, H, W), jnp.float32)
    params = init_params(kp)

    fwd = jax.jit(ghost_bottleneck_forward)
    out = jax.block_until_ready(fwd(x, params))

    ref = reference_forward(x, params)
    assert out.shape == (B, OUP, HO, WO), out.shape
    max_err = float(jnp.max(jnp.abs(out - ref)))
    assert jnp.allclose(out, ref, rtol=1e-4, atol=1e-4), max_err
    print("KERNEL_OK")
</pallas_src>

<mosaic_0001>
module attributes {stable_mosaic.version = 11 : i64} {
  func.func @ghost_bottleneck_kernel(%arg0: i32, %arg1: memref<16x512xf32, #tpu.memory_space<vmem>>, %arg2: memref<9x512xf32, #tpu.memory_space<vmem>>, %arg3: memref<9x128xf32, #tpu.memory_space<vmem>>, %arg4: memref<512x128xf32, #tpu.memory_space<vmem>>, %arg5: memref<128x2xf32, #tpu.memory_space<vmem>>, %arg6: memref<2x128xf32, #tpu.memory_space<vmem>>, %arg7: memref<16x16xf32, #tpu.memory_space<vmem>>, %arg8: memref<16x1xf32, #tpu.memory_space<vmem>>, %arg9: memref<16x9xf32, #tpu.memory_space<vmem>>, %arg10: memref<16x1xf32, #tpu.memory_space<vmem>>, %arg11: memref<16x9xf32, #tpu.memory_space<vmem>>, %arg12: memref<16x1xf32, #tpu.memory_space<vmem>>, %arg13: memref<16x9xf32, #tpu.memory_space<vmem>>, %arg14: memref<16x1xf32, #tpu.memory_space<vmem>>, %arg15: memref<8x32xf32, #tpu.memory_space<vmem>>, %arg16: memref<8x1xf32, #tpu.memory_space<vmem>>, %arg17: memref<32x8xf32, #tpu.memory_space<vmem>>, %arg18: memref<32x1xf32, #tpu.memory_space<vmem>>, %arg19: memref<8x32xf32, #tpu.memory_space<vmem>>, %arg20: memref<8x1xf32, #tpu.memory_space<vmem>>, %arg21: memref<8x9xf32, #tpu.memory_space<vmem>>, %arg22: memref<8x1xf32, #tpu.memory_space<vmem>>, %arg23: memref<16x9xf32, #tpu.memory_space<vmem>>, %arg24: memref<16x1xf32, #tpu.memory_space<vmem>>, %arg25: memref<16x16xf32, #tpu.memory_space<vmem>>, %arg26: memref<16x1xf32, #tpu.memory_space<vmem>>, %arg27: memref<16x128xf32, #tpu.memory_space<vmem>>) attributes {dimension_semantics = [#tpu.dimension_semantics<parallel>], iteration_bounds = array<i64: 1>, scalar_prefetch = 0 : i64, scratch_operands = 0 : i64, tpu.core_type = #tpu.core_type<tc>, window_params = [{transform_indices = @transform_0, window_bounds = array<i64: 16, 512>}, {pipeline_mode = #tpu.pipeline_mode<synchronous>, transform_indices = @transform_1, window_bounds = array<i64: 9, 512>}, {pipeline_mode = #tpu.pipeline_mode<synchronous>, transform_indices = @transform_2, window_bounds = array<i64: 9, 128>}, {pipeline_mode = #tpu.pipeline_mode<synchronous>, transform_indices = @transform_3, window_bounds = array<i64: 512, 128>}, {pipeline_mode = #tpu.pipeline_mode<synchronous>, transform_indices = @transform_4, window_bounds = array<i64: 128, 2>}, {pipeline_mode = #tpu.pipeline_mode<synchronous>, transform_indices = @transform_5, window_bounds = array<i64: 2, 128>}, {pipeline_mode = #tpu.pipeline_mode<synchronous>, transform_indices = @transform_6, window_bounds = array<i64: 16, 16>}, {pipeline_mode = #tpu.pipeline_mode<synchronous>, transform_indices = @transform_7, window_bounds = array<i64: 16, 1>}, {pipeline_mode = #tpu.pipeline_mode<synchronous>, transform_indices = @transform_8, window_bounds = array<i64: 16, 9>}, {pipeline_mode = #tpu.pipeline_mode<synchronous>, transform_indices = @transform_9, window_bounds = array<i64: 16, 1>}, {pipeline_mode = #tpu.pipeline_mode<synchronous>, transform_indices = @transform_10, window_bounds = array<i64: 16, 9>}, {pipeline_mode = #tpu.pipeline_mode<synchronous>, transform_indices = @transform_11, window_bounds = array<i64: 16, 1>}, {pipeline_mode = #tpu.pipeline_mode<synchronous>, transform_indices = @transform_12, window_bounds = array<i64: 16, 9>}, {pipeline_mode = #tpu.pipeline_mode<synchronous>, transform_indices = @transform_13, window_bounds = array<i64: 16, 1>}, {pipeline_mode = #tpu.pipeline_mode<synchronous>, transform_indices = @transform_14, window_bounds = array<i64: 8, 32>}, {pipeline_mode = #tpu.pipeline_mode<synchronous>, transform_indices = @transform_15, window_bounds = array<i64: 8, 1>}, {pipeline_mode = #tpu.pipeline_mode<synchronous>, transform_indices = @transform_16, window_bounds = array<i64: 32, 8>}, {pipeline_mode = #tpu.pipeline_mode<synchronous>, transform_indices = @transform_17, window_bounds = array<i64: 32, 1>}, {pipeline_mode = #tpu.pipeline_mode<synchronous>, transform_indices = @transform_18, window_bounds = array<i64: 8, 32>}, {pipeline_mode = #tpu.pipeline_mode<synchronous>, transform_indices = @transform_19, window_bounds = array<i64: 8, 1>}, {pipeline_mode = #tpu.pipeline_mode<synchronous>, transform_indices = @transform_20, window_bounds = array<i64: 8, 9>}, {pipeline_mode = #tpu.pipeline_mode<synchronous>, transform_indices = @transform_21, window_bounds = array<i64: 8, 1>}, {pipeline_mode = #tpu.pipeline_mode<synchronous>, transform_indices = @transform_22, window_bounds = array<i64: 16, 9>}, {pipeline_mode = #tpu.pipeline_mode<synchronous>, transform_indices = @transform_23, window_bounds = array<i64: 16, 1>}, {pipeline_mode = #tpu.pipeline_mode<synchronous>, transform_indices = @transform_24, window_bounds = array<i64: 16, 16>}, {pipeline_mode = #tpu.pipeline_mode<synchronous>, transform_indices = @transform_25, window_bounds = array<i64: 16, 1>}, {transform_indices = @transform_26, window_bounds = array<i64: 16, 128>}]} {
    %c0 = arith.constant 0 : index
    %c0_0 = arith.constant 0 : index
    %0 = vector.load %arg1[%c0, %c0_0] : memref<16x512xf32, #tpu.memory_space<vmem>>, vector<16x512xf32>
    %c0_1 = arith.constant 0 : index
    %c0_2 = arith.constant 0 : index
    %1 = vector.load %arg4[%c0_1, %c0_2] : memref<512x128xf32, #tpu.memory_space<vmem>>, vector<512x128xf32>
    %c0_3 = arith.constant 0 : index
    %c0_4 = arith.constant 0 : index
    %2 = vector.load %arg7[%c0_3, %c0_4] : memref<16x16xf32, #tpu.memory_space<vmem>>, vector<16x16xf32>
    %cst = arith.constant dense<0.000000e+00> : vector<16x512xf32>
    %3 = tpu.matmul %2, %0, %cst {dimension_numbers = #tpu.dot_dimension_numbers<[1], [0], [0], [1], [0, 0, 1, 1], [], []>} : vector<16x16xf32>, vector<16x512xf32>, vector<16x512xf32> -> vector<16x512xf32>
    %c0_5 = arith.constant 0 : index
    %c0_6 = arith.constant 0 : index
    %4 = vector.load %arg8[%c0_5, %c0_6] : memref<16x1xf32, #tpu.memory_space<vmem>>, vector<16x1xf32>
    %5 = vector.broadcast %4 : vector<16x1xf32> to vector<16x512xf32>
    %6 = arith.addf %3, %5 : vector<16x512xf32>
    %cst_7 = arith.constant 0.000000e+00 : f32
    %7 = vector.broadcast %cst_7 : f32 to vector<16x512xf32>
    %8 = arith.maximumf %6, %7 : vector<16x512xf32>
    %c0_8 = arith.constant 0 : index
    %c0_9 = arith.constant 0 : index
    %9 = vector.load %arg9[%c0_8, %c0_9] : memref<16x9xf32, #tpu.memory_space<vmem>>, vector<16x9xf32>
    %10 = vector.extract_strided_slice %9 {offsets = [0, 4], sizes = [16, 1], strides = [1, 1]} : vector<16x9xf32> to vector<16x1xf32>
    %11 = vector.broadcast %10 : vector<16x1xf32> to vector<16x512xf32>
    %12 = arith.mulf %8, %11 : vector<16x512xf32>
    %c17_i32 = arith.constant 17 : i32
    %13 = tpu.dynamic_rotate %8 by %c17_i32 dim 1 : vector<16x512xf32>, i32 -> vector<16x512xf32>
    %c0_10 = arith.constant 0 : index
    %c0_11 = arith.constant 0 : index
    %14 = vector.load %arg2[%c0_10, %c0_11] : memref<9x512xf32, #tpu.memory_space<vmem>>, vector<1x512xf32>
    %15 = vector.broadcast %14 : vector<1x512xf32> to vector<16x512xf32>
    %16 = arith.mulf %13, %15 : vector<16x512xf32>
    %17 = vector.extract_strided_slice %9 {offsets = [0, 0], sizes = [16, 1], strides = [1, 1]} : vector<16x9xf32> to vector<16x1xf32>
    %18 = vector.broadcast %17 : vector<16x1xf32> to vector<16x512xf32>
    %19 = arith.mulf %16, %18 : vector<16x512xf32>
    %20 = arith.addf %12, %19 : vector<16x512xf32>
    %c16_i32 = arith.constant 16 : i32
    %21 = tpu.dynamic_rotate %8 by %c16_i32 dim 1 : vector<16x512xf32>, i32 -> vector<16x512xf32>
    %c1 = arith.constant 1 : index
    %c0_12 = arith.constant 0 : index
    %22 = vector.load %arg2[%c1, %c0_12] : memref<9x512xf32, #tpu.memory_space<vmem>>, vector<1x512xf32>
    %23 = vector.broadcast %22 : vector<1x512xf32> to vector<16x512xf32>
    %24 = arith.mulf %21, %23 : vector<16x512xf32>
    %25 = vector.extract_strided_slice %9 {offsets = [0, 1], sizes = [16, 1], strides = [1, 1]} : vector<16x9xf32> to vector<16x1xf32>
    %26 = vector.broadcast %25 : vector<16x1xf32> to vector<16x512xf32>
    %27 = arith.mulf %24, %26 : vector<16x512xf32>
    %28 = arith.addf %20, %27 : vector<16x512xf32>
    %c15_i32 = arith.constant 15 : i32
    %29 = tpu.dynamic_rotate %8 by %c15_i32 dim 1 : vector<16x512xf32>, i32 -> vector<16x512xf32>
    %c2 = arith.constant 2 : index
    %c0_13 = arith.constant 0 : index
    %30 = vector.load %arg2[%c2, %c0_13] : memref<9x512xf32, #tpu.memory_space<vmem>>, vector<1x512xf32>
    %31 = vector.broadcast %30 : vector<1x512xf32> to vector<16x512xf32>
    %32 = arith.mulf %29, %31 : vector<16x512xf32>
    %33 = vector.extract_strided_slice %9 {offsets = [0, 2], sizes = [16, 1], strides = [1, 1]} : vector<16x9xf32> to vector<16x1xf32>
    %34 = vector.broadcast %33 : vector<16x1xf32> to vector<16x512xf32>
    %35 = arith.mulf %32, %34 : vector<16x512xf32>
    %36 = arith.addf %28, %35 : vector<16x512xf32>
    %c1_i32 = arith.constant 1 : i32
    %37 = tpu.dynamic_rotate %8 by %c1_i32 dim 1 : vector<16x512xf32>, i32 -> vector<16x512xf32>
    %c3 = arith.constant 3 : index
    %c0_14 = arith.constant 0 : index
    %38 = vector.load %arg2[%c3, %c0_14] : memref<9x512xf32, #tpu.memory_space<vmem>>, vector<1x512xf32>
    %39 = vector.broadcast %38 : vector<1x512xf32> to vector<16x512xf32>
    %40 = arith.mulf %37, %39 : vector<16x512xf32>
    %41 = vector.extract_strided_slice %9 {offsets = [0, 3], sizes = [16, 1], strides = [1, 1]} : vector<16x9xf32> to vector<16x1xf32>
    %42 = vector.broadcast %41 : vector<16x1xf32> to vector<16x512xf32>
    %43 = arith.mulf %40, %42 : vector<16x512xf32>
    %44 = arith.addf %36, %43 : vector<16x512xf32>
    %c511_i32 = arith.constant 511 : i32
    %45 = tpu.dynamic_rotate %8 by %c511_i32 dim 1 : vector<16x512xf32>, i32 -> vector<16x512xf32>
    %c5 = arith.constant 5 : index
    %c0_15 = arith.constant 0 : index
    %46 = vector.load %arg2[%c5, %c0_15] : memref<9x512xf32, #tpu.memory_space<vmem>>, vector<1x512xf32>
    %47 = vector.broadcast %46 : vector<1x512xf32> to vector<16x512xf32>
    %48 = arith.mulf %45, %47 : vector<16x512xf32>
    %49 = vector.extract_strided_slice %9 {offsets = [0, 5], sizes = [16, 1], strides = [1, 1]} : vector<16x9xf32> to vector<16x1xf32>
    %50 = vector.broadcast %49 : vector<16x1xf32> to vector<16x512xf32>
    %51 = arith.mulf %48, %50 : vector<16x512xf32>
    %52 = arith.addf %44, %51 : vector<16x512xf32>
    %c497_i32 = arith.constant 497 : i32
    %53 = tpu.dynamic_rotate %8 by %c497_i32 dim 1 : vector<16x512xf32>, i32 -> vector<16x512xf32>
    %c6 = arith.constant 6 : index
    %c0_16 = arith.constant 0 : index
    %54 = vector.load %arg2[%c6, %c0_16] : memref<9x512xf32, #tpu.memory_space<vmem>>, vector<1x512xf32>
    %55 = vector.broadcast %54 : vector<1x512xf32> to vector<16x512xf32>
    %56 = arith.mulf %53, %55 : vector<16x512xf32>
    %57 = vector.extract_strided_slice %9 {offsets = [0, 6], sizes = [16, 1], strides = [1, 1]} : vector<16x9xf32> to vector<16x1xf32>
    %58 = vector.broadcast %57 : vector<16x1xf32> to vector<16x512xf32>
    %59 = arith.mulf %56, %58 : vector<16x512xf32>
    %60 = arith.addf %52, %59 : vector<16x512xf32>
    %c496_i32 = arith.constant 496 : i32
    %61 = tpu.dynamic_rotate %8 by %c496_i32 dim 1 : vector<16x512xf32>, i32 -> vector<16x512xf32>
    %c7 = arith.constant 7 : index
    %c0_17 = arith.constant 0 : index
    %62 = vector.load %arg2[%c7, %c0_17] : memref<9x512xf32, #tpu.memory_space<vmem>>, vector<1x512xf32>
    %63 = vector.broadcast %62 : vector<1x512xf32> to vector<16x512xf32>
    %64 = arith.mulf %61, %63 : vector<16x512xf32>
    %65 = vector.extract_strided_slice %9 {offsets = [0, 7], sizes = [16, 1], strides = [1, 1]} : vector<16x9xf32> to vector<16x1xf32>
    %66 = vector.broadcast %65 : vector<16x1xf32> to vector<16x512xf32>
    %67 = arith.mulf %64, %66 : vector<16x512xf32>
    %68 = arith.addf %60, %67 : vector<16x512xf32>
    %c495_i32 = arith.constant 495 : i32
    %69 = tpu.dynamic_rotate %8 by %c495_i32 dim 1 : vector<16x512xf32>, i32 -> vector<16x512xf32>
    %c8 = arith.constant 8 : index
    %c0_18 = arith.constant 0 : index
    %70 = vector.load %arg2[%c8, %c0_18] : memref<9x512xf32, #tpu.memory_space<vmem>>, vector<1x512xf32>
    %71 = vector.broadcast %70 : vector<1x512xf32> to vector<16x512xf32>
    %72 = arith.mulf %69, %71 : vector<16x512xf32>
    %73 = vector.extract_strided_slice %9 {offsets = [0, 8], sizes = [16, 1], strides = [1, 1]} : vector<16x9xf32> to vector<16x1xf32>
    %74 = vector.broadcast %73 : vector<16x1xf32> to vector<16x512xf32>
    %75 = arith.mulf %72, %74 : vector<16x512xf32>
    %76 = arith.addf %68, %75 : vector<16x512xf32>
    %c0_19 = arith.constant 0 : index
    %c0_20 = arith.constant 0 : index
    %77 = vector.load %arg10[%c0_19, %c0_20] : memref<16x1xf32, #tpu.memory_space<vmem>>, vector<16x1xf32>
    %78 = vector.broadcast %77 : vector<16x1xf32> to vector<16x512xf32>
    %79 = arith.addf %76, %78 : vector<16x512xf32>
    %cst_21 = arith.constant 0.000000e+00 : f32
    %80 = vector.broadcast %cst_21 : f32 to vector<16x512xf32>
    %81 = arith.maximumf %79, %80 : vector<16x512xf32>
    %c0_22 = arith.constant 0 : index
    %c0_23 = arith.constant 0 : index
    %82 = vector.load %arg11[%c0_22, %c0_23] : memref<16x9xf32, #tpu.memory_space<vmem>>, vector<16x9xf32>
    %83 = vector.extract_strided_slice %82 {offsets = [0, 4], sizes = [16, 1], strides = [1, 1]} : vector<16x9xf32> to vector<16x1xf32>
    %84 = vector.broadcast %83 : vector<16x1xf32> to vector<16x512xf32>
    %85 = arith.mulf %8, %84 : vector<16x512xf32>
    %c17_i32_24 = arith.constant 17 : i32
    %86 = tpu.dynamic_rotate %8 by %c17_i32_24 dim 1 : vector<16x512xf32>, i32 -> vector<16x512xf32>
    %c0_25 = arith.constant 0 : index
    %c0_26 = arith.constant 0 : index
    %87 = vector.load %arg2[%c0_25, %c0_26] : memref<9x512xf32, #tpu.memory_space<vmem>>, vector<1x512xf32>
    %88 = vector.broadcast %87 : vector<1x512xf32> to vector<16x512xf32>
    %89 = arith.mulf %86, %88 : vector<16x512xf32>
    %90 = vector.extract_strided_slice %82 {offsets = [0, 0], sizes = [16, 1], strides = [1, 1]} : vector<16x9xf32> to vector<16x1xf32>
    %91 = vector.broadcast %90 : vector<16x1xf32> to vector<16x512xf32>
    %92 = arith.mulf %89, %91 : vector<16x512xf32>
    %93 = arith.addf %85, %92 : vector<16x512xf32>
    %c16_i32_27 = arith.constant 16 : i32
    %94 = tpu.dynamic_rotate %8 by %c16_i32_27 dim 1 : vector<16x512xf32>, i32 -> vector<16x512xf32>
    %c1_28 = arith.constant 1 : index
    %c0_29 = arith.constant 0 : index
    %95 = vector.load %arg2[%c1_28, %c0_29] : memref<9x512xf32, #tpu.memory_space<vmem>>, vector<1x512xf32>
    %96 = vector.broadcast %95 : vector<1x512xf32> to vector<16x512xf32>
    %97 = arith.mulf %94, %96 : vector<16x512xf32>
    %98 = vector.extract_strided_slice %82 {offsets = [0, 1], sizes = [16, 1], strides = [1, 1]} : vector<16x9xf32> to vector<16x1xf32>
    %99 = vector.broadcast %98 : vector<16x1xf32> to vector<16x512xf32>
    %100 = arith.mulf %97, %99 : vector<16x512xf32>
    %101 = arith.addf %93, %100 : vector<16x512xf32>
    %c15_i32_30 = arith.constant 15 : i32
    %102 = tpu.dynamic_rotate %8 by %c15_i32_30 dim 1 : vector<16x512xf32>, i32 -> vector<16x512xf32>
    %c2_31 = arith.constant 2 : index
    %c0_32 = arith.constant 0 : index
    %103 = vector.load %arg2[%c2_31, %c0_32] : memref<9x512xf32, #tpu.memory_space<vmem>>, vector<1x512xf32>
    %104 = vector.broadcast %103 : vector<1x512xf32> to vector<16x512xf32>
    %105 = arith.mulf %102, %104 : vector<16x512xf32>
    %106 = vector.extract_strided_slice %82 {offsets = [0, 2], sizes = [16, 1], strides = [1, 1]} : vector<16x9xf32> to vector<16x1xf32>
    %107 = vector.broadcast %106 : vector<16x1xf32> to vector<16x512xf32>
    %108 = arith.mulf %105, %107 : vector<16x512xf32>
    %109 = arith.addf %101, %108 : vector<16x512xf32>
    %c1_i32_33 = arith.constant 1 : i32
    %110 = tpu.dynamic_rotate %8 by %c1_i32_33 dim 1 : vector<16x512xf32>, i32 -> vector<16x512xf32>
    %c3_34 = arith.constant 3 : index
    %c0_35 = arith.constant 0 : index
    %111 = vector.load %arg2[%c3_34, %c0_35] : memref<9x512xf32, #tpu.memory_space<vmem>>, vector<1x512xf32>
    %112 = vector.broadcast %111 : vector<1x512xf32> to vector<16x512xf32>
    %113 = arith.mulf %110, %112 : vector<16x512xf32>
    %114 = vector.extract_strided_slice %82 {offsets = [0, 3], sizes = [16, 1], strides = [1, 1]} : vector<16x9xf32> to vector<16x1xf32>
    %115 = vector.broadcast %114 : vector<16x1xf32> to vector<16x512xf32>
    %116 = arith.mulf %113, %115 : vector<16x512xf32>
    %117 = arith.addf %109, %116 : vector<16x512xf32>
    %c511_i32_36 = arith.constant 511 : i32
    %118 = tpu.dynamic_rotate %8 by %c511_i32_36 dim 1 : vector<16x512xf32>, i32 -> vector<16x512xf32>
    %c5_37 = arith.constant 5 : index
    %c0_38 = arith.constant 0 : index
    %119 = vector.load %arg2[%c5_37, %c0_38] : memref<9x512xf32, #tpu.memory_space<vmem>>, vector<1x512xf32>
    %120 = vector.broadcast %119 : vector<1x512xf32> to vector<16x512xf32>
    %121 = arith.mulf %118, %120 : vector<16x512xf32>
    %122 = vector.extract_strided_slice %82 {offsets = [0, 5], sizes = [16, 1], strides = [1, 1]} : vector<16x9xf32> to vector<16x1xf32>
    %123 = vector.broadcast %122 : vector<16x1xf32> to vector<16x512xf32>
    %124 = arith.mulf %121, %123 : vector<16x512xf32>
    %125 = arith.addf %117, %124 : vector<16x512xf32>
    %c497_i32_39 = arith.constant 497 : i32
    %126 = tpu.dynamic_rotate %8 by %c497_i32_39 dim 1 : vector<16x512xf32>, i32 -> vector<16x512xf32>
    %c6_40 = arith.constant 6 : index
    %c0_41 = arith.constant 0 : index
    %127 = vector.load %arg2[%c6_40, %c0_41] : memref<9x512xf32, #tpu.memory_space<vmem>>, vector<1x512xf32>
    %128 = vector.broadcast %127 : vector<1x512xf32> to vector<16x512xf32>
    %129 = arith.mulf %126, %128 : vector<16x512xf32>
    %130 = vector.extract_strided_slice %82 {offsets = [0, 6], sizes = [16, 1], strides = [1, 1]} : vector<16x9xf32> to vector<16x1xf32>
    %131 = vector.broadcast %130 : vector<16x1xf32> to vector<16x512xf32>
    %132 = arith.mulf %129, %131 : vector<16x512xf32>
    %133 = arith.addf %125, %132 : vector<16x512xf32>
    %c496_i32_42 = arith.constant 496 : i32
    %134 = tpu.dynamic_rotate %8 by %c496_i32_42 dim 1 : vector<16x512xf32>, i32 -> vector<16x512xf32>
    %c7_43 = arith.constant 7 : index
    %c0_44 = arith.constant 0 : index
    %135 = vector.load %arg2[%c7_43, %c0_44] : memref<9x512xf32, #tpu.memory_space<vmem>>, vector<1x512xf32>
    %136 = vector.broadcast %135 : vector<1x512xf32> to vector<16x512xf32>
    %137 = arith.mulf %134, %136 : vector<16x512xf32>
    %138 = vector.extract_strided_slice %82 {offsets = [0, 7], sizes = [16, 1], strides = [1, 1]} : vector<16x9xf32> to vector<16x1xf32>
    %139 = vector.broadcast %138 : vector<16x1xf32> to vector<16x512xf32>
    %140 = arith.mulf %137, %139 : vector<16x512xf32>
    %141 = arith.addf %133, %140 : vector<16x512xf32>
    %c495_i32_45 = arith.constant 495 : i32
    %142 = tpu.dynamic_rotate %8 by %c495_i32_45 dim 1 : vector<16x512xf32>, i32 -> vector<16x512xf32>
    %c8_46 = arith.constant 8 : index
    %c0_47 = arith.constant 0 : index
    %143 = vector.load %arg2[%c8_46, %c0_47] : memref<9x512xf32, #tpu.memory_space<vmem>>, vector<1x512xf32>
    %144 = vector.broadcast %143 : vector<1x512xf32> to vector<16x512xf32>
    %145 = arith.mulf %142, %144 : vector<16x512xf32>
    %146 = vector.extract_strided_slice %82 {offsets = [0, 8], sizes = [16, 1], strides = [1, 1]} : vector<16x9xf32> to vector<16x1xf32>
    %147 = vector.broadcast %146 : vector<16x1xf32> to vector<16x512xf32>
    %148 = arith.mulf %145, %147 : vector<16x512xf32>
    %149 = arith.addf %141, %148 : vector<16x512xf32>
    %cst_48 = arith.constant dense<0.000000e+00> : vector<16x128xf32>
    %150 = tpu.matmul %149, %1, %cst_48 {dimension_numbers = #tpu.dot_dimension_numbers<[1], [0], [0], [1], [0, 0, 1, 1], [], []>} : vector<16x512xf32>, vector<512x128xf32>, vector<16x128xf32> -> vector<16x128xf32>
    %c0_49 = arith.constant 0 : index
    %c0_50 = arith.constant 0 : index
    %151 = vector.load %arg12[%c0_49, %c0_50] : memref<16x1xf32, #tpu.memory_space<vmem>>, vector<16x1xf32>
    %152 = vector.broadcast %151 : vector<16x1xf32> to vector<16x128xf32>
    %153 = arith.addf %150, %152 : vector<16x128xf32>
    %c0_51 = arith.constant 0 : index
    %c0_52 = arith.constant 0 : index
    %154 = vector.load %arg13[%c0_51, %c0_52] : memref<16x9xf32, #tpu.memory_space<vmem>>, vector<16x9xf32>
    %155 = vector.extract_strided_slice %154 {offsets = [0, 4], sizes = [16, 1], strides = [1, 1]} : vector<16x9xf32> to vector<16x1xf32>
    %156 = vector.broadcast %155 : vector<16x1xf32> to vector<16x512xf32>
    %157 = arith.mulf %81, %156 : vector<16x512xf32>
    %c17_i32_53 = arith.constant 17 : i32
    %158 = tpu.dynamic_rotate %81 by %c17_i32_53 dim 1 : vector<16x512xf32>, i32 -> vector<16x512xf32>
    %c0_54 = arith.constant 0 : index
    %c0_55 = arith.constant 0 : index
    %159 = vector.load %arg2[%c0_54, %c0_55] : memref<9x512xf32, #tpu.memory_space<vmem>>, vector<1x512xf32>
    %160 = vector.broadcast %159 : vector<1x512xf32> to vector<16x512xf32>
    %161 = arith.mulf %158, %160 : vector<16x512xf32>
    %162 = vector.extract_strided_slice %154 {offsets = [0, 0], sizes = [16, 1], strides = [1, 1]} : vector<16x9xf32> to vector<16x1xf32>
    %163 = vector.broadcast %162 : vector<16x1xf32> to vector<16x512xf32>
    %164 = arith.mulf %161, %163 : vector<16x512xf32>
    %165 = arith.addf %157, %164 : vector<16x512xf32>
    %c16_i32_56 = arith.constant 16 : i32
    %166 = tpu.dynamic_rotate %81 by %c16_i32_56 dim 1 : vector<16x512xf32>, i32 -> vector<16x512xf32>
    %c1_57 = arith.constant 1 : index
    %c0_58 = arith.constant 0 : index
    %167 = vector.load %arg2[%c1_57, %c0_58] : memref<9x512xf32, #tpu.memory_space<vmem>>, vector<1x512xf32>
    %168 = vector.broadcast %167 : vector<1x512xf32> to vector<16x512xf32>
    %169 = arith.mulf %166, %168 : vector<16x512xf32>
    %170 = vector.extract_strided_slice %154 {offsets = [0, 1], sizes = [16, 1], strides = [1, 1]} : vector<16x9xf32> to vector<16x1xf32>
    %171 = vector.broadcast %170 : vector<16x1xf32> to vector<16x512xf32>
    %172 = arith.mulf %169, %171 : vector<16x512xf32>
    %173 = arith.addf %165, %172 : vector<16x512xf32>
    %c15_i32_59 = arith.constant 15 : i32
    %174 = tpu.dynamic_rotate %81 by %c15_i32_59 dim 1 : vector<16x512xf32>, i32 -> vector<16x512xf32>
    %c2_60 = arith.constant 2 : index
    %c0_61 = arith.constant 0 : index
    %175 = vector.load %arg2[%c2_60, %c0_61] : memref<9x512xf32, #tpu.memory_space<vmem>>, vector<1x512xf32>
    %176 = vector.broadcast %175 : vector<1x512xf32> to vector<16x512xf32>
    %177 = arith.mulf %174, %176 : vector<16x512xf32>
    %178 = vector.extract_strided_slice %154 {offsets = [0, 2], sizes = [16, 1], strides = [1, 1]} : vector<16x9xf32> to vector<16x1xf32>
    %179 = vector.broadcast %178 : vector<16x1xf32> to vector<16x512xf32>
    %180 = arith.mulf %177, %179 : vector<16x512xf32>
    %181 = arith.addf %173, %180 : vector<16x512xf32>
    %c1_i32_62 = arith.constant 1 : i32
    %182 = tpu.dynamic_rotate %81 by %c1_i32_62 dim 1 : vector<16x512xf32>, i32 -> vector<16x512xf32>
    %c3_63 = arith.constant 3 : index
    %c0_64 = arith.constant 0 : index
    %183 = vector.load %arg2[%c3_63, %c0_64] : memref<9x512xf32, #tpu.memory_space<vmem>>, vector<1x512xf32>
    %184 = vector.broadcast %183 : vector<1x512xf32> to vector<16x512xf32>
    %185 = arith.mulf %182, %184 : vector<16x512xf32>
    %186 = vector.extract_strided_slice %154 {offsets = [0, 3], sizes = [16, 1], strides = [1, 1]} : vector<16x9xf32> to vector<16x1xf32>
    %187 = vector.broadcast %186 : vector<16x1xf32> to vector<16x512xf32>
    %188 = arith.mulf %185, %187 : vector<16x512xf32>
    %189 = arith.addf %181, %188 : vector<16x512xf32>
    %c511_i32_65 = arith.constant 511 : i32
    %190 = tpu.dynamic_rotate %81 by %c511_i32_65 dim 1 : vector<16x512xf32>, i32 -> vector<16x512xf32>
    %c5_66 = arith.constant 5 : index
    %c0_67 = arith.constant 0 : index
    %191 = vector.load %arg2[%c5_66, %c0_67] : memref<9x512xf32, #tpu.memory_space<vmem>>, vector<1x512xf32>
    %192 = vector.broadcast %191 : vector<1x512xf32> to vector<16x512xf32>
    %193 = arith.mulf %190, %192 : vector<16x512xf32>
    %194 = vector.extract_strided_slice %154 {offsets = [0, 5], sizes = [16, 1], strides = [1, 1]} : vector<16x9xf32> to vector<16x1xf32>
    %195 = vector.broadcast %194 : vector<16x1xf32> to vector<16x512xf32>
    %196 = arith.mulf %193, %195 : vector<16x512xf32>
    %197 = arith.addf %189, %196 : vector<16x512xf32>
    %c497_i32_68 = arith.constant 497 : i32
    %198 = tpu.dynamic_rotate %81 by %c497_i32_68 dim 1 : vector<16x512xf32>, i32 -> vector<16x512xf32>
    %c6_69 = arith.constant 6 : index
    %c0_70 = arith.constant 0 : index
    %199 = vector.load %arg2[%c6_69, %c0_70] : memref<9x512xf32, #tpu.memory_space<vmem>>, vector<1x512xf32>
    %200 = vector.broadcast %199 : vector<1x512xf32> to vector<16x512xf32>
    %201 = arith.mulf %198, %200 : vector<16x512xf32>
    %202 = vector.extract_strided_slice %154 {offsets = [0, 6], sizes = [16, 1], strides = [1, 1]} : vector<16x9xf32> to vector<16x1xf32>
    %203 = vector.broadcast %202 : vector<16x1xf32> to vector<16x512xf32>
    %204 = arith.mulf %201, %203 : vector<16x512xf32>
    %205 = arith.addf %197, %204 : vector<16x512xf32>
    %c496_i32_71 = arith.constant 496 : i32
    %206 = tpu.dynamic_rotate %81 by %c496_i32_71 dim 1 : vector<16x512xf32>, i32 -> vector<16x512xf32>
    %c7_72 = arith.constant 7 : index
    %c0_73 = arith.constant 0 : index
    %207 = vector.load %arg2[%c7_72, %c0_73] : memref<9x512xf32, #tpu.memory_space<vmem>>, vector<1x512xf32>
    %208 = vector.broadcast %207 : vector<1x512xf32> to vector<16x512xf32>
    %209 = arith.mulf %206, %208 : vector<16x512xf32>
    %210 = vector.extract_strided_slice %154 {offsets = [0, 7], sizes = [16, 1], strides = [1, 1]} : vector<16x9xf32> to vector<16x1xf32>
    %211 = vector.broadcast %210 : vector<16x1xf32> to vector<16x512xf32>
    %212 = arith.mulf %209, %211 : vector<16x512xf32>
    %213 = arith.addf %205, %212 : vector<16x512xf32>
    %c495_i32_74 = arith.constant 495 : i32
    %214 = tpu.dynamic_rotate %81 by %c495_i32_74 dim 1 : vector<16x512xf32>, i32 -> vector<16x512xf32>
    %c8_75 = arith.constant 8 : index
    %c0_76 = arith.constant 0 : index
    %215 = vector.load %arg2[%c8_75, %c0_76] : memref<9x512xf32, #tpu.memory_space<vmem>>, vector<1x512xf32>
    %216 = vector.broadcast %215 : vector<1x512xf32> to vector<16x512xf32>
    %217 = arith.mulf %214, %216 : vector<16x512xf32>
    %218 = vector.extract_strided_slice %154 {offsets = [0, 8], sizes = [16, 1], strides = [1, 1]} : vector<16x9xf32> to vector<16x1xf32>
    %219 = vector.broadcast %218 : vector<16x1xf32> to vector<16x512xf32>
    %220 = arith.mulf %217, %219 : vector<16x512xf32>
    %221 = arith.addf %213, %220 : vector<16x512xf32>
    %cst_77 = arith.constant dense<0.000000e+00> : vector<16x128xf32>
    %222 = tpu.matmul %221, %1, %cst_77 {dimension_numbers = #tpu.dot_dimension_numbers<[1], [0], [0], [1], [0, 0, 1, 1], [], []>} : vector<16x512xf32>, vector<512x128xf32>, vector<16x128xf32> -> vector<16x128xf32>
    %c0_78 = arith.constant 0 : index
    %c0_79 = arith.constant 0 : index
    %223 = vector.load %arg14[%c0_78, %c0_79] : memref<16x1xf32, #tpu.memory_space<vmem>>, vector<16x1xf32>
    %224 = vector.broadcast %223 : vector<16x1xf32> to vector<16x128xf32>
    %225 = arith.addf %222, %224 : vector<16x128xf32>
    %226 = tpu.concatenate %153, %225 in 0 : vector<16x128xf32>, vector<16x128xf32> -> vector<32x128xf32>
    %c0_80 = arith.constant 0 : index
    %c0_81 = arith.constant 0 : index
    %227 = vector.load %arg5[%c0_80, %c0_81] : memref<128x2xf32, #tpu.memory_space<vmem>>, vector<128x2xf32>
    %cst_82 = arith.constant dense<0.000000e+00> : vector<32x2xf32>
    %228 = tpu.matmul %226, %227, %cst_82 {dimension_numbers = #tpu.dot_dimension_numbers<[1], [0], [0], [1], [0, 0, 1, 1], [], []>} : vector<32x128xf32>, vector<128x2xf32>, vector<32x2xf32> -> vector<32x2xf32>
    %c0_83 = arith.constant 0 : index
    %c0_84 = arith.constant 0 : index
    %229 = vector.load %arg15[%c0_83, %c0_84] : memref<8x32xf32, #tpu.memory_space<vmem>>, vector<8x32xf32>
    %cst_85 = arith.constant dense<0.000000e+00> : vector<8x2xf32>
    %230 = tpu.matmul %229, %228, %cst_85 {dimension_numbers = #tpu.dot_dimension_numbers<[1], [0], [0], [1], [0, 0, 1, 1], [], []>} : vector<8x32xf32>, vector<32x2xf32>, vector<8x2xf32> -> vector<8x2xf32>
    %c0_86 = arith.constant 0 : index
    %c0_87 = arith.constant 0 : index
    %231 = vector.load %arg16[%c0_86, %c0_87] : memref<8x1xf32, #tpu.memory_space<vmem>>, vector<8x1xf32>
    %232 = vector.broadcast %231 : vector<8x1xf32> to vector<8x2xf32>
    %233 = arith.addf %230, %232 : vector<8x2xf32>
    %cst_88 = arith.constant 0.000000e+00 : f32
    %234 = vector.broadcast %cst_88 : f32 to vector<8x2xf32>
    %235 = arith.maximumf %233, %234 : vector<8x2xf32>
    %c0_89 = arith.constant 0 : index
    %c0_90 = arith.constant 0 : index
    %236 = vector.load %arg17[%c0_89, %c0_90] : memref<32x8xf32, #tpu.memory_space<vmem>>, vector<32x8xf32>
    %cst_91 = arith.constant dense<0.000000e+00> : vector<32x2xf32>
    %237 = tpu.matmul %236, %235, %cst_91 {dimension_numbers = #tpu.dot_dimension_numbers<[1], [0], [0], [1], [0, 0, 1, 1], [], []>} : vector<32x8xf32>, vector<8x2xf32>, vector<32x2xf32> -> vector<32x2xf32>
    %c0_92 = arith.constant 0 : index
    %c0_93 = arith.constant 0 : index
    %238 = vector.load %arg18[%c0_92, %c0_93] : memref<32x1xf32, #tpu.memory_space<vmem>>, vector<32x1xf32>
    %239 = vector.broadcast %238 : vector<32x1xf32> to vector<32x2xf32>
    %240 = arith.addf %237, %239 : vector<32x2xf32>
    %cst_94 = arith.constant 0.000000e+00 : f32
    %cst_95 = arith.constant 1.000000e+00 : f32
    %241 = vector.broadcast %cst_94 : f32 to vector<32x2xf32>
    %242 = arith.maximumf %241, %240 : vector<32x2xf32>
    %243 = vector.broadcast %cst_95 : f32 to vector<32x2xf32>
    %244 = arith.minimumf %243, %242 : vector<32x2xf32>
    %c0_96 = arith.constant 0 : index
    %c0_97 = arith.constant 0 : index
    %245 = vector.load %arg6[%c0_96, %c0_97] : memref<2x128xf32, #tpu.memory_space<vmem>>, vector<2x128xf32>
    %cst_98 = arith.constant dense<0.000000e+00> : vector<32x128xf32>
    %246 = tpu.matmul %244, %245, %cst_98 {dimension_numbers = #tpu.dot_dimension_numbers<[1], [0], [0], [1], [0, 0, 1, 1], [], []>} : vector<32x2xf32>, vector<2x128xf32>, vector<32x128xf32> -> vector<32x128xf32>
    %247 = arith.mulf %226, %246 : vector<32x128xf32>
    %c0_99 = arith.constant 0 : index
    %c0_100 = arith.constant 0 : index
    %248 = vector.load %arg19[%c0_99, %c0_100] : memref<8x32xf32, #tpu.memory_space<vmem>>, vector<8x32xf32>
    %cst_101 = arith.constant dense<0.000000e+00> : vector<8x128xf32>
    %249 = tpu.matmul %248, %247, %cst_101 {dimension_numbers = #tpu.dot_dimension_numbers<[1], [0], [0], [1], [0, 0, 1, 1], [], []>} : vector<8x32xf32>, vector<32x128xf32>, vector<8x128xf32> -> vector<8x128xf32>
    %c0_102 = arith.constant 0 : index
    %c0_103 = arith.constant 0 : index
    %250 = vector.load %arg20[%c0_102, %c0_103] : memref<8x1xf32, #tpu.memory_space<vmem>>, vector<8x1xf32>
    %251 = vector.broadcast %250 : vector<8x1xf32> to vector<8x128xf32>
    %252 = arith.addf %249, %251 : vector<8x128xf32>
    %c0_104 = arith.constant 0 : index
    %c0_105 = arith.constant 0 : index
    %253 = vector.load %arg21[%c0_104, %c0_105] : memref<8x9xf32, #tpu.memory_space<vmem>>, vector<8x9xf32>
    %254 = vector.extract_strided_slice %253 {offsets = [0, 4], sizes = [8, 1], strides = [1, 1]} : vector<8x9xf32> to vector<8x1xf32>
    %255 = vector.broadcast %254 : vector<8x1xf32> to vector<8x128xf32>
    %256 = arith.mulf %252, %255 : vector<8x128xf32>
    %c9_i32 = arith.constant 9 : i32
    %257 = tpu.dynamic_rotate %252 by %c9_i32 dim 1 : vector<8x128xf32>, i32 -> vector<8x128xf32>
    %c0_106 = arith.constant 0 : index
    %c0_107 = arith.constant 0 : index
    %258 = vector.load %arg3[%c0_106, %c0_107] : memref<9x128xf32, #tpu.memory_space<vmem>>, vector<1x128xf32>
    %259 = vector.broadcast %258 : vector<1x128xf32> to vector<8x128xf32>
    %260 = arith.mulf %257, %259 : vector<8x128xf32>
    %261 = vector.extract_strided_slice %253 {offsets = [0, 0], sizes = [8, 1], strides = [1, 1]} : vector<8x9xf32> to vector<8x1xf32>
    %262 = vector.broadcast %261 : vector<8x1xf32> to vector<8x128xf32>
    %263 = arith.mulf %260, %262 : vector<8x128xf32>
    %264 = arith.addf %256, %263 : vector<8x128xf32>
    %c8_i32 = arith.constant 8 : i32
    %265 = tpu.dynamic_rotate %252 by %c8_i32 dim 1 : vector<8x128xf32>, i32 -> vector<8x128xf32>
    %c1_108 = arith.constant 1 : index
    %c0_109 = arith.constant 0 : index
    %266 = vector.load %arg3[%c1_108, %c0_109] : memref<9x128xf32, #tpu.memory_space<vmem>>, vector<1x128xf32>
    %267 = vector.broadcast %266 : vector<1x128xf32> to vector<8x128xf32>
    %268 = arith.mulf %265, %267 : vector<8x128xf32>
    %269 = vector.extract_strided_slice %253 {offsets = [0, 1], sizes = [8, 1], strides = [1, 1]} : vector<8x9xf32> to vector<8x1xf32>
    %270 = vector.broadcast %269 : vector<8x1xf32> to vector<8x128xf32>
    %271 = arith.mulf %268, %270 : vector<8x128xf32>
    %272 = arith.addf %264, %271 : vector<8x128xf32>
    %c7_i32 = arith.constant 7 : i32
    %273 = tpu.dynamic_rotate %252 by %c7_i32 dim 1 : vector<8x128xf32>, i32 -> vector<8x128xf32>
    %c2_110 = arith.constant 2 : index
    %c0_111 = arith.constant 0 : index
    %274 = vector.load %arg3[%c2_110, %c0_111] : memref<9x128xf32, #tpu.memory_space<vmem>>, vector<1x128xf32>
    %275 = vector.broadcast %274 : vector<1x128xf32> to vector<8x128xf32>
    %276 = arith.mulf %273, %275 : vector<8x128xf32>
    %277 = vector.extract_strided_slice %253 {offsets = [0, 2], sizes = [8, 1], strides = [1, 1]} : vector<8x9xf32> to vector<8x1xf32>
    %278 = vector.broadcast %277 : vector<8x1xf32> to vector<8x128xf32>
    %279 = arith.mulf %276, %278 : vector<8x128xf32>
    %280 = arith.addf %272, %279 : vector<8x128xf32>
    %c1_i32_112 = arith.constant 1 : i32
    %281 = tpu.dynamic_rotate %252 by %c1_i32_112 dim 1 : vector<8x128xf32>, i32 -> vector<8x128xf32>
    %c3_113 = arith.constant 3 : index
    %c0_114 = arith.constant 0 : index
    %282 = vector.load %arg3[%c3_113, %c0_114] : memref<9x128xf32, #tpu.memory_space<vmem>>, vector<1x128xf32>
    %283 = vector.broadcast %282 : vector<1x128xf32> to vector<8x128xf32>
    %284 = arith.mulf %281, %283 : vector<8x128xf32>
    %285 = vector.extract_strided_slice %253 {offsets = [0, 3], sizes = [8, 1], strides = [1, 1]} : vector<8x9xf32> to vector<8x1xf32>
    %286 = vector.broadcast %285 : vector<8x1xf32> to vector<8x128xf32>
    %287 = arith.mulf %284, %286 : vector<8x128xf32>
    %288 = arith.addf %280, %287 : vector<8x128xf32>
    %c127_i32 = arith.constant 127 : i32
    %289 = tpu.dynamic_rotate %252 by %c127_i32 dim 1 : vector<8x128xf32>, i32 -> vector<8x128xf32>
    %c5_115 = arith.constant 5 : index
    %c0_116 = arith.constant 0 : index
    %290 = vector.load %arg3[%c5_115, %c0_116] : memref<9x128xf32, #tpu.memory_space<vmem>>, vector<1x128xf32>
    %291 = vector.broadcast %290 : vector<1x128xf32> to vector<8x128xf32>
    %292 = arith.mulf %289, %291 : vector<8x128xf32>
    %293 = vector.extract_strided_slice %253 {offsets = [0, 5], sizes = [8, 1], strides = [1, 1]} : vector<8x9xf32> to vector<8x1xf32>
    %294 = vector.broadcast %293 : vector<8x1xf32> to vector<8x128xf32>
    %295 = arith.mulf %292, %294 : vector<8x128xf32>
    %296 = arith.addf %288, %295 : vector<8x128xf32>
    %c121_i32 = arith.constant 121 : i32
    %297 = tpu.dynamic_rotate %252 by %c121_i32 dim 1 : vector<8x128xf32>, i32 -> vector<8x128xf32>
    %c6_117 = arith.constant 6 : index
    %c0_118 = arith.constant 0 : index
    %298 = vector.load %arg3[%c6_117, %c0_118] : memref<9x128xf32, #tpu.memory_space<vmem>>, vector<1x128xf32>
    %299 = vector.broadcast %298 : vector<1x128xf32> to vector<8x128xf32>
    %300 = arith.mulf %297, %299 : vector<8x128xf32>
    %301 = vector.extract_strided_slice %253 {offsets = [0, 6], sizes = [8, 1], strides = [1, 1]} : vector<8x9xf32> to vector<8x1xf32>
    %302 = vector.broadcast %301 : vector<8x1xf32> to vector<8x128xf32>
    %303 = arith.mulf %300, %302 : vector<8x128xf32>
    %304 = arith.addf %296, %303 : vector<8x128xf32>
    %c120_i32 = arith.constant 120 : i32
    %305 = tpu.dynamic_rotate %252 by %c120_i32 dim 1 : vector<8x128xf32>, i32 -> vector<8x128xf32>
    %c7_119 = arith.constant 7 : index
    %c0_120 = arith.constant 0 : index
    %306 = vector.load %arg3[%c7_119, %c0_120] : memref<9x128xf32, #tpu.memory_space<vmem>>, vector<1x128xf32>
    %307 = vector.broadcast %306 : vector<1x128xf32> to vector<8x128xf32>
    %308 = arith.mulf %305, %307 : vector<8x128xf32>
    %309 = vector.extract_strided_slice %253 {offsets = [0, 7], sizes = [8, 1], strides = [1, 1]} : vector<8x9xf32> to vector<8x1xf32>
    %310 = vector.broadcast %309 : vector<8x1xf32> to vector<8x128xf32>
    %311 = arith.mulf %308, %310 : vector<8x128xf32>
    %312 = arith.addf %304, %311 : vector<8x128xf32>
    %c119_i32 = arith.constant 119 : i32
    %313 = tpu.dynamic_rotate %252 by %c119_i32 dim 1 : vector<8x128xf32>, i32 -> vector<8x128xf32>
    %c8_121 = arith.constant 8 : index
    %c0_122 = arith.constant 0 : index
    %314 = vector.load %arg3[%c8_121, %c0_122] : memref<9x128xf32, #tpu.memory_space<vmem>>, vector<1x128xf32>
    %315 = vector.broadcast %314 : vector<1x128xf32> to vector<8x128xf32>
    %316 = arith.mulf %313, %315 : vector<8x128xf32>
    %317 = vector.extract_strided_slice %253 {offsets = [0, 8], sizes = [8, 1], strides = [1, 1]} : vector<8x9xf32> to vector<8x1xf32>
    %318 = vector.broadcast %317 : vector<8x1xf32> to vector<8x128xf32>
    %319 = arith.mulf %316, %318 : vector<8x128xf32>
    %320 = arith.addf %312, %319 : vector<8x128xf32>
    %c0_123 = arith.constant 0 : index
    %c0_124 = arith.constant 0 : index
    %321 = vector.load %arg22[%c0_123, %c0_124] : memref<8x1xf32, #tpu.memory_space<vmem>>, vector<8x1xf32>
    %322 = vector.broadcast %321 : vector<8x1xf32> to vector<8x128xf32>
    %323 = arith.addf %320, %322 : vector<8x128xf32>
    %c0_125 = arith.constant 0 : index
    %c0_126 = arith.constant 0 : index
    %324 = vector.load %arg23[%c0_125, %c0_126] : memref<16x9xf32, #tpu.memory_space<vmem>>, vector<16x9xf32>
    %325 = vector.extract_strided_slice %324 {offsets = [0, 4], sizes = [16, 1], strides = [1, 1]} : vector<16x9xf32> to vector<16x1xf32>
    %326 = vector.broadcast %325 : vector<16x1xf32> to vector<16x512xf32>
    %327 = arith.mulf %0, %326 : vector<16x512xf32>
    %c17_i32_127 = arith.constant 17 : i32
    %328 = tpu.dynamic_rotate %0 by %c17_i32_127 dim 1 : vector<16x512xf32>, i32 -> vector<16x512xf32>
    %c0_128 = arith.constant 0 : index
    %c0_129 = arith.constant 0 : index
    %329 = vector.load %arg2[%c0_128, %c0_129] : memref<9x512xf32, #tpu.memory_space<vmem>>, vector<1x512xf32>
    %330 = vector.broadcast %329 : vector<1x512xf32> to vector<16x512xf32>
    %331 = arith.mulf %328, %330 : vector<16x512xf32>
    %332 = vector.extract_strided_slice %324 {offsets = [0, 0], sizes = [16, 1], strides = [1, 1]} : vector<16x9xf32> to vector<16x1xf32>
    %333 = vector.broadcast %332 : vector<16x1xf32> to vector<16x512xf32>
    %334 = arith.mulf %331, %333 : vector<16x512xf32>
    %335 = arith.addf %327, %334 : vector<16x512xf32>
    %c16_i32_130 = arith.constant 16 : i32
    %336 = tpu.dynamic_rotate %0 by %c16_i32_130 dim 1 : vector<16x512xf32>, i32 -> vector<16x512xf32>
    %c1_131 = arith.constant 1 : index
    %c0_132 = arith.constant 0 : index
    %337 = vector.load %arg2[%c1_131, %c0_132] : memref<9x512xf32, #tpu.memory_space<vmem>>, vector<1x512xf32>
    %338 = vector.broadcast %337 : vector<1x512xf32> to vector<16x512xf32>
    %339 = arith.mulf %336, %338 : vector<16x512xf32>
    %340 = vector.extract_strided_slice %324 {offsets = [0, 1], sizes = [16, 1], strides = [1, 1]} : vector<16x9xf32> to vector<16x1xf32>
    %341 = vector.broadcast %340 : vector<16x1xf32> to vector<16x512xf32>
    %342 = arith.mulf %339, %341 : vector<16x512xf32>
    %343 = arith.addf %335, %342 : vector<16x512xf32>
    %c15_i32_133 = arith.constant 15 : i32
    %344 = tpu.dynamic_rotate %0 by %c15_i32_133 dim 1 : vector<16x512xf32>, i32 -> vector<16x512xf32>
    %c2_134 = arith.constant 2 : index
    %c0_135 = arith.constant 0 : index
    %345 = vector.load %arg2[%c2_134, %c0_135] : memref<9x512xf32, #tpu.memory_space<vmem>>, vector<1x512xf32>
    %346 = vector.broadcast %345 : vector<1x512xf32> to vector<16x512xf32>
    %347 = arith.mulf %344, %346 : vector<16x512xf32>
    %348 = vector.extract_strided_slice %324 {offsets = [0, 2], sizes = [16, 1], strides = [1, 1]} : vector<16x9xf32> to vector<16x1xf32>
    %349 = vector.broadcast %348 : vector<16x1xf32> to vector<16x512xf32>
    %350 = arith.mulf %347, %349 : vector<16x512xf32>
    %351 = arith.addf %343, %350 : vector<16x512xf32>
    %c1_i32_136 = arith.constant 1 : i32
    %352 = tpu.dynamic_rotate %0 by %c1_i32_136 dim 1 : vector<16x512xf32>, i32 -> vector<16x512xf32>
    %c3_137 = arith.constant 3 : index
    %c0_138 = arith.constant 0 : index
    %353 = vector.load %arg2[%c3_137, %c0_138] : memref<9x512xf32, #tpu.memory_space<vmem>>, vector<1x512xf32>
    %354 = vector.broadcast %353 : vector<1x512xf32> to vector<16x512xf32>
    %355 = arith.mulf %352, %354 : vector<16x512xf32>
    %356 = vector.extract_strided_slice %324 {offsets = [0, 3], sizes = [16, 1], strides = [1, 1]} : vector<16x9xf32> to vector<16x1xf32>
    %357 = vector.broadcast %356 : vector<16x1xf32> to vector<16x512xf32>
    %358 = arith.mulf %355, %357 : vector<16x512xf32>
    %359 = arith.addf %351, %358 : vector<16x512xf32>
    %c511_i32_139 = arith.constant 511 : i32
    %360 = tpu.dynamic_rotate %0 by %c511_i32_139 dim 1 : vector<16x512xf32>, i32 -> vector<16x512xf32>
    %c5_140 = arith.constant 5 : index
    %c0_141 = arith.constant 0 : index
    %361 = vector.load %arg2[%c5_140, %c0_141] : memref<9x512xf32, #tpu.memory_space<vmem>>, vector<1x512xf32>
    %362 = vector.broadcast %361 : vector<1x512xf32> to vector<16x512xf32>
    %363 = arith.mulf %360, %362 : vector<16x512xf32>
    %364 = vector.extract_strided_slice %324 {offsets = [0, 5], sizes = [16, 1], strides = [1, 1]} : vector<16x9xf32> to vector<16x1xf32>
    %365 = vector.broadcast %364 : vector<16x1xf32> to vector<16x512xf32>
    %366 = arith.mulf %363, %365 : vector<16x512xf32>
    %367 = arith.addf %359, %366 : vector<16x512xf32>
    %c497_i32_142 = arith.constant 497 : i32
    %368 = tpu.dynamic_rotate %0 by %c497_i32_142 dim 1 : vector<16x512xf32>, i32 -> vector<16x512xf32>
    %c6_143 = arith.constant 6 : index
    %c0_144 = arith.constant 0 : index
    %369 = vector.load %arg2[%c6_143, %c0_144] : memref<9x512xf32, #tpu.memory_space<vmem>>, vector<1x512xf32>
    %370 = vector.broadcast %369 : vector<1x512xf32> to vector<16x512xf32>
    %371 = arith.mulf %368, %370 : vector<16x512xf32>
    %372 = vector.extract_strided_slice %324 {offsets = [0, 6], sizes = [16, 1], strides = [1, 1]} : vector<16x9xf32> to vector<16x1xf32>
    %373 = vector.broadcast %372 : vector<16x1xf32> to vector<16x512xf32>
    %374 = arith.mulf %371, %373 : vector<16x512xf32>
    %375 = arith.addf %367, %374 : vector<16x512xf32>
    %c496_i32_145 = arith.constant 496 : i32
    %376 = tpu.dynamic_rotate %0 by %c496_i32_145 dim 1 : vector<16x512xf32>, i32 -> vector<16x512xf32>
    %c7_146 = arith.constant 7 : index
    %c0_147 = arith.constant 0 : index
    %377 = vector.load %arg2[%c7_146, %c0_147] : memref<9x512xf32, #tpu.memory_space<vmem>>, vector<1x512xf32>
    %378 = vector.broadcast %377 : vector<1x512xf32> to vector<16x512xf32>
    %379 = arith.mulf %376, %378 : vector<16x512xf32>
    %380 = vector.extract_strided_slice %324 {offsets = [0, 7], sizes = [16, 1], strides = [1, 1]} : vector<16x9xf32> to vector<16x1xf32>
    %381 = vector.broadcast %380 : vector<16x1xf32> to vector<16x512xf32>
    %382 = arith.mulf %379, %381 : vector<16x512xf32>
    %383 = arith.addf %375, %382 : vector<16x512xf32>
    %c495_i32_148 = arith.constant 495 : i32
    %384 = tpu.dynamic_rotate %0 by %c495_i32_148 dim 1 : vector<16x512xf32>, i32 -> vector<16x512xf32>
    %c8_149 = arith.constant 8 : index
    %c0_150 = arith.constant 0 : index
    %385 = vector.load %arg2[%c8_149, %c0_150] : memref<9x512xf32, #tpu.memory_space<vmem>>, vector<1x512xf32>
    %386 = vector.broadcast %385 : vector<1x512xf32> to vector<16x512xf32>
    %387 = arith.mulf %384, %386 : vector<16x512xf32>
    %388 = vector.extract_strided_slice %324 {offsets = [0, 8], sizes = [16, 1], strides = [1, 1]} : vector<16x9xf32> to vector<16x1xf32>
    %389 = vector.broadcast %388 : vector<16x1xf32> to vector<16x512xf32>
    %390 = arith.mulf %387, %389 : vector<16x512xf32>
    %391 = arith.addf %383, %390 : vector<16x512xf32>
    %cst_151 = arith.constant dense<0.000000e+00> : vector<16x128xf32>
    %392 = tpu.matmul %391, %1, %cst_151 {dimension_numbers = #tpu.dot_dimension_numbers<[1], [0], [0], [1], [0, 0, 1, 1], [], []>} : vector<16x512xf32>, vector<512x128xf32>, vector<16x128xf32> -> vector<16x128xf32>
    %c0_152 = arith.constant 0 : index
    %c0_153 = arith.constant 0 : index
    %393 = vector.load %arg24[%c0_152, %c0_153] : memref<16x1xf32, #tpu.memory_space<vmem>>, vector<16x1xf32>
    %394 = vector.broadcast %393 : vector<16x1xf32> to vector<16x128xf32>
    %395 = arith.addf %392, %394 : vector<16x128xf32>
    %cst_154 = arith.constant 0.000000e+00 : f32
    %396 = vector.broadcast %cst_154 : f32 to vector<16x128xf32>
    %397 = arith.maximumf %395, %396 : vector<16x128xf32>
    %c0_155 = arith.constant 0 : index
    %c0_156 = arith.constant 0 : index
    %398 = vector.load %arg25[%c0_155, %c0_156] : memref<16x16xf32, #tpu.memory_space<vmem>>, vector<16x16xf32>
    %cst_157 = arith.constant dense<0.000000e+00> : vector<16x128xf32>
    %399 = tpu.matmul %398, %397, %cst_157 {dimension_numbers = #tpu.dot_dimension_numbers<[1], [0], [0], [1], [0, 0, 1, 1], [], []>} : vector<16x16xf32>, vector<16x128xf32>, vector<16x128xf32> -> vector<16x128xf32>
    %c0_158 = arith.constant 0 : index
    %c0_159 = arith.constant 0 : index
    %400 = vector.load %arg26[%c0_158, %c0_159] : memref<16x1xf32, #tpu.memory_space<vmem>>, vector<16x1xf32>
    %401 = vector.broadcast %400 : vector<16x1xf32> to vector<16x128xf32>
    %402 = arith.addf %399, %401 : vector<16x128xf32>
    %403 = vector.extract_strided_slice %402 {offsets = [0, 0], sizes = [8, 128], strides = [1, 1]} : vector<16x128xf32> to vector<8x128xf32>
    %404 = arith.addf %252, %403 : vector<8x128xf32>
    %c0_160 = arith.constant 0 : index
    %c0_161 = arith.constant 0 : index
    %405 = vector.load %arg27[%c0_160, %c0_161] : memref<16x128xf32, #tpu.memory_space<vmem>>, vector<8x128xf32>
    tpu.vector_store %arg27[%c0_160, %c0_161], %404 {strides = array<i32>} : memref<16x128xf32, #tpu.memory_space<vmem>>, vector<8x128xf32>,
    %406 = vector.extract_strided_slice %402 {offsets = [8, 0], sizes = [8, 128], strides = [1, 1]} : vector<16x128xf32> to vector<8x128xf32>
    %407 = arith.addf %323, %406 : vector<8x128xf32>
    %c8_162 = arith.constant 8 : index
    %c0_163 = arith.constant 0 : index
    %408 = vector.load %arg27[%c8_162, %c0_163] : memref<16x128xf32, #tpu.memory_space<vmem>>, vector<8x128xf32>
    tpu.vector_store %arg27[%c8_162, %c0_163], %407 {strides = array<i32>} : memref<16x128xf32, #tpu.memory_space<vmem>>, vector<8x128xf32>,
    return
  }
  func.func @transform_0(%arg0: i32) -> (i32, i32) {
    %c0_i32 = arith.constant 0 : i32
    %c0_i32_0 = arith.constant 0 : i32
    return %c0_i32, %arg0 : i32, i32
  }
  func.func @transform_1(%arg0: i32) -> (i32, i32) {
    %c0_i32 = arith.constant 0 : i32
    %c0_i32_0 = arith.constant 0 : i32
    %c0_i32_1 = arith.constant 0 : i32
    return %c0_i32, %c0_i32_0 : i32, i32
  }
  func.func @transform_2(%arg0: i32) -> (i32, i32) {
    %c0_i32 = arith.constant 0 : i32
    %c0_i32_0 = arith.constant 0 : i32
    %c0_i32_1 = arith.constant 0 : i32
    return %c0_i32, %c0_i32_0 : i32, i32
  }
  func.func @transform_3(%arg0: i32) -> (i32, i32) {
    %c0_i32 = arith.constant 0 : i32
    %c0_i32_0 = arith.constant 0 : i32
    %c0_i32_1 = arith.constant 0 : i32
    return %c0_i32, %c0_i32_0 : i32, i32
  }
  func.func @transform_4(%arg0: i32) -> (i32, i32) {
    %c0_i32 = arith.constant 0 : i32
    %c0_i32_0 = arith.constant 0 : i32
    %c0_i32_1 = arith.constant 0 : i32
    return %c0_i32, %c0_i32_0 : i32, i32
  }
  func.func @transform_5(%arg0: i32) -> (i32, i32) {
    %c0_i32 = arith.constant 0 : i32
    %c0_i32_0 = arith.constant 0 : i32
    %c0_i32_1 = arith.constant 0 : i32
    return %c0_i32, %c0_i32_0 : i32, i32
  }
  func.func @transform_6(%arg0: i32) -> (i32, i32) {
    %c0_i32 = arith.constant 0 : i32
    %c0_i32_0 = arith.constant 0 : i32
    %c0_i32_1 = arith.constant 0 : i32
    return %c0_i32, %c0_i32_0 : i32, i32
  }
  func.func @transform_7(%arg0: i32) -> (i32, i32) {
    %c0_i32 = arith.constant 0 : i32
    %c0_i32_0 = arith.constant 0 : i32
    %c0_i32_1 = arith.constant 0 : i32
    return %c0_i32, %c0_i32_0 : i32, i32
  }
  func.func @transform_8(%arg0: i32) -> (i32, i32) {
    %c0_i32 = arith.constant 0 : i32
    %c0_i32_0 = arith.constant 0 : i32
    %c0_i32_1 = arith.constant 0 : i32
    return %c0_i32, %c0_i32_0 : i32, i32
  }
  func.func @transform_9(%arg0: i32) -> (i32, i32) {
    %c0_i32 = arith.constant 0 : i32
    %c0_i32_0 = arith.constant 0 : i32
    %c0_i32_1 = arith.constant 0 : i32
    return %c0_i32, %c0_i32_0 : i32, i32
  }
  func.func @transform_10(%arg0: i32) -> (i32, i32) {
    %c0_i32 = arith.constant 0 : i32
    %c0_i32_0 = arith.constant 0 : i32
    %c0_i32_1 = arith.constant 0 : i32
    return %c0_i32, %c0_i32_0 : i32, i32
  }
  func.func @transform_11(%arg0: i32) -> (i32, i32) {
    %c0_i32 = arith.constant 0 : i32
    %c0_i32_0 = arith.constant 0 : i32
    %c0_i32_1 = arith.constant 0 : i32
    return %c0_i32, %c0_i32_0 : i32, i32
  }
  func.func @transform_12(%arg0: i32) -> (i32, i32) {
    %c0_i32 = arith.constant 0 : i32
    %c0_i32_0 = arith.constant 0 : i32
    %c0_i32_1 = arith.constant 0 : i32
    return %c0_i32, %c0_i32_0 : i32, i32
  }
  func.func @transform_13(%arg0: i32) -> (i32, i32) {
    %c0_i32 = arith.constant 0 : i32
    %c0_i32_0 = arith.constant 0 : i32
    %c0_i32_1 = arith.constant 0 : i32
    return %c0_i32, %c0_i32_0 : i32, i32
  }
  func.func @transform_14(%arg0: i32) -> (i32, i32) {
    %c0_i32 = arith.constant 0 : i32
    %c0_i32_0 = arith.constant 0 : i32
    %c0_i32_1 = arith.constant 0 : i32
    return %c0_i32, %c0_i32_0 : i32, i32
  }
  func.func @transform_15(%arg0: i32) -> (i32, i32) {
    %c0_i32 = arith.constant 0 : i32
    %c0_i32_0 = arith.constant 0 : i32
    %c0_i32_1 = arith.constant 0 : i32
    return %c0_i32, %c0_i32_0 : i32, i32
  }
  func.func @transform_16(%arg0: i32) -> (i32, i32) {
    %c0_i32 = arith.constant 0 : i32
    %c0_i32_0 = arith.constant 0 : i32
    %c0_i32_1 = arith.constant 0 : i32
    return %c0_i32, %c0_i32_0 : i32, i32
  }
  func.func @transform_17(%arg0: i32) -> (i32, i32) {
    %c0_i32 = arith.constant 0 : i32
    %c0_i32_0 = arith.constant 0 : i32
    %c0_i32_1 = arith.constant 0 : i32
    return %c0_i32, %c0_i32_0 : i32, i32
  }
  func.func @transform_18(%arg0: i32) -> (i32, i32) {
    %c0_i32 = arith.constant 0 : i32
    %c0_i32_0 = arith.constant 0 : i32
    %c0_i32_1 = arith.constant 0 : i32
    return %c0_i32, %c0_i32_0 : i32, i32
  }
  func.func @transform_19(%arg0: i32) -> (i32, i32) {
    %c0_i32 = arith.constant 0 : i32
    %c0_i32_0 = arith.constant 0 : i32
    %c0_i32_1 = arith.constant 0 : i32
    return %c0_i32, %c0_i32_0 : i32, i32
  }
  func.func @transform_20(%arg0: i32) -> (i32, i32) {
    %c0_i32 = arith.constant 0 : i32
    %c0_i32_0 = arith.constant 0 : i32
    %c0_i32_1 = arith.constant 0 : i32
    return %c0_i32, %c0_i32_0 : i32, i32
  }
  func.func @transform_21(%arg0: i32) -> (i32, i32) {
    %c0_i32 = arith.constant 0 : i32
    %c0_i32_0 = arith.constant 0 : i32
    %c0_i32_1 = arith.constant 0 : i32
    return %c0_i32, %c0_i32_0 : i32, i32
  }
  func.func @transform_22(%arg0: i32) -> (i32, i32) {
    %c0_i32 = arith.constant 0 : i32
    %c0_i32_0 = arith.constant 0 : i32
    %c0_i32_1 = arith.constant 0 : i32
    return %c0_i32, %c0_i32_0 : i32, i32
  }
  func.func @transform_23(%arg0: i32) -> (i32, i32) {
    %c0_i32 = arith.constant 0 : i32
    %c0_i32_0 = arith.constant 0 : i32
    %c0_i32_1 = arith.constant 0 : i32
    return %c0_i32, %c0_i32_0 : i32, i32
  }
  func.func @transform_24(%arg0: i32) -> (i32, i32) {
    %c0_i32 = arith.constant 0 : i32
    %c0_i32_0 = arith.constant 0 : i32
    %c0_i32_1 = arith.constant 0 : i32
    return %c0_i32, %c0_i32_0 : i32, i32
  }
  func.func @transform_25(%arg0: i32) -> (i32, i32) {
    %c0_i32 = arith.constant 0 : i32
    %c0_i32_0 = arith.constant 0 : i32
    %c0_i32_1 = arith.constant 0 : i32
    return %c0_i32, %c0_i32_0 : i32, i32
  }
  func.func @transform_26(%arg0: i32) -> (i32, i32) {
    %c0_i32 = arith.constant 0 : i32
    %c0_i32_0 = arith.constant 0 : i32
    return %c0_i32, %arg0 : i32, i32
  }
}

</mosaic_0001>

<llo_original>
// kernel: ghost_bottleneck_forward.1
$region0: #{ghost_bottleneck_forward.1}
  #allocation0 [shape = 'u32[]', space=smem, size = 0x4, offset = 0x4, fixed_abs, tag = 'smem constant byte address 0x4 - core index']
  #allocation1 [shape = 'u32[144,128]{1,0:T(1,128)}', space=vmem, size = 0x12000, scoped, tag = 'internal scratch']
  %s0 = inlined_call_operand.vmem [shape: f32[16,512], index: 0, kind: input, shape index: {}]
  %s1 = inlined_call_operand.vmem [shape: f32[9,512], index: 1, kind: input, shape index: {}]
  %s2 = inlined_call_operand.vmem [shape: f32[9,128], index: 2, kind: input, shape index: {}]
  %s3 = inlined_call_operand.vmem [shape: f32[512,128], index: 3, kind: input, shape index: {}]
  %s4 = inlined_call_operand.vmem [shape: f32[128,2], index: 4, kind: input, shape index: {}]
  %s5 = inlined_call_operand.vmem [shape: f32[2,128], index: 5, kind: input, shape index: {}]
  %s6 = inlined_call_operand.vmem [shape: f32[16,16], index: 6, kind: input, shape index: {}]
  %s7 = inlined_call_operand.vmem [shape: f32[16,1], index: 7, kind: input, shape index: {}]
  %s8 = inlined_call_operand.vmem [shape: f32[16,9], index: 8, kind: input, shape index: {}]
  %s9 = inlined_call_operand.vmem [shape: f32[16,1], index: 9, kind: input, shape index: {}]
  %s10 = inlined_call_operand.vmem [shape: f32[16,9], index: 10, kind: input, shape index: {}]
  %s11 = inlined_call_operand.vmem [shape: f32[16,1], index: 11, kind: input, shape index: {}]
  %s12 = inlined_call_operand.vmem [shape: f32[16,9], index: 12, kind: input, shape index: {}]
  %s13 = inlined_call_operand.vmem [shape: f32[16,1], index: 13, kind: input, shape index: {}]
  %s14 = inlined_call_operand.vmem [shape: f32[8,32], index: 14, kind: input, shape index: {}]
  %s15 = inlined_call_operand.vmem [shape: f32[8,1], index: 15, kind: input, shape index: {}]
  %s16 = inlined_call_operand.vmem [shape: f32[32,8], index: 16, kind: input, shape index: {}]
  %s17 = inlined_call_operand.vmem [shape: f32[32,1], index: 17, kind: input, shape index: {}]
  %s18 = inlined_call_operand.vmem [shape: f32[8,32], index: 18, kind: input, shape index: {}]
  %s19 = inlined_call_operand.vmem [shape: f32[8,1], index: 19, kind: input, shape index: {}]
  %s20 = inlined_call_operand.vmem [shape: f32[8,9], index: 20, kind: input, shape index: {}]
  %s21 = inlined_call_operand.vmem [shape: f32[8,1], index: 21, kind: input, shape index: {}]
  %s22 = inlined_call_operand.vmem [shape: f32[16,9], index: 22, kind: input, shape index: {}]
  %s23 = inlined_call_operand.vmem [shape: f32[16,1], index: 23, kind: input, shape index: {}]
  %s24 = inlined_call_operand.vmem [shape: f32[16,16], index: 24, kind: input, shape index: {}]
  %s25 = inlined_call_operand.vmem [shape: f32[16,1], index: 25, kind: input, shape index: {}]
  %s26 = inlined_call_operand.vmem [shape: f32[16,128], index: 26, kind: output, shape index: {}]
  %s27 = sld [smem:[#allocation0]]
  $region114: #{ghost_bottleneck_forward.1} parent=0
    _
  %s29 = ssub.s32 1, %s27
  %s30 = scalar_select 0, %s29, %s27
  // Predicated region
  $region2: #{ghost_bottleneck_forward.1} parent=0 // pred_check
    _
  $region3: #{ghost_bottleneck_forward.1} parent=0 // pred_check_branch
    %32 = sbr.rel (0) target = $region5
  $region4: #{ghost_bottleneck_forward.1} parent=0 // pred_region
    _
  $region5: #{ghost_bottleneck_forward.1} parent=0 // pred_fallthru
    _
  // Predicated region
  $region6: #{ghost_bottleneck_forward.1} parent=0 // pred_check
    _
  $region7: #{ghost_bottleneck_forward.1} parent=0 // pred_check_branch
    %34 = sbr.rel (0) target = $region9
  $region8: #{ghost_bottleneck_forward.1} parent=0 // pred_region
    _
  $region9: #{ghost_bottleneck_forward.1} parent=0 // pred_fallthru
    _
  // Predicated region
  $region10: #{ghost_bottleneck_forward.1} parent=0 // pred_check
    _
  $region11: #{ghost_bottleneck_forward.1} parent=0 // pred_check_branch
    %36 = sbr.rel (0) target = $region13
  $region12: #{ghost_bottleneck_forward.1} parent=0 // pred_region
    _
  $region13: #{ghost_bottleneck_forward.1} parent=0 // pred_fallthru
    _
  // Predicated region
  $region14: #{ghost_bottleneck_forward.1} parent=0 // pred_check
    _
  $region15: #{ghost_bottleneck_forward.1} parent=0 // pred_check_branch
    %38 = sbr.rel (0) target = $region17
  $region16: #{ghost_bottleneck_forward.1} parent=0 // pred_region
    _
  $region17: #{ghost_bottleneck_forward.1} parent=0 // pred_fallthru
    _
  // Predicated region
  $region18: #{ghost_bottleneck_forward.1} parent=0 // pred_check
    _
  $region19: #{ghost_bottleneck_forward.1} parent=0 // pred_check_branch
    %40 = sbr.rel (0) target = $region21
  $region20: #{ghost_bottleneck_forward.1} parent=0 // pred_region
    _
  $region21: #{ghost_bottleneck_forward.1} parent=0 // pred_fallthru
    _
  // Predicated region
  $region22: #{ghost_bottleneck_forward.1} parent=0 // pred_check
    _
  $region23: #{ghost_bottleneck_forward.1} parent=0 // pred_check_branch
    %42 = sbr.rel (0) target = $region25
  $region24: #{ghost_bottleneck_forward.1} parent=0 // pred_region
    _
  $region25: #{ghost_bottleneck_forward.1} parent=0 // pred_fallthru
    _
  // Predicated region
  $region26: #{ghost_bottleneck_forward.1} parent=0 // pred_check
    _
  $region27: #{ghost_bottleneck_forward.1} parent=0 // pred_check_branch
    %44 = sbr.rel (0) target = $region29
  $region28: #{ghost_bottleneck_forward.1} parent=0 // pred_region
    _
  $region29: #{ghost_bottleneck_forward.1} parent=0 // pred_fallthru
    _
  // Predicated region
  $region30: #{ghost_bottleneck_forward.1} parent=0 // pred_check
    _
  $region31: #{ghost_bottleneck_forward.1} parent=0 // pred_check_branch
    %46 = sbr.rel (0) target = $region33
  $region32: #{ghost_bottleneck_forward.1} parent=0 // pred_region
    _
  $region33: #{ghost_bottleneck_forward.1} parent=0 // pred_fallthru
    _
  // Predicated region
  $region34: #{ghost_bottleneck_forward.1} parent=0 // pred_check
    _
  $region35: #{ghost_bottleneck_forward.1} parent=0 // pred_check_branch
    %48 = sbr.rel (0) target = $region37
  $region36: #{ghost_bottleneck_forward.1} parent=0 // pred_region
    _
  $region37: #{ghost_bottleneck_forward.1} parent=0 // pred_fallthru
    _
  // Predicated region
  $region38: #{ghost_bottleneck_forward.1} parent=0 // pred_check
    _
  $region39: #{ghost_bottleneck_forward.1} parent=0 // pred_check_branch
    %50 = sbr.rel (0) target = $region41
  $region40: #{ghost_bottleneck_forward.1} parent=0 // pred_region
    _
  $region41: #{ghost_bottleneck_forward.1} parent=0 // pred_fallthru
    _
  // Predicated region
  $region42: #{ghost_bottleneck_forward.1} parent=0 // pred_check
    _
  $region43: #{ghost_bottleneck_forward.1} parent=0 // pred_check_branch
    %52 = sbr.rel (0) target = $region45
  $region44: #{ghost_bottleneck_forward.1} parent=0 // pred_region
    _
  $region45: #{ghost_bottleneck_forward.1} parent=0 // pred_fallthru
    _
  // Predicated region
  $region46: #{ghost_bottleneck_forward.1} parent=0 // pred_check
    _
  $region47: #{ghost_bottleneck_forward.1} parent=0 // pred_check_branch
    %54 = sbr.rel (0) target = $region49
  $region48: #{ghost_bottleneck_forward.1} parent=0 // pred_region
    _
  $region49: #{ghost_bottleneck_forward.1} parent=0 // pred_fallthru
    _
  // Predicated region
  $region50: #{ghost_bottleneck_forward.1} parent=0 // pred_check
    _
  $region51: #{ghost_bottleneck_forward.1} parent=0 // pred_check_branch
    %56 = sbr.rel (0) target = $region53
  $region52: #{ghost_bottleneck_forward.1} parent=0 // pred_region
    _
  $region53: #{ghost_bottleneck_forward.1} parent=0 // pred_fallthru
    _
  // Predicated region
  $region54: #{ghost_bottleneck_forward.1} parent=0 // pred_check
    _
  $region55: #{ghost_bottleneck_forward.1} parent=0 // pred_check_branch
    %58 = sbr.rel (0) target = $region57
  $region56: #{ghost_bottleneck_forward.1} parent=0 // pred_region
    _
  $region57: #{ghost_bottleneck_forward.1} parent=0 // pred_fallthru
    _
  // Predicated region
  $region58: #{ghost_bottleneck_forward.1} parent=0 // pred_check
    _
  $region59: #{ghost_bottleneck_forward.1} parent=0 // pred_check_branch
    %60 = sbr.rel (0) target = $region61
  $region60: #{ghost_bottleneck_forward.1} parent=0 // pred_region
    _
  $region61: #{ghost_bottleneck_forward.1} parent=0 // pred_fallthru
    _
  // Predicated region
  $region62: #{ghost_bottleneck_forward.1} parent=0 // pred_check
    _
  $region63: #{ghost_bottleneck_forward.1} parent=0 // pred_check_branch
    %62 = sbr.rel (0) target = $region65
  $region64: #{ghost_bottleneck_forward.1} parent=0 // pred_region
    _
  $region65: #{ghost_bottleneck_forward.1} parent=0 // pred_fallthru
    _
  // Predicated region
  $region66: #{ghost_bottleneck_forward.1} parent=0 // pred_check
    _
  $region67: #{ghost_bottleneck_forward.1} parent=0 // pred_check_branch
    %64 = sbr.rel (0) target = $region69
  $region68: #{ghost_bottleneck_forward.1} parent=0 // pred_region
    _
  $region69: #{ghost_bottleneck_forward.1} parent=0 // pred_fallthru
    _
  // Predicated region
  $region70: #{ghost_bottleneck_forward.1} parent=0 // pred_check
    _
  $region71: #{ghost_bottleneck_forward.1} parent=0 // pred_check_branch
    %66 = sbr.rel (0) target = $region73
  $region72: #{ghost_bottleneck_forward.1} parent=0 // pred_region
    _
  $region73: #{ghost_bottleneck_forward.1} parent=0 // pred_fallthru
    _
  // Predicated region
  $region74: #{ghost_bottleneck_forward.1} parent=0 // pred_check
    _
  $region75: #{ghost_bottleneck_forward.1} parent=0 // pred_check_branch
    %68 = sbr.rel (0) target = $region77
  $region76: #{ghost_bottleneck_forward.1} parent=0 // pred_region
    _
  $region77: #{ghost_bottleneck_forward.1} parent=0 // pred_fallthru
    _
  // Predicated region
  $region78: #{ghost_bottleneck_forward.1} parent=0 // pred_check
    _
  $region79: #{ghost_bottleneck_forward.1} parent=0 // pred_check_branch
    %70 = sbr.rel (0) target = $region81
  $region80: #{ghost_bottleneck_forward.1} parent=0 // pred_region
    _
  $region81: #{ghost_bottleneck_forward.1} parent=0 // pred_fallthru
    _
  // Predicated region
  $region82: #{ghost_bottleneck_forward.1} parent=0 // pred_check
    _
  $region83: #{ghost_bottleneck_forward.1} parent=0 // pred_check_branch
    %72 = sbr.rel (0) target = $region85
  $region84: #{ghost_bottleneck_forward.1} parent=0 // pred_region
    _
  $region85: #{ghost_bottleneck_forward.1} parent=0 // pred_fallthru
    _
  // Predicated region
  $region86: #{ghost_bottleneck_forward.1} parent=0 // pred_check
    _
  $region87: #{ghost_bottleneck_forward.1} parent=0 // pred_check_branch
    %74 = sbr.rel (0) target = $region89
  $region88: #{ghost_bottleneck_forward.1} parent=0 // pred_region
    _
  $region89: #{ghost_bottleneck_forward.1} parent=0 // pred_fallthru
    _
  // Predicated region
  $region90: #{ghost_bottleneck_forward.1} parent=0 // pred_check
    _
  $region91: #{ghost_bottleneck_forward.1} parent=0 // pred_check_branch
    %76 = sbr.rel (0) target = $region93
  $region92: #{ghost_bottleneck_forward.1} parent=0 // pred_region
    _
  $region93: #{ghost_bottleneck_forward.1} parent=0 // pred_fallthru
    _
  // Predicated region
  $region94: #{ghost_bottleneck_forward.1} parent=0 // pred_check
    _
  $region95: #{ghost_bottleneck_forward.1} parent=0 // pred_check_branch
    %78 = sbr.rel (0) target = $region97
  $region96: #{ghost_bottleneck_forward.1} parent=0 // pred_region
    _
  $region97: #{ghost_bottleneck_forward.1} parent=0 // pred_fallthru
    _
  // Predicated region
  $region98: #{ghost_bottleneck_forward.1} parent=0 // pred_check
    _
  $region99: #{ghost_bottleneck_forward.1} parent=0 // pred_check_branch
    %80 = sbr.rel (0) target = $region101
  $region100: #{ghost_bottleneck_forward.1} parent=0 // pred_region
    _
  $region101: #{ghost_bottleneck_forward.1} parent=0 // pred_fallthru
    _
  // Predicated region
  $region102: #{ghost_bottleneck_forward.1} parent=0 // pred_check
    _
  $region103: #{ghost_bottleneck_forward.1} parent=0 // pred_check_branch
    %82 = sbr.rel (0) target = $region105
  $region104: #{ghost_bottleneck_forward.1} parent=0 // pred_region
    _
  $region105: #{ghost_bottleneck_forward.1} parent=0 // pred_fallthru
    _
  %v83 = vld [vmem:[%s0] sm:$0xff]
  %v84 = vld [vmem:[%s0 + $0x8] sm:$0xff]
  %v85 = vld [vmem:[%s0 + $0x10] sm:$0xff]
  %v86 = vld [vmem:[%s0 + $0x18] sm:$0xff]
  %v87 = vld [vmem:[%s0 + $0x20] sm:$0xff]
  %v88 = vld [vmem:[%s0 + $0x28] sm:$0xff]
  %v89 = vld [vmem:[%s0 + $0x30] sm:$0xff]
  %v90 = vld [vmem:[%s0 + $0x38] sm:$0xff]
  %v91 = vld [vmem:[%s3] sm:$0xff]
  %v92 = vld [vmem:[%s3 + $0x8] sm:$0xff]
  %v93 = vld [vmem:[%s3 + $0x10] sm:$0xff]
  %v94 = vld [vmem:[%s3 + $0x18] sm:$0xff]
  %v95 = vld [vmem:[%s3 + $0x20] sm:$0xff]
  %v96 = vld [vmem:[%s3 + $0x28] sm:$0xff]
  %v97 = vld [vmem:[%s3 + $0x30] sm:$0xff]
  %v98 = vld [vmem:[%s3 + $0x38] sm:$0xff]
  %v99 = vld [vmem:[%s3 + $0x40] sm:$0xff]
  %v100 = vld [vmem:[%s3 + $0x48] sm:$0xff]
  %v101 = vld [vmem:[%s3 + $0x50] sm:$0xff]
  %v102 = vld [vmem:[%s3 + $0x58] sm:$0xff]
  %v103 = vld [vmem:[%s3 + $0x60] sm:$0xff]
  %v104 = vld [vmem:[%s3 + $0x68] sm:$0xff]
  %v105 = vld [vmem:[%s3 + $0x70] sm:$0xff]
  %v106 = vld [vmem:[%s3 + $0x78] sm:$0xff]
  %v107 = vld [vmem:[%s3 + $0x80] sm:$0xff]
  %v108 = vld [vmem:[%s3 + $0x88] sm:$0xff]
  %v109 = vld [vmem:[%s3 + $0x90] sm:$0xff]
  %v110 = vld [vmem:[%s3 + $0x98] sm:$0xff]
  %v111 = vld [vmem:[%s3 + $0xa0] sm:$0xff]
  %v112 = vld [vmem:[%s3 + $0xa8] sm:$0xff]
  %v113 = vld [vmem:[%s3 + $0xb0] sm:$0xff]
  %v114 = vld [vmem:[%s3 + $0xb8] sm:$0xff]
  %v115 = vld [vmem:[%s3 + $0xc0] sm:$0xff]
  %v116 = vld [vmem:[%s3 + $0xc8] sm:$0xff]
  %v117 = vld [vmem:[%s3 + $0xd0] sm:$0xff]
  %v118 = vld [vmem:[%s3 + $0xd8] sm:$0xff]
  %v119 = vld [vmem:[%s3 + $0xe0] sm:$0xff]
  %v120 = vld [vmem:[%s3 + $0xe8] sm:$0xff]
  %v121 = vld [vmem:[%s3 + $0xf0] sm:$0xff]
  %v122 = vld [vmem:[%s3 + $0xf8] sm:$0xff]
  %v123 = vld [vmem:[%s3 + $0x100] sm:$0xff]
  %v124 = vld [vmem:[%s3 + $0x108] sm:$0xff]
  %v125 = vld [vmem:[%s3 + $0x110] sm:$0xff]
  %v126 = vld [vmem:[%s3 + $0x118] sm:$0xff]
  %v127 = vld [vmem:[%s3 + $0x120] sm:$0xff]
  %v128 = vld [vmem:[%s3 + $0x128] sm:$0xff]
  %v129 = vld [vmem:[%s3 + $0x130] sm:$0xff]
  %v130 = vld [vmem:[%s3 + $0x138] sm:$0xff]
  %v131 = vld [vmem:[%s3 + $0x140] sm:$0xff]
  %v132 = vld [vmem:[%s3 + $0x148] sm:$0xff]
  %v133 = vld [vmem:[%s3 + $0x150] sm:$0xff]
  %v134 = vld [vmem:[%s3 + $0x158] sm:$0xff]
  %v135 = vld [vmem:[%s3 + $0x160] sm:$0xff]
  %v136 = vld [vmem:[%s3 + $0x168] sm:$0xff]
  %v137 = vld [vmem:[%s3 + $0x170] sm:$0xff]
  %v138 = vld [vmem:[%s3 + $0x178] sm:$0xff]
  %v139 = vld [vmem:[%s3 + $0x180] sm:$0xff]
  %v140 = vld [vmem:[%s3 + $0x188] sm:$0xff]
  %v141 = vld [vmem:[%s3 + $0x190] sm:$0xff]
  %v142 = vld [vmem:[%s3 + $0x198] sm:$0xff]
  %v143 = vld [vmem:[%s3 + $0x1a0] sm:$0xff]
  %v144 = vld [vmem:[%s3 + $0x1a8] sm:$0xff]
  %v145 = vld [vmem:[%s3 + $0x1b0] sm:$0xff]
  %v146 = vld [vmem:[%s3 + $0x1b8] sm:$0xff]
  %v147 = vld [vmem:[%s3 + $0x1c0] sm:$0xff]
  %v148 = vld [vmem:[%s3 + $0x1c8] sm:$0xff]
  %v149 = vld [vmem:[%s3 + $0x1d0] sm:$0xff]
  %v150 = vld [vmem:[%s3 + $0x1d8] sm:$0xff]
  %v151 = vld [vmem:[%s3 + $0x1e0] sm:$0xff]
  %v152 = vld [vmem:[%s3 + $0x1e8] sm:$0xff]
  %v153 = vld [vmem:[%s3 + $0x1f0] sm:$0xff]
  %v154 = vld [vmem:[%s3 + $0x1f8] sm:$0xff]
  %v155 = vld [vmem:[%s6] sm:$0xff]
  %v156 = vld [vmem:[%s6 + $0x8] sm:$0xff]
  %v157 = vld [vmem:[%s7] sm:$0xff]
  %v158 = vld [vmem:[%s7 + $0x8] sm:$0xff]
  %160 = vset.pattern.permute.xlu0 0
  %161 = vperm.xlu0 %160, %v157
  %v162 = vpop.permute.xlu0 %161
  %165 = vset.pattern.permute.xlu0 0
  %166 = vperm.xlu0 %165, %v158
  %v167 = vpop.permute.xlu0 %166
  %vm169 = vcmask 130048
  %v171 = vsel %vm169, %v155, 0
  %v174 = vsel %vm169, %v156, 0
  %176 = vmatprep.subr.mxu0 0.0
  %177 = vmatpush1.msra.mxu0 0.0
  %178 = vmatprep.subr.mxu0 0.0
  %179 = vmatpush1.msra.mxu0 0.0
  %180 = vmatprep.subr.mxu0 0.0
  %181 = vmatpush1.msra.mxu0 0.0
  %182 = vmatprep.subr.mxu0 0.0
  %183 = vmatpush1.msra.mxu0 0.0
  %184 = vmatprep.subr.mxu0 0.0
  %185 = vmatpush1.msra.mxu0 0.0
  %186 = vmatprep.subr.mxu0 0.0
  %187 = vmatpush1.msra.mxu0 0.0
  %188 = vmatprep.subr.mxu0 0.0
  %189 = vmatpush1.msra.mxu0 0.0
  %190 = vmatprep.subr.mxu0 0.0
  %191 = vmatpush1.msra.mxu0 0.0
  %192 = vmatprep.subr.mxu0 0.0
  %193 = vmatpush1.msra.mxu0 0.0
  %194 = vmatprep.subr.mxu0 0.0
  %195 = vmatpush1.msra.mxu0 0.0
  %196 = vmatprep.subr.mxu0 0.0
  %197 = vmatpush1.msra.mxu0 0.0
  %198 = vmatprep.subr.mxu0 0.0
  %199 = vmatpush1.msra.mxu0 0.0
  %200 = vmatprep.subr.mxu0 0.0
  %201 = vmatpush1.msra.mxu0 0.0
  %202 = vmatprep.subr.mxu0 0.0
  %203 = vmatpush1.msra.mxu0 0.0
  %204 = vmatprep.subr.mxu0 %v88
  %205 = vmatpush1.msra.mxu0 %v87
  %206 = vmatprep.subr.mxu0 %v84
  %207 = vmatpush1.msra.mxu0 %v83
  %208 = vmatprep.subr.mxu0 0.0
  %209 = vmatpush2.msra.mxu0 0.0
  %210 = vmatprep.subr.mxu0 0.0
  %211 = vmatpush2.msra.mxu0 0.0
  %212 = vmatprep.subr.mxu0 0.0
  %213 = vmatpush2.msra.mxu0 0.0
  %214 = vmatprep.subr.mxu0 0.0
  %215 = vmatpush2.msra.mxu0 0.0
  %216 = vmatprep.subr.mxu0 0.0
  %217 = vmatpush2.msra.mxu0 0.0
  %218 = vmatprep.subr.mxu0 0.0
  %219 = vmatpush2.msra.mxu0 0.0
  %220 = vmatprep.subr.mxu0 0.0
  %221 = vmatpush2.msra.mxu0 0.0
  %222 = vmatprep.subr.mxu0 0.0
  %223 = vmatpush2.msra.mxu0 0.0
  %224 = vmatprep.subr.mxu0 0.0
  %225 = vmatpush2.msra.mxu0 0.0
  %226 = vmatprep.subr.mxu0 0.0
  %227 = vmatpush2.msra.mxu0 0.0
  %228 = vmatprep.subr.mxu0 0.0
  %229 = vmatpush2.msra.mxu0 0.0
  %230 = vmatprep.subr.mxu0 0.0
  %231 = vmatpush2.msra.mxu0 0.0
  %232 = vmatprep.subr.mxu0 0.0
  %233 = vmatpush2.msra.mxu0 0.0
  %234 = vmatprep.subr.mxu0 0.0
  %235 = vmatpush2.msra.mxu0 0.0
  %236 = vmatprep.subr.mxu0 0.0
  %237 = vmatpush2.msra.mxu0 0.0
  %238 = vmatprep.subr.mxu0 0.0
  %239 = vmatpush2.msra.mxu0 0.0
  %240 = vmatprep.mubr.f32.mxu0 0.0
  %241 = vmatmul.mubr.f32.gmra.mxu0 %v171
  %v242 = vpop.f32.mrf.mxu0
  %v243 = vadd.f32 %v162, %v242
  %v244 = vpop.f32.mrf.mxu0
  %v245 = vadd.f32 %v162, %v244
  %246 = vmatprep.mubr.f32.mxu0 0.0
  %247 = vmatmul.mubr.f32.gmra.mxu0 %v174
  %v248 = vpop.f32.mrf.mxu0
  %v249 = vadd.f32 %v167, %v248
  %v250 = vpop.f32.mrf.mxu0
  %v251 = vadd.f32 %v167, %v250
  %252 = vdwg.mxu0
  %253 = vmatprep.subr.mxu0 0.0
  %254 = vmatpush1.msra.mxu0 0.0
  %255 = vmatprep.subr.mxu0 0.0
  %256 = vmatpush1.msra.mxu0 0.0
  %257 = vmatprep.subr.mxu0 0.0
  %258 = vmatpush1.msra.mxu0 0.0
  %259 = vmatprep.subr.mxu0 0.0
  %260 = vmatpush1.msra.mxu0 0.0
  %261 = vmatprep.subr.mxu0 0.0
  %262 = vmatpush1.msra.mxu0 0.0
  %263 = vmatprep.subr.mxu0 0.0
  %264 = vmatpush1.msra.mxu0 0.0
  %265 = vmatprep.subr.mxu0 0.0
  %266 = vmatpush1.msra.mxu0 0.0
  %267 = vmatprep.subr.mxu0 0.0
  %268 = vmatpush1.msra.mxu0 0.0
  %269 = vmatprep.subr.mxu0 0.0
  %270 = vmatpush1.msra.mxu0 0.0
  %271 = vmatprep.subr.mxu0 0.0
  %272 = vmatpush1.msra.mxu0 0.0
  %273 = vmatprep.subr.mxu0 0.0
  %274 = vmatpush1.msra.mxu0 0.0
  %275 = vmatprep.subr.mxu0 0.0
  %276 = vmatpush1.msra.mxu0 0.0
  %277 = vmatprep.subr.mxu0 0.0
  %278 = vmatpush1.msra.mxu0 0.0
  %279 = vmatprep.subr.mxu0 0.0
  %280 = vmatpush1.msra.mxu0 0.0
  %281 = vmatprep.subr.mxu0 %v90
  %282 = vmatpush1.msra.mxu0 %v89
  %283 = vmatprep.subr.mxu0 %v86
  %284 = vmatpush1.msra.mxu0 %v85
  %285 = vmatprep.subr.mxu0 0.0
  %286 = vmatpush2.msra.mxu0 0.0
  %287 = vmatprep.subr.mxu0 0.0
  %288 = vmatpush2.msra.mxu0 0.0
  %289 = vmatprep.subr.mxu0 0.0
  %290 = vmatpush2.msra.mxu0 0.0
  %291 = vmatprep.subr.mxu0 0.0
  %292 = vmatpush2.msra.mxu0 0.0
  %293 = vmatprep.subr.mxu0 0.0
  %294 = vmatpush2.msra.mxu0 0.0
  %295 = vmatprep.subr.mxu0 0.0
  %296 = vmatpush2.msra.mxu0 0.0
  %297 = vmatprep.subr.mxu0 0.0
  %298 = vmatpush2.msra.mxu0 0.0
  %299 = vmatprep.subr.mxu0 0.0
  %300 = vmatpush2.msra.mxu0 0.0
  %301 = vmatprep.subr.mxu0 0.0
  %302 = vmatpush2.msra.mxu0 0.0
  %303 = vmatprep.subr.mxu0 0.0
  %304 = vmatpush2.msra.mxu0 0.0
  %305 = vmatprep.subr.mxu0 0.0
  %306 = vmatpush2.msra.mxu0 0.0
  %307 = vmatprep.subr.mxu0 0.0
  %308 = vmatpush2.msra.mxu0 0.0
  %309 = vmatprep.subr.mxu0 0.0
  %310 = vmatpush2.msra.mxu0 0.0
  %311 = vmatprep.subr.mxu0 0.0
  %312 = vmatpush2.msra.mxu0 0.0
  %313 = vmatprep.subr.mxu0 0.0
  %314 = vmatpush2.msra.mxu0 0.0
  %315 = vmatprep.subr.mxu0 0.0
  %316 = vmatpush2.msra.mxu0 0.0
  %317 = vmatprep.mubr.f32.mxu0 0.0
  %318 = vmatmul.mubr.f32.gmra.mxu0 %v171
  %v319 = vpop.f32.mrf.mxu0
  %v320 = vadd.f32 %v162, %v319
  %v321 = vpop.f32.mrf.mxu0
  %v322 = vadd.f32 %v162, %v321
  %323 = vmatprep.mubr.f32.mxu0 0.0
  %324 = vmatmul.mubr.f32.gmra.mxu0 %v174
  %v325 = vpop.f32.mrf.mxu0
  %v326 = vadd.f32 %v167, %v325
  %v327 = vpop.f32.mrf.mxu0
  %v328 = vadd.f32 %v167, %v327
  %329 = vdwg.mxu0
  %v330 = vmax.f32 %v243, 0.0
  %v331 = vmax.f32 %v245, 0.0
  %v332 = vmax.f32 %v320, 0.0
  %v333 = vmax.f32 %v322, 0.0
  %v334 = vmax.f32 %v249, 0.0
  %v335 = vmax.f32 %v251, 0.0
  %v336 = vmax.f32 %v326, 0.0
  %v337 = vmax.f32 %v328, 0.0
  %v338 = vld [vmem:[%s8] sm:$0xff]
  %v339 = vld [vmem:[%s8 + $0x8] sm:$0xff]
  %341 = vset.pattern.permute.xlu0 4
  %342 = vperm.xlu0 %341, %v338
  %v343 = vpop.permute.xlu0 %342
  %346 = vset.pattern.permute.xlu0 4
  %347 = vperm.xlu0 %346, %v339
  %v348 = vpop.permute.xlu0 %347
  %v350 = vmul.f32 %v330, %v343
  %v351 = vmul.f32 %v331, %v343
  %v352 = vmul.f32 %v332, %v343
  %v353 = vmul.f32 %v333, %v343
  %v354 = vmul.f32 %v334, %v348
  %v355 = vmul.f32 %v335, %v348
  %v356 = vmul.f32 %v336, %v348
  %v357 = vmul.f32 %v337, %v348
  %358 = vrot.lane.b32.xlu0 %v330, 17
  %v359 = vpop.permute.xlu0 %358
  %360 = vrot.lane.b32.xlu0 %v334, 17
  %v361 = vpop.permute.xlu0 %360
  %362 = vrot.lane.b32.xlu0 %v331, 17
  %v363 = vpop.permute.xlu0 %362
  %364 = vrot.lane.b32.xlu0 %v335, 17
  %v365 = vpop.permute.xlu0 %364
  %366 = vrot.lane.b32.xlu0 %v332, 17
  %v367 = vpop.permute.xlu0 %366
  %368 = vrot.lane.b32.xlu0 %v336, 17
  %v369 = vpop.permute.xlu0 %368
  %370 = vrot.lane.b32.xlu0 %v333, 17
  %v371 = vpop.permute.xlu0 %370
  %372 = vrot.lane.b32.xlu0 %v337, 17
  %v373 = vpop.permute.xlu0 %372
  %v374 = vlaneseq
  %v375 = vand.u32 %v374, 127
  %vm376 = vcmp.lt.s32.totalorder %v375, 17
  %v377 = vsel %vm376, %v367, %v371
  %v378 = vsel %vm376, %v369, %v373
  %v379 = vsel %vm376, %v363, %v367
  %v380 = vsel %vm376, %v365, %v369
  %v381 = vsel %vm376, %v359, %v363
  %v382 = vsel %vm376, %v361, %v365
  %v383 = vsel %vm376, %v371, %v359
  %v384 = vsel %vm376, %v373, %v361
  %v385 = vld [vmem:[%s1] ss:$8 sm:$0xf]
  %v387 = vlaneseq
  %v388 = vshrl.u32 %v387, 7
  %v389 = vsub.s32 0, %v388
  %v390 = vrot.slane %v385, %v389
  %v391 = vlaneseq
  %v392 = vshrl.u32 %v391, 7
  %v393 = vsub.s32 1, %v392
  %v394 = vrot.slane %v385, %v393
  %v395 = vlaneseq
  %v396 = vshrl.u32 %v395, 7
  %v397 = vsub.s32 2, %v396
  %v398 = vrot.slane %v385, %v397
  %v399 = vlaneseq
  %v400 = vshrl.u32 %v399, 7
  %v401 = vsub.s32 3, %v400
  %v402 = vrot.slane %v385, %v401
  %v407 = vmul.f32 %v383, %v390
  %v408 = vmul.f32 %v381, %v394
  %v409 = vmul.f32 %v379, %v398
  %v410 = vmul.f32 %v377, %v402
  %v411 = vmul.f32 %v384, %v390
  %v412 = vmul.f32 %v382, %v394
  %v413 = vmul.f32 %v380, %v398
  %v414 = vmul.f32 %v378, %v402
  %415 = vset.pattern.permute.xlu0 0
  %416 = vperm.xlu0 %415, %v338
  %v417 = vpop.permute.xlu0 %416
  %419 = vset.pattern.permute.xlu0 0
  %420 = vperm.xlu0 %419, %v339
  %v421 = vpop.permute.xlu0 %420
  %v423 = vmul.f32 %v407, %v417
  %v424 = vmul.f32 %v408, %v417
  %v425 = vmul.f32 %v409, %v417
  %v426 = vmul.f32 %v410, %v417
  %v427 = vmul.f32 %v411, %v421
  %v428 = vmul.f32 %v412, %v421
  %v429 = vmul.f32 %v413, %v421
  %v430 = vmul.f32 %v414, %v421
  %v431 = vadd.f32 %v350, %v423
  %v432 = vadd.f32 %v351, %v424
  %v433 = vadd.f32 %v352, %v425
  %v434 = vadd.f32 %v353, %v426
  %v435 = vadd.f32 %v354, %v427
  %v436 = vadd.f32 %v355, %v428
  %v437 = vadd.f32 %v356, %v429
  %v438 = vadd.f32 %v357, %v430
  %439 = vrot.lane.b32.xlu0 %v330, 16
  %v440 = vpop.permute.xlu0 %439
  %441 = vrot.lane.b32.xlu0 %v334, 16
  %v442 = vpop.permute.xlu0 %441
  %443 = vrot.lane.b32.xlu0 %v331, 16
  %v444 = vpop.permute.xlu0 %443
  %445 = vrot.lane.b32.xlu0 %v335, 16
  %v446 = vpop.permute.xlu0 %445
  %447 = vrot.lane.b32.xlu0 %v332, 16
  %v448 = vpop.permute.xlu0 %447
  %449 = vrot.lane.b32.xlu0 %v336, 16
  %v450 = vpop.permute.xlu0 %449
  %451 = vrot.lane.b32.xlu0 %v333, 16
  %v452 = vpop.permute.xlu0 %451
  %453 = vrot.lane.b32.xlu0 %v337, 16
  %v454 = vpop.permute.xlu0 %453
  %vm455 = vcmp.lt.s32.totalorder %v375, 16
  %v456 = vsel %vm455, %v448, %v452
  %v457 = vsel %vm455, %v450, %v454
  %v458 = vsel %vm455, %v444, %v448
  %v459 = vsel %vm455, %v446, %v450
  %v460 = vsel %vm455, %v440, %v444
  %v461 = vsel %vm455, %v442, %v446
  %v462 = vsel %vm455, %v452, %v440
  %v463 = vsel %vm455, %v454, %v442
  %s464 = scalar_lea.vmem %s1, 1
  %v465 = vld [vmem:[%s464] ss:$8 sm:$0xf]
  %v467 = vlaneseq
  %v468 = vshrl.u32 %v467, 7
  %v469 = vsub.s32 0, %v468
  %v470 = vrot.slane %v465, %v469
  %v471 = vlaneseq
  %v472 = vshrl.u32 %v471, 7
  %v473 = vsub.s32 1, %v472
  %v474 = vrot.slane %v465, %v473
  %v475 = vlaneseq
  %v476 = vshrl.u32 %v475, 7
  %v477 = vsub.s32 2, %v476
  %v478 = vrot.slane %v465, %v477
  %v479 = vlaneseq
  %v480 = vshrl.u32 %v479, 7
  %v481 = vsub.s32 3, %v480
  %v482 = vrot.slane %v465, %v481
  %v487 = vmul.f32 %v462, %v470
  %v488 = vmul.f32 %v460, %v474
  %v489 = vmul.f32 %v458, %v478
  %v490 = vmul.f32 %v456, %v482
  %v491 = vmul.f32 %v463, %v470
  %v492 = vmul.f32 %v461, %v474
  %v493 = vmul.f32 %v459, %v478
  %v494 = vmul.f32 %v457, %v482
  %495 = vset.pattern.permute.xlu0 1
  %496 = vperm.xlu0 %495, %v338
  %v497 = vpop.permute.xlu0 %496
  %499 = vset.pattern.permute.xlu0 1
  %500 = vperm.xlu0 %499, %v339
  %v501 = vpop.permute.xlu0 %500
  %v503 = vmul.f32 %v487, %v497
  %v504 = vmul.f32 %v488, %v497
  %v505 = vmul.f32 %v489, %v497
  %v506 = vmul.f32 %v490, %v497
  %v507 = vmul.f32 %v491, %v501
  %v508 = vmul.f32 %v492, %v501
  %v509 = vmul.f32 %v493, %v501
  %v510 = vmul.f32 %v494, %v501
  %v511 = vadd.f32 %v431, %v503
  %v512 = vadd.f32 %v432, %v504
  %v513 = vadd.f32 %v433, %v505
  %v514 = vadd.f32 %v434, %v506
  %v515 = vadd.f32 %v435, %v507
  %v516 = vadd.f32 %v436, %v508
  %v517 = vadd.f32 %v437, %v509
  %v518 = vadd.f32 %v438, %v510
  %519 = vrot.lane.b32.xlu0 %v330, 15
  %v520 = vpop.permute.xlu0 %519
  %521 = vrot.lane.b32.xlu0 %v334, 15
  %v522 = vpop.permute.xlu0 %521
  %523 = vrot.lane.b32.xlu0 %v331, 15
  %v524 = vpop.permute.xlu0 %523
  %525 = vrot.lane.b32.xlu0 %v335, 15
  %v526 = vpop.permute.xlu0 %525
  %527 = vrot.lane.b32.xlu0 %v332, 15
  %v528 = vpop.permute.xlu0 %527
  %529 = vrot.lane.b32.xlu0 %v336, 15
  %v530 = vpop.permute.xlu0 %529
  %531 = vrot.lane.b32.xlu0 %v333, 15
  %v532 = vpop.permute.xlu0 %531
  %533 = vrot.lane.b32.xlu0 %v337, 15
  %v534 = vpop.permute.xlu0 %533
  %vm535 = vcmp.lt.s32.totalorder %v375, 15
  %v536 = vsel %vm535, %v528, %v532
  %v537 = vsel %vm535, %v530, %v534
  %v538 = vsel %vm535, %v524, %v528
  %v539 = vsel %vm535, %v526, %v530
  %v540 = vsel %vm535, %v520, %v524
  %v541 = vsel %vm535, %v522, %v526
  %v542 = vsel %vm535, %v532, %v520
  %v543 = vsel %vm535, %v534, %v522
  %s544 = scalar_lea.vmem %s1, 2
  %v545 = vld [vmem:[%s544] ss:$8 sm:$0xf]
  %v547 = vlaneseq
  %v548 = vshrl.u32 %v547, 7
  %v549 = vsub.s32 0, %v548
  %v550 = vrot.slane %v545, %v549
  %v551 = vlaneseq
  %v552 = vshrl.u32 %v551, 7
  %v553 = vsub.s32 1, %v552
  %v554 = vrot.slane %v545, %v553
  %v555 = vlaneseq
  %v556 = vshrl.u32 %v555, 7
  %v557 = vsub.s32 2, %v556
  %v558 = vrot.slane %v545, %v557
  %v559 = vlaneseq
  %v560 = vshrl.u32 %v559, 7
  %v561 = vsub.s32 3, %v560
  %v562 = vrot.slane %v545, %v561
  %v567 = vmul.f32 %v542, %v550
  %v568 = vmul.f32 %v540, %v554
  %v569 = vmul.f32 %v538, %v558
  %v570 = vmul.f32 %v536, %v562
  %v571 = vmul.f32 %v543, %v550
  %v572 = vmul.f32 %v541, %v554
  %v573 = vmul.f32 %v539, %v558
  %v574 = vmul.f32 %v537, %v562
  %575 = vset.pattern.permute.xlu0 2
  %576 = vperm.xlu0 %575, %v338
  %v577 = vpop.permute.xlu0 %576
  %579 = vset.pattern.permute.xlu0 2
  %580 = vperm.xlu0 %579, %v339
  %v581 = vpop.permute.xlu0 %580
  %v583 = vmul.f32 %v567, %v577
  %v584 = vmul.f32 %v568, %v577
  %v585 = vmul.f32 %v569, %v577
  %v586 = vmul.f32 %v570, %v577
  %v587 = vmul.f32 %v571, %v581
  %v588 = vmul.f32 %v572, %v581
  %v589 = vmul.f32 %v573, %v581
  %v590 = vmul.f32 %v574, %v581
  %v591 = vadd.f32 %v511, %v583
  %v592 = vadd.f32 %v512, %v584
  %v593 = vadd.f32 %v513, %v585
  %v594 = vadd.f32 %v514, %v586
  %v595 = vadd.f32 %v515, %v587
  %v596 = vadd.f32 %v516, %v588
  %v597 = vadd.f32 %v517, %v589
  %v598 = vadd.f32 %v518, %v590
  %599 = vrot.lane.b32.xlu0 %v330, 1
  %v600 = vpop.permute.xlu0 %599
  %601 = vrot.lane.b32.xlu0 %v334, 1
  %v602 = vpop.permute.xlu0 %601
  %603 = vrot.lane.b32.xlu0 %v331, 1
  %v604 = vpop.permute.xlu0 %603
  %605 = vrot.lane.b32.xlu0 %v335, 1
  %v606 = vpop.permute.xlu0 %605
  %607 = vrot.lane.b32.xlu0 %v332, 1
  %v608 = vpop.permute.xlu0 %607
  %609 = vrot.lane.b32.xlu0 %v336, 1
  %v610 = vpop.permute.xlu0 %609
  %611 = vrot.lane.b32.xlu0 %v333, 1
  %v612 = vpop.permute.xlu0 %611
  %613 = vrot.lane.b32.xlu0 %v337, 1
  %v614 = vpop.permute.xlu0 %613
  %vm615 = vcmp.lt.s32.totalorder %v375, 1
  %v616 = vsel %vm615, %v608, %v612
  %v617 = vsel %vm615, %v610, %v614
  %v618 = vsel %vm615, %v604, %v608
  %v619 = vsel %vm615, %v606, %v610
  %v620 = vsel %vm615, %v600, %v604
  %v621 = vsel %vm615, %v602, %v606
  %v622 = vsel %vm615, %v612, %v600
  %v623 = vsel %vm615, %v614, %v602
  %s624 = scalar_lea.vmem %s1, 3
  %v625 = vld [vmem:[%s624] ss:$8 sm:$0xf]
  %v627 = vlaneseq
  %v628 = vshrl.u32 %v627, 7
  %v629 = vsub.s32 0, %v628
  %v630 = vrot.slane %v625, %v629
  %v631 = vlaneseq
  %v632 = vshrl.u32 %v631, 7
  %v633 = vsub.s32 1, %v632
  %v634 = vrot.slane %v625, %v633
  %v635 = vlaneseq
  %v636 = vshrl.u32 %v635, 7
  %v637 = vsub.s32 2, %v636
  %v638 = vrot.slane %v625, %v637
  %v639 = vlaneseq
  %v640 = vshrl.u32 %v639, 7
  %v641 = vsub.s32 3, %v640
  %v642 = vrot.slane %v625, %v641
  %v647 = vmul.f32 %v622, %v630
  %v648 = vmul.f32 %v620, %v634
  %v649 = vmul.f32 %v618, %v638
  %v650 = vmul.f32 %v616, %v642
  %v651 = vmul.f32 %v623, %v630
  %v652 = vmul.f32 %v621, %v634
  %v653 = vmul.f32 %v619, %v638
  %v654 = vmul.f32 %v617, %v642
  %655 = vset.pattern.permute.xlu0 3
  %656 = vperm.xlu0 %655, %v338
  %v657 = vpop.permute.xlu0 %656
  %659 = vset.pattern.permute.xlu0 3
  %660 = vperm.xlu0 %659, %v339
  %v661 = vpop.permute.xlu0 %660
  %v663 = vmul.f32 %v647, %v657
  %v664 = vmul.f32 %v648, %v657
  %v665 = vmul.f32 %v649, %v657
  %v666 = vmul.f32 %v650, %v657
  %v667 = vmul.f32 %v651, %v661
  %v668 = vmul.f32 %v652, %v661
  %v669 = vmul.f32 %v653, %v661
  %v670 = vmul.f32 %v654, %v661
  %v671 = vadd.f32 %v591, %v663
  %v672 = vadd.f32 %v592, %v664
  %v673 = vadd.f32 %v593, %v665
  %v674 = vadd.f32 %v594, %v666
  %v675 = vadd.f32 %v595, %v667
  %v676 = vadd.f32 %v596, %v668
  %v677 = vadd.f32 %v597, %v669
  %v678 = vadd.f32 %v598, %v670
  %679 = vrot.lane.b32.xlu0 %v330, 127
  %v680 = vpop.permute.xlu0 %679
  %681 = vrot.lane.b32.xlu0 %v334, 127
  %v682 = vpop.permute.xlu0 %681
  %683 = vrot.lane.b32.xlu0 %v331, 127
  %v684 = vpop.permute.xlu0 %683
  %685 = vrot.lane.b32.xlu0 %v335, 127
  %v686 = vpop.permute.xlu0 %685
  %687 = vrot.lane.b32.xlu0 %v332, 127
  %v688 = vpop.permute.xlu0 %687
  %689 = vrot.lane.b32.xlu0 %v336, 127
  %v690 = vpop.permute.xlu0 %689
  %691 = vrot.lane.b32.xlu0 %v333, 127
  %v692 = vpop.permute.xlu0 %691
  %693 = vrot.lane.b32.xlu0 %v337, 127
  %v694 = vpop.permute.xlu0 %693
  %vm695 = vcmp.lt.s32.totalorder %v375, 127
  %v696 = vsel %vm695, %v688, %v692
  %v697 = vsel %vm695, %v690, %v694
  %v698 = vsel %vm695, %v684, %v688
  %v699 = vsel %vm695, %v686, %v690
  %v700 = vsel %vm695, %v680, %v684
  %v701 = vsel %vm695, %v682, %v686
  %v702 = vsel %vm695, %v692, %v680
  %v703 = vsel %vm695, %v694, %v682
  %s704 = scalar_lea.vmem %s1, 5
  %v705 = vld [vmem:[%s704] ss:$8 sm:$0xf]
  %v707 = vlaneseq
  %v708 = vshrl.u32 %v707, 7
  %v709 = vsub.s32 0, %v708
  %v710 = vrot.slane %v705, %v709
  %v711 = vlaneseq
  %v712 = vshrl.u32 %v711, 7
  %v713 = vsub.s32 1, %v712
  %v714 = vrot.slane %v705, %v713
  %v715 = vlaneseq
  %v716 = vshrl.u32 %v715, 7
  %v717 = vsub.s32 2, %v716
  %v718 = vrot.slane %v705, %v717
  %v719 = vlaneseq
  %v720 = vshrl.u32 %v719, 7
  %v721 = vsub.s32 3, %v720
  %v722 = vrot.slane %v705, %v721
  %v727 = vmul.f32 %v700, %v710
  %v728 = vmul.f32 %v698, %v714
  %v729 = vmul.f32 %v696, %v718
  %v730 = vmul.f32 %v702, %v722
  %v731 = vmul.f32 %v701, %v710
  %v732 = vmul.f32 %v699, %v714
  %v733 = vmul.f32 %v697, %v718
  %v734 = vmul.f32 %v703, %v722
  %735 = vset.pattern.permute.xlu0 5
  %736 = vperm.xlu0 %735, %v338
  %v737 = vpop.permute.xlu0 %736
  %739 = vset.pattern.permute.xlu0 5
  %740 = vperm.xlu0 %739, %v339
  %v741 = vpop.permute.xlu0 %740
  %v743 = vmul.f32 %v727, %v737
  %v744 = vmul.f32 %v728, %v737
  %v745 = vmul.f32 %v729, %v737
  %v746 = vmul.f32 %v730, %v737
  %v747 = vmul.f32 %v731, %v741
  %v748 = vmul.f32 %v732, %v741
  %v749 = vmul.f32 %v733, %v741
  %v750 = vmul.f32 %v734, %v741
  %v751 = vadd.f32 %v671, %v743
  %v752 = vadd.f32 %v672, %v744
  %v753 = vadd.f32 %v673, %v745
  %v754 = vadd.f32 %v674, %v746
  %v755 = vadd.f32 %v675, %v747
  %v756 = vadd.f32 %v676, %v748
  %v757 = vadd.f32 %v677, %v749
  %v758 = vadd.f32 %v678, %v750
  %759 = vrot.lane.b32.xlu0 %v330, 113
  %v760 = vpop.permute.xlu0 %759
  %761 = vrot.lane.b32.xlu0 %v334, 113
  %v762 = vpop.permute.xlu0 %761
  %763 = vrot.lane.b32.xlu0 %v331, 113
  %v764 = vpop.permute.xlu0 %763
  %765 = vrot.lane.b32.xlu0 %v335, 113
  %v766 = vpop.permute.xlu0 %765
  %767 = vrot.lane.b32.xlu0 %v332, 113
  %v768 = vpop.permute.xlu0 %767
  %769 = vrot.lane.b32.xlu0 %v336, 113
  %v770 = vpop.permute.xlu0 %769
  %771 = vrot.lane.b32.xlu0 %v333, 113
  %v772 = vpop.permute.xlu0 %771
  %773 = vrot.lane.b32.xlu0 %v337, 113
  %v774 = vpop.permute.xlu0 %773
  %vm775 = vcmp.lt.s32.totalorder %v375, 113
  %v776 = vsel %vm775, %v768, %v772
  %v777 = vsel %vm775, %v770, %v774
  %v778 = vsel %vm775, %v764, %v768
  %v779 = vsel %vm775, %v766, %v770
  %v780 = vsel %vm775, %v760, %v764
  %v781 = vsel %vm775, %v762, %v766
  %v782 = vsel %vm775, %v772, %v760
  %v783 = vsel %vm775, %v774, %v762
  %s784 = scalar_lea.vmem %s1, 6
  %v785 = vld [vmem:[%s784] ss:$8 sm:$0xf]
  %v787 = vlaneseq
  %v788 = vshrl.u32 %v787, 7
  %v789 = vsub.s32 0, %v788
  %v790 = vrot.slane %v785, %v789
  %v791 = vlaneseq
  %v792 = vshrl.u32 %v791, 7
  %v793 = vsub.s32 1, %v792
  %v794 = vrot.slane %v785, %v793
  %v795 = vlaneseq
  %v796 = vshrl.u32 %v795, 7
  %v797 = vsub.s32 2, %v796
  %v798 = vrot.slane %v785, %v797
  %v799 = vlaneseq
  %v800 = vshrl.u32 %v799, 7
  %v801 = vsub.s32 3, %v800
  %v802 = vrot.slane %v785, %v801
  %v807 = vmul.f32 %v780, %v790
  %v808 = vmul.f32 %v778, %v794
  %v809 = vmul.f32 %v776, %v798
  %v810 = vmul.f32 %v782, %v802
  %v811 = vmul.f32 %v781, %v790
  %v812 = vmul.f32 %v779, %v794
  %v813 = vmul.f32 %v777, %v798
  %v814 = vmul.f32 %v783, %v802
  %815 = vset.pattern.permute.xlu0 6
  %816 = vperm.xlu0 %815, %v338
  %v817 = vpop.permute.xlu0 %816
  %819 = vset.pattern.permute.xlu0 6
  %820 = vperm.xlu0 %819, %v339
  %v821 = vpop.permute.xlu0 %820
  %v823 = vmul.f32 %v807, %v817
  %v824 = vmul.f32 %v808, %v817
  %v825 = vmul.f32 %v809, %v817
  %v826 = vmul.f32 %v810, %v817
  %v827 = vmul.f32 %v811, %v821
  %v828 = vmul.f32 %v812, %v821
  %v829 = vmul.f32 %v813, %v821
  %v830 = vmul.f32 %v814, %v821
  %v831 = vadd.f32 %v751, %v823
  %v832 = vadd.f32 %v752, %v824
  %v833 = vadd.f32 %v753, %v825
  %v834 = vadd.f32 %v754, %v826
  %v835 = vadd.f32 %v755, %v827
  %v836 = vadd.f32 %v756, %v828
  %v837 = vadd.f32 %v757, %v829
  %v838 = vadd.f32 %v758, %v830
  %839 = vrot.lane.b32.xlu0 %v330, 112
  %v840 = vpop.permute.xlu0 %839
  %841 = vrot.lane.b32.xlu0 %v334, 112
  %v842 = vpop.permute.xlu0 %841
  %843 = vrot.lane.b32.xlu0 %v331, 112
  %v844 = vpop.permute.xlu0 %843
  %845 = vrot.lane.b32.xlu0 %v335, 112
  %v846 = vpop.permute.xlu0 %845
  %847 = vrot.lane.b32.xlu0 %v332, 112
  %v848 = vpop.permute.xlu0 %847
  %849 = vrot.lane.b32.xlu0 %v336, 112
  %v850 = vpop.permute.xlu0 %849
  %851 = vrot.lane.b32.xlu0 %v333, 112
  %v852 = vpop.permute.xlu0 %851
  %853 = vrot.lane.b32.xlu0 %v337, 112
  %v854 = vpop.permute.xlu0 %853
  %vm855 = vcmp.lt.s32.totalorder %v375, 112
  %v856 = vsel %vm855, %v848, %v852
  %v857 = vsel %vm855, %v850, %v854
  %v858 = vsel %vm855, %v844, %v848
  %v859 = vsel %vm855, %v846, %v850
  %v860 = vsel %vm855, %v840, %v844
  %v861 = vsel %vm855, %v842, %v846
  %v862 = vsel %vm855, %v852, %v840
  %v863 = vsel %vm855, %v854, %v842
  %s864 = scalar_lea.vmem %s1, 7
  %v865 = vld [vmem:[%s864] ss:$8 sm:$0xf]
  %v867 = vlaneseq
  %v868 = vshrl.u32 %v867, 7
  %v869 = vsub.s32 0, %v868
  %v870 = vrot.slane %v865, %v869
  %v871 = vlaneseq
  %v872 = vshrl.u32 %v871, 7
  %v873 = vsub.s32 1, %v872
  %v874 = vrot.slane %v865, %v873
  %v875 = vlaneseq
  %v876 = vshrl.u32 %v875, 7
  %v877 = vsub.s32 2, %v876
  %v878 = vrot.slane %v865, %v877
  %v879 = vlaneseq
  %v880 = vshrl.u32 %v879, 7
  %v881 = vsub.s32 3, %v880
  %v882 = vrot.slane %v865, %v881
  %v887 = vmul.f32 %v860, %v870
  %v888 = vmul.f32 %v858, %v874
  %v889 = vmul.f32 %v856, %v878
  %v890 = vmul.f32 %v862, %v882
  %v891 = vmul.f32 %v861, %v870
  %v892 = vmul.f32 %v859, %v874
  %v893 = vmul.f32 %v857, %v878
  %v894 = vmul.f32 %v863, %v882
  %895 = vset.pattern.permute.xlu0 7
  %896 = vperm.xlu0 %895, %v338
  %v897 = vpop.permute.xlu0 %896
  %899 = vset.pattern.permute.xlu0 7
  %900 = vperm.xlu0 %899, %v339
  %v901 = vpop.permute.xlu0 %900
  %v903 = vmul.f32 %v887, %v897
  %v904 = vmul.f32 %v888, %v897
  %v905 = vmul.f32 %v889, %v897
  %v906 = vmul.f32 %v890, %v897
  %v907 = vmul.f32 %v891, %v901
  %v908 = vmul.f32 %v892, %v901
  %v909 = vmul.f32 %v893, %v901
  %v910 = vmul.f32 %v894, %v901
  %v911 = vadd.f32 %v831, %v903
  %v912 = vadd.f32 %v832, %v904
  %v913 = vadd.f32 %v833, %v905
  %v914 = vadd.f32 %v834, %v906
  %v915 = vadd.f32 %v835, %v907
  %v916 = vadd.f32 %v836, %v908
  %v917 = vadd.f32 %v837, %v909
  %v918 = vadd.f32 %v838, %v910
  %919 = vrot.lane.b32.xlu0 %v330, 111
  %v920 = vpop.permute.xlu0 %919
  %921 = vrot.lane.b32.xlu0 %v334, 111
  %v922 = vpop.permute.xlu0 %921
  %923 = vrot.lane.b32.xlu0 %v331, 111
  %v924 = vpop.permute.xlu0 %923
  %925 = vrot.lane.b32.xlu0 %v335, 111
  %v926 = vpop.permute.xlu0 %925
  %927 = vrot.lane.b32.xlu0 %v332, 111
  %v928 = vpop.permute.xlu0 %927
  %929 = vrot.lane.b32.xlu0 %v336, 111
  %v930 = vpop.permute.xlu0 %929
  %931 = vrot.lane.b32.xlu0 %v333, 111
  %v932 = vpop.permute.xlu0 %931
  %933 = vrot.lane.b32.xlu0 %v337, 111
  %v934 = vpop.permute.xlu0 %933
  %vm935 = vcmp.lt.s32.totalorder %v375, 111
  %v936 = vsel %vm935, %v928, %v932
  %v937 = vsel %vm935, %v930, %v934
  %v938 = vsel %vm935, %v924, %v928
  %v939 = vsel %vm935, %v926, %v930
  %v940 = vsel %vm935, %v920, %v924
  %v941 = vsel %vm935, %v922, %v926
  %v942 = vsel %vm935, %v932, %v920
  %v943 = vsel %vm935, %v934, %v922
  %s944 = scalar_lea.vmem %s1, 32
  %v945 = vld [vmem:[%s944] ss:$8 sm:$0xf]
  %v947 = vlaneseq
  %v948 = vshrl.u32 %v947, 7
  %v949 = vsub.s32 0, %v948
  %v950 = vrot.slane %v945, %v949
  %v951 = vlaneseq
  %v952 = vshrl.u32 %v951, 7
  %v953 = vsub.s32 1, %v952
  %v954 = vrot.slane %v945, %v953
  %v955 = vlaneseq
  %v956 = vshrl.u32 %v955, 7
  %v957 = vsub.s32 2, %v956
  %v958 = vrot.slane %v945, %v957
  %v959 = vlaneseq
  %v960 = vshrl.u32 %v959, 7
  %v961 = vsub.s32 3, %v960
  %v962 = vrot.slane %v945, %v961
  %v967 = vmul.f32 %v940, %v950
  %v968 = vmul.f32 %v938, %v954
  %v969 = vmul.f32 %v936, %v958
  %v970 = vmul.f32 %v942, %v962
  %v971 = vmul.f32 %v941, %v950
  %v972 = vmul.f32 %v939, %v954
  %v973 = vmul.f32 %v937, %v958
  %v974 = vmul.f32 %v943, %v962
  %975 = vset.pattern.permute.xlu0 8
  %976 = vperm.xlu0 %975, %v338
  %v977 = vpop.permute.xlu0 %976
  %979 = vset.pattern.permute.xlu0 8
  %980 = vperm.xlu0 %979, %v339
  %v981 = vpop.permute.xlu0 %980
  %v983 = vmul.f32 %v967, %v977
  %v984 = vmul.f32 %v968, %v977
  %v985 = vmul.f32 %v969, %v977
  %v986 = vmul.f32 %v970, %v977
  %v987 = vmul.f32 %v971, %v981
  %v988 = vmul.f32 %v972, %v981
  %v989 = vmul.f32 %v973, %v981
  %v990 = vmul.f32 %v974, %v981
  %v991 = vadd.f32 %v911, %v983
  %v992 = vadd.f32 %v912, %v984
  %v993 = vadd.f32 %v913, %v985
  %v994 = vadd.f32 %v914, %v986
  %v995 = vadd.f32 %v915, %v987
  %v996 = vadd.f32 %v916, %v988
  %v997 = vadd.f32 %v917, %v989
  %v998 = vadd.f32 %v918, %v990
  %v999 = vld [vmem:[%s9] sm:$0xff]
  %v1000 = vld [vmem:[%s9 + $0x8] sm:$0xff]
  %1002 = vset.pattern.permute.xlu0 0
  %1003 = vperm.xlu0 %1002, %v999
  %v1004 = vpop.permute.xlu0 %1003
  %1007 = vset.pattern.permute.xlu0 0
  %1008 = vperm.xlu0 %1007, %v1000
  %v1009 = vpop.permute.xlu0 %1008
  %v1011 = vadd.f32 %v991, %v1004
  %v1012 = vadd.f32 %v992, %v1004
  %v1013 = vadd.f32 %v993, %v1004
  %v1014 = vadd.f32 %v994, %v1004
  %v1015 = vadd.f32 %v995, %v1009
  %v1016 = vadd.f32 %v996, %v1009
  %v1017 = vadd.f32 %v997, %v1009
  %v1018 = vadd.f32 %v998, %v1009
  %v1019 = vmax.f32 %v1011, 0.0
  %v1020 = vmax.f32 %v1012, 0.0
  %v1021 = vmax.f32 %v1013, 0.0
  %v1022 = vmax.f32 %v1014, 0.0
  %v1023 = vmax.f32 %v1015, 0.0
  %v1024 = vmax.f32 %v1016, 0.0
  %v1025 = vmax.f32 %v1017, 0.0
  %v1026 = vmax.f32 %v1018, 0.0
  %v1027 = vld [vmem:[%s10] sm:$0xff]
  %v1028 = vld [vmem:[%s10 + $0x8] sm:$0xff]
  %1030 = vset.pattern.permute.xlu0 4
  %1031 = vperm.xlu0 %1030, %v1027
  %v1032 = vpop.permute.xlu0 %1031
  %1035 = vset.pattern.permute.xlu0 4
  %1036 = vperm.xlu0 %1035, %v1028
  %v1037 = vpop.permute.xlu0 %1036
  %v1039 = vmul.f32 %v330, %v1032
  %v1040 = vmul.f32 %v331, %v1032
  %v1041 = vmul.f32 %v332, %v1032
  %v1042 = vmul.f32 %v333, %v1032
  %v1043 = vmul.f32 %v334, %v1037
  %v1044 = vmul.f32 %v335, %v1037
  %v1045 = vmul.f32 %v336, %v1037
  %v1046 = vmul.f32 %v337, %v1037
  %1047 = vset.pattern.permute.xlu0 0
  %1048 = vperm.xlu0 %1047, %v1027
  %v1049 = vpop.permute.xlu0 %1048
  %1051 = vset.pattern.permute.xlu0 0
  %1052 = vperm.xlu0 %1051, %v1028
  %v1053 = vpop.permute.xlu0 %1052
  %v1055 = vmul.f32 %v407, %v1049
  %v1056 = vmul.f32 %v408, %v1049
  %v1057 = vmul.f32 %v409, %v1049
  %v1058 = vmul.f32 %v410, %v1049
  %v1059 = vmul.f32 %v411, %v1053
  %v1060 = vmul.f32 %v412, %v1053
  %v1061 = vmul.f32 %v413, %v1053
  %v1062 = vmul.f32 %v414, %v1053
  %v1063 = vadd.f32 %v1039, %v1055
  %v1064 = vadd.f32 %v1040, %v1056
  %v1065 = vadd.f32 %v1041, %v1057
  %v1066 = vadd.f32 %v1042, %v1058
  %v1067 = vadd.f32 %v1043, %v1059
  %v1068 = vadd.f32 %v1044, %v1060
  %v1069 = vadd.f32 %v1045, %v1061
  %v1070 = vadd.f32 %v1046, %v1062
  %1071 = vset.pattern.permute.xlu0 1
  %1072 = vperm.xlu0 %1071, %v1027
  %v1073 = vpop.permute.xlu0 %1072
  %1075 = vset.pattern.permute.xlu0 1
  %1076 = vperm.xlu0 %1075, %v1028
  %v1077 = vpop.permute.xlu0 %1076
  %v1079 = vmul.f32 %v487, %v1073
  %v1080 = vmul.f32 %v488, %v1073
  %v1081 = vmul.f32 %v489, %v1073
  %v1082 = vmul.f32 %v490, %v1073
  %v1083 = vmul.f32 %v491, %v1077
  %v1084 = vmul.f32 %v492, %v1077
  %v1085 = vmul.f32 %v493, %v1077
  %v1086 = vmul.f32 %v494, %v1077
  %v1087 = vadd.f32 %v1063, %v1079
  %v1088 = vadd.f32 %v1064, %v1080
  %v1089 = vadd.f32 %v1065, %v1081
  %v1090 = vadd.f32 %v1066, %v1082
  %v1091 = vadd.f32 %v1067, %v1083
  %v1092 = vadd.f32 %v1068, %v1084
  %v1093 = vadd.f32 %v1069, %v1085
  %v1094 = vadd.f32 %v1070, %v1086
  %1095 = vset.pattern.permute.xlu0 2
  %1096 = vperm.xlu0 %1095, %v1027
  %v1097 = vpop.permute.xlu0 %1096
  %1099 = vset.pattern.permute.xlu0 2
  %1100 = vperm.xlu0 %1099, %v1028
  %v1101 = vpop.permute.xlu0 %1100
  %v1103 = vmul.f32 %v567, %v1097
  %v1104 = vmul.f32 %v568, %v1097
  %v1105 = vmul.f32 %v569, %v1097
  %v1106 = vmul.f32 %v570, %v1097
  %v1107 = vmul.f32 %v571, %v1101
  %v1108 = vmul.f32 %v572, %v1101
  %v1109 = vmul.f32 %v573, %v1101
  %v1110 = vmul.f32 %v574, %v1101
  %v1111 = vadd.f32 %v1087, %v1103
  %v1112 = vadd.f32 %v1088, %v1104
  %v1113 = vadd.f32 %v1089, %v1105
  %v1114 = vadd.f32 %v1090, %v1106
  %v1115 = vadd.f32 %v1091, %v1107
  %v1116 = vadd.f32 %v1092, %v1108
  %v1117 = vadd.f32 %v1093, %v1109
  %v1118 = vadd.f32 %v1094, %v1110
  %1119 = vset.pattern.permute.xlu0 3
  %1120 = vperm.xlu0 %1119, %v1027
  %v1121 = vpop.permute.xlu0 %1120
  %1123 = vset.pattern.permute.xlu0 3
  %1124 = vperm.xlu0 %1123, %v1028
  %v1125 = vpop.permute.xlu0 %1124
  %v1127 = vmul.f32 %v647, %v1121
  %v1128 = vmul.f32 %v648, %v1121
  %v1129 = vmul.f32 %v649, %v1121
  %v1130 = vmul.f32 %v650, %v1121
  %v1131 = vmul.f32 %v651, %v1125
  %v1132 = vmul.f32 %v652, %v1125
  %v1133 = vmul.f32 %v653, %v1125
  %v1134 = vmul.f32 %v654, %v1125
  %v1135 = vadd.f32 %v1111, %v1127
  %v1136 = vadd.f32 %v1112, %v1128
  %v1137 = vadd.f32 %v1113, %v1129
  %v1138 = vadd.f32 %v1114, %v1130
  %v1139 = vadd.f32 %v1115, %v1131
  %v1140 = vadd.f32 %v1116, %v1132
  %v1141 = vadd.f32 %v1117, %v1133
  %v1142 = vadd.f32 %v1118, %v1134
  %1143 = vset.pattern.permute.xlu0 5
  %1144 = vperm.xlu0 %1143, %v1027
  %v1145 = vpop.permute.xlu0 %1144
  %1147 = vset.pattern.permute.xlu0 5
  %1148 = vperm.xlu0 %1147, %v1028
  %v1149 = vpop.permute.xlu0 %1148
  %v1151 = vmul.f32 %v727, %v1145
  %v1152 = vmul.f32 %v728, %v1145
  %v1153 = vmul.f32 %v729, %v1145
  %v1154 = vmul.f32 %v730, %v1145
  %v1155 = vmul.f32 %v731, %v1149
  %v1156 = vmul.f32 %v732, %v1149
  %v1157 = vmul.f32 %v733, %v1149
  %v1158 = vmul.f32 %v734, %v1149
  %v1159 = vadd.f32 %v1135, %v1151
  %v1160 = vadd.f32 %v1136, %v1152
  %v1161 = vadd.f32 %v1137, %v1153
  %v1162 = vadd.f32 %v1138, %v1154
  %v1163 = vadd.f32 %v1139, %v1155
  %v1164 = vadd.f32 %v1140, %v1156
  %v1165 = vadd.f32 %v1141, %v1157
  %v1166 = vadd.f32 %v1142, %v1158
  %1167 = vset.pattern.permute.xlu0 6
  %1168 = vperm.xlu0 %1167, %v1027
  %v1169 = vpop.permute.xlu0 %1168
  %1171 = vset.pattern.permute.xlu0 6
  %1172 = vperm.xlu0 %1171, %v1028
  %v1173 = vpop.permute.xlu0 %1172
  %v1175 = vmul.f32 %v807, %v1169
  %v1176 = vmul.f32 %v808, %v1169
  %v1177 = vmul.f32 %v809, %v1169
  %v1178 = vmul.f32 %v810, %v1169
  %v1179 = vmul.f32 %v811, %v1173
  %v1180 = vmul.f32 %v812, %v1173
  %v1181 = vmul.f32 %v813, %v1173
  %v1182 = vmul.f32 %v814, %v1173
  %v1183 = vadd.f32 %v1159, %v1175
  %v1184 = vadd.f32 %v1160, %v1176
  %v1185 = vadd.f32 %v1161, %v1177
  %v1186 = vadd.f32 %v1162, %v1178
  %v1187 = vadd.f32 %v1163, %v1179
  %v1188 = vadd.f32 %v1164, %v1180
  %v1189 = vadd.f32 %v1165, %v1181
  %v1190 = vadd.f32 %v1166, %v1182
  %1191 = vset.pattern.permute.xlu0 7
  %1192 = vperm.xlu0 %1191, %v1027
  %v1193 = vpop.permute.xlu0 %1192
  %1195 = vset.pattern.permute.xlu0 7
  %1196 = vperm.xlu0 %1195, %v1028
  %v1197 = vpop.permute.xlu0 %1196
  %v1199 = vmul.f32 %v887, %v1193
  %v1200 = vmul.f32 %v888, %v1193
  %v1201 = vmul.f32 %v889, %v1193
  %v1202 = vmul.f32 %v890, %v1193
  %v1203 = vmul.f32 %v891, %v1197
  %v1204 = vmul.f32 %v892, %v1197
  %v1205 = vmul.f32 %v893, %v1197
  %v1206 = vmul.f32 %v894, %v1197
  %v1207 = vadd.f32 %v1183, %v1199
  %v1208 = vadd.f32 %v1184, %v1200
  %v1209 = vadd.f32 %v1185, %v1201
  %v1210 = vadd.f32 %v1186, %v1202
  %v1211 = vadd.f32 %v1187, %v1203
  %v1212 = vadd.f32 %v1188, %v1204
  %v1213 = vadd.f32 %v1189, %v1205
  %v1214 = vadd.f32 %v1190, %v1206
  %1215 = vset.pattern.permute.xlu0 8
  %1216 = vperm.xlu0 %1215, %v1027
  %v1217 = vpop.permute.xlu0 %1216
  %1219 = vset.pattern.permute.xlu0 8
  %1220 = vperm.xlu0 %1219, %v1028
  %v1221 = vpop.permute.xlu0 %1220
  %v1223 = vmul.f32 %v967, %v1217
  %v1224 = vmul.f32 %v968, %v1217
  %v1225 = vmul.f32 %v969, %v1217
  %v1226 = vmul.f32 %v970, %v1217
  %v1227 = vmul.f32 %v971, %v1221
  %v1228 = vmul.f32 %v972, %v1221
  %v1229 = vmul.f32 %v973, %v1221
  %v1230 = vmul.f32 %v974, %v1221
  %v1231 = vadd.f32 %v1207, %v1223
  %v1232 = vadd.f32 %v1208, %v1224
  %v1233 = vadd.f32 %v1209, %v1225
  %v1234 = vadd.f32 %v1210, %v1226
  %v1235 = vadd.f32 %v1211, %v1227
  %v1236 = vadd.f32 %v1212, %v1228
  %v1237 = vadd.f32 %v1213, %v1229
  %v1238 = vadd.f32 %v1214, %v1230
  %v1239 = vld [vmem:[%s11] sm:$0xff]
  %v1240 = vld [vmem:[%s11 + $0x8] sm:$0xff]
  %1242 = vset.pattern.permute.xlu0 0
  %1243 = vperm.xlu0 %1242, %v1239
  %v1244 = vpop.permute.xlu0 %1243
  %1247 = vset.pattern.permute.xlu0 0
  %1248 = vperm.xlu0 %1247, %v1240
  %v1249 = vpop.permute.xlu0 %1248
  %1251 = vmatprep.subr.mxu0 0.0
  %1252 = vmatpush1.msra.mxu0 %v106
  %1253 = vmatprep.subr.mxu0 0.0
  %1254 = vmatpush1.msra.mxu0 %v105
  %1255 = vmatprep.subr.mxu0 0.0
  %1256 = vmatpush1.msra.mxu0 %v104
  %1257 = vmatprep.subr.mxu0 0.0
  %1258 = vmatpush1.msra.mxu0 %v103
  %1259 = vmatprep.subr.mxu0 0.0
  %1260 = vmatpush1.msra.mxu0 %v102
  %1261 = vmatprep.subr.mxu0 0.0
  %1262 = vmatpush1.msra.mxu0 %v101
  %1263 = vmatprep.subr.mxu0 0.0
  %1264 = vmatpush1.msra.mxu0 %v100
  %1265 = vmatprep.subr.mxu0 0.0
  %1266 = vmatpush1.msra.mxu0 %v99
  %1267 = vmatprep.subr.mxu0 0.0
  %1268 = vmatpush1.msra.mxu0 %v98
  %1269 = vmatprep.subr.mxu0 0.0
  %1270 = vmatpush1.msra.mxu0 %v97
  %1271 = vmatprep.subr.mxu0 0.0
  %1272 = vmatpush1.msra.mxu0 %v96
  %1273 = vmatprep.subr.mxu0 0.0
  %1274 = vmatpush1.msra.mxu0 %v95
  %1275 = vmatprep.subr.mxu0 0.0
  %1276 = vmatpush1.msra.mxu0 %v94
  %1277 = vmatprep.subr.mxu0 0.0
  %1278 = vmatpush1.msra.mxu0 %v93
  %1279 = vmatprep.subr.mxu0 0.0
  %1280 = vmatpush1.msra.mxu0 %v92
  %1281 = vmatprep.subr.mxu0 0.0
  %1282 = vmatpush1.msra.mxu0 %v91
  %1283 = vmatprep.subr.mxu0 0.0
  %1284 = vmatpush2.msra.mxu0 %v122
  %1285 = vmatprep.subr.mxu0 0.0
  %1286 = vmatpush2.msra.mxu0 %v121
  %1287 = vmatprep.subr.mxu0 0.0
  %1288 = vmatpush2.msra.mxu0 %v120
  %1289 = vmatprep.subr.mxu0 0.0
  %1290 = vmatpush2.msra.mxu0 %v119
  %1291 = vmatprep.subr.mxu0 0.0
  %1292 = vmatpush2.msra.mxu0 %v118
  %1293 = vmatprep.subr.mxu0 0.0
  %1294 = vmatpush2.msra.mxu0 %v117
  %1295 = vmatprep.subr.mxu0 0.0
  %1296 = vmatpush2.msra.mxu0 %v116
  %1297 = vmatprep.subr.mxu0 0.0
  %1298 = vmatpush2.msra.mxu0 %v115
  %1299 = vmatprep.subr.mxu0 0.0
  %1300 = vmatpush2.msra.mxu0 %v114
  %1301 = vmatprep.subr.mxu0 0.0
  %1302 = vmatpush2.msra.mxu0 %v113
  %1303 = vmatprep.subr.mxu0 0.0
  %1304 = vmatpush2.msra.mxu0 %v112
  %1305 = vmatprep.subr.mxu0 0.0
  %1306 = vmatpush2.msra.mxu0 %v111
  %1307 = vmatprep.subr.mxu0 0.0
  %1308 = vmatpush2.msra.mxu0 %v110
  %1309 = vmatprep.subr.mxu0 0.0
  %1310 = vmatpush2.msra.mxu0 %v109
  %1311 = vmatprep.subr.mxu0 0.0
  %1312 = vmatpush2.msra.mxu0 %v108
  %1313 = vmatprep.subr.mxu0 0.0
  %1314 = vmatpush2.msra.mxu0 %v107
  %1315 = vmatprep.mubr.f32.mxu0 %v1232
  %1316 = vmatmul.mubr.f32.gmra.mxu0 %v1231
  %v1317 = vpop.f32.mrf.mxu0
  %v1318 = vadd.f32 %v1244, %v1317
  %v1319 = vpop.f32.mrf.mxu0
  %1320 = vmatprep.mubr.f32.mxu0 %v1236
  %1321 = vmatmul.mubr.f32.gmra.mxu0 %v1235
  %v1322 = vpop.f32.mrf.mxu0
  %v1323 = vadd.f32 %v1249, %v1322
  %v1324 = vpop.f32.mrf.mxu0
  %1325 = vdwg.mxu0
  %1326 = vmatprep.subr.mxu0 0.0
  %1327 = vmatpush1.msra.mxu0 %v138
  %1328 = vmatprep.subr.mxu0 0.0
  %1329 = vmatpush1.msra.mxu0 %v137
  %1330 = vmatprep.subr.mxu0 0.0
  %1331 = vmatpush1.msra.mxu0 %v136
  %1332 = vmatprep.subr.mxu0 0.0
  %1333 = vmatpush1.msra.mxu0 %v135
  %1334 = vmatprep.subr.mxu0 0.0
  %1335 = vmatpush1.msra.mxu0 %v134
  %1336 = vmatprep.subr.mxu0 0.0
  %1337 = vmatpush1.msra.mxu0 %v133
  %1338 = vmatprep.subr.mxu0 0.0
  %1339 = vmatpush1.msra.mxu0 %v132
  %1340 = vmatprep.subr.mxu0 0.0
  %1341 = vmatpush1.msra.mxu0 %v131
  %1342 = vmatprep.subr.mxu0 0.0
  %1343 = vmatpush1.msra.mxu0 %v130
  %1344 = vmatprep.subr.mxu0 0.0
  %1345 = vmatpush1.msra.mxu0 %v129
  %1346 = vmatprep.subr.mxu0 0.0
  %1347 = vmatpush1.msra.mxu0 %v128
  %1348 = vmatprep.subr.mxu0 0.0
  %1349 = vmatpush1.msra.mxu0 %v127
  %1350 = vmatprep.subr.mxu0 0.0
  %1351 = vmatpush1.msra.mxu0 %v126
  %1352 = vmatprep.subr.mxu0 0.0
  %1353 = vmatpush1.msra.mxu0 %v125
  %1354 = vmatprep.subr.mxu0 0.0
  %1355 = vmatpush1.msra.mxu0 %v124
  %1356 = vmatprep.subr.mxu0 0.0
  %1357 = vmatpush1.msra.mxu0 %v123
  %1358 = vmatprep.subr.mxu0 0.0
  %1359 = vmatpush2.msra.mxu0 %v154
  %1360 = vmatprep.subr.mxu0 0.0
  %1361 = vmatpush2.msra.mxu0 %v153
  %1362 = vmatprep.subr.mxu0 0.0
  %1363 = vmatpush2.msra.mxu0 %v152
  %1364 = vmatprep.subr.mxu0 0.0
  %1365 = vmatpush2.msra.mxu0 %v151
  %1366 = vmatprep.subr.mxu0 0.0
  %1367 = vmatpush2.msra.mxu0 %v150
  %1368 = vmatprep.subr.mxu0 0.0
  %1369 = vmatpush2.msra.mxu0 %v149
  %1370 = vmatprep.subr.mxu0 0.0
  %1371 = vmatpush2.msra.mxu0 %v148
  %1372 = vmatprep.subr.mxu0 0.0
  %1373 = vmatpush2.msra.mxu0 %v147
  %1374 = vmatprep.subr.mxu0 0.0
  %1375 = vmatpush2.msra.mxu0 %v146
  %1376 = vmatprep.subr.mxu0 0.0
  %1377 = vmatpush2.msra.mxu0 %v145
  %1378 = vmatprep.subr.mxu0 0.0
  %1379 = vmatpush2.msra.mxu0 %v144
  %1380 = vmatprep.subr.mxu0 0.0
  %1381 = vmatpush2.msra.mxu0 %v143
  %1382 = vmatprep.subr.mxu0 0.0
  %1383 = vmatpush2.msra.mxu0 %v142
  %1384 = vmatprep.subr.mxu0 0.0
  %1385 = vmatpush2.msra.mxu0 %v141
  %1386 = vmatprep.subr.mxu0 0.0
  %1387 = vmatpush2.msra.mxu0 %v140
  %1388 = vmatprep.subr.mxu0 0.0
  %1389 = vmatpush2.msra.mxu0 %v139
  %1390 = vmatprep.mubr.f32.mxu0 %v1234
  %1391 = vmatmul.mubr.f32.gmra.mxu0 %v1233
  %v1392 = vpop.f32.mrf.mxu0
  %v1393 = vadd.f32 %v1318, %v1392
  %v1394 = vpop.f32.mrf.mxu0
  %1395 = vmatprep.mubr.f32.mxu0 %v1238
  %1396 = vmatmul.mubr.f32.gmra.mxu0 %v1237
  %v1397 = vpop.f32.mrf.mxu0
  %v1398 = vadd.f32 %v1323, %v1397
  %v1399 = vpop.f32.mrf.mxu0
  %1400 = vdwg.mxu0
  %v1401 = vld [vmem:[%s12] sm:$0xff]
  %v1402 = vld [vmem:[%s12 + $0x8] sm:$0xff]
  %1404 = vset.pattern.permute.xlu0 4
  %1405 = vperm.xlu0 %1404, %v1401
  %v1406 = vpop.permute.xlu0 %1405
  %1409 = vset.pattern.permute.xlu0 4
  %1410 = vperm.xlu0 %1409, %v1402
  %v1411 = vpop.permute.xlu0 %1410
  %v1413 = vmul.f32 %v1019, %v1406
  %v1414 = vmul.f32 %v1020, %v1406
  %v1415 = vmul.f32 %v1021, %v1406
  %v1416 = vmul.f32 %v1022, %v1406
  %v1417 = vmul.f32 %v1023, %v1411
  %v1418 = vmul.f32 %v1024, %v1411
  %v1419 = vmul.f32 %v1025, %v1411
  %v1420 = vmul.f32 %v1026, %v1411
  %1421 = vrot.lane.b32.xlu0 %v1019, 17
  %v1422 = vpop.permute.xlu0 %1421
  %1423 = vrot.lane.b32.xlu0 %v1023, 17
  %v1424 = vpop.permute.xlu0 %1423
  %1425 = vrot.lane.b32.xlu0 %v1020, 17
  %v1426 = vpop.permute.xlu0 %1425
  %1427 = vrot.lane.b32.xlu0 %v1024, 17
  %v1428 = vpop.permute.xlu0 %1427
  %1429 = vrot.lane.b32.xlu0 %v1021, 17
  %v1430 = vpop.permute.xlu0 %1429
  %1431 = vrot.lane.b32.xlu0 %v1025, 17
  %v1432 = vpop.permute.xlu0 %1431
  %1433 = vrot.lane.b32.xlu0 %v1022, 17
  %v1434 = vpop.permute.xlu0 %1433
  %1435 = vrot.lane.b32.xlu0 %v1026, 17
  %v1436 = vpop.permute.xlu0 %1435
  %v1437 = vsel %vm376, %v1430, %v1434
  %v1438 = vsel %vm376, %v1432, %v1436
  %v1439 = vsel %vm376, %v1426, %v1430
  %v1440 = vsel %vm376, %v1428, %v1432
  %v1441 = vsel %vm376, %v1422, %v1426
  %v1442 = vsel %vm376, %v1424, %v1428
  %v1443 = vsel %vm376, %v1434, %v1422
  %v1444 = vsel %vm376, %v1436, %v1424
  %v1445 = vmul.f32 %v1443, %v390
  %v1446 = vmul.f32 %v1441, %v394
  %v1447 = vmul.f32 %v1439, %v398
  %v1448 = vmul.f32 %v1437, %v402
  %v1449 = vmul.f32 %v1444, %v390
  %v1450 = vmul.f32 %v1442, %v394
  %v1451 = vmul.f32 %v1440, %v398
  %v1452 = vmul.f32 %v1438, %v402
  %1453 = vset.pattern.permute.xlu0 0
  %1454 = vperm.xlu0 %1453, %v1401
  %v1455 = vpop.permute.xlu0 %1454
  %1457 = vset.pattern.permute.xlu0 0
  %1458 = vperm.xlu0 %1457, %v1402
  %v1459 = vpop.permute.xlu0 %1458
  %v1461 = vmul.f32 %v1445, %v1455
  %v1462 = vmul.f32 %v1446, %v1455
  %v1463 = vmul.f32 %v1447, %v1455
  %v1464 = vmul.f32 %v1448, %v1455
  %v1465 = vmul.f32 %v1449, %v1459
  %v1466 = vmul.f32 %v1450, %v1459
  %v1467 = vmul.f32 %v1451, %v1459
  %v1468 = vmul.f32 %v1452, %v1459
  %v1469 = vadd.f32 %v1413, %v1461
  %v1470 = vadd.f32 %v1414, %v1462
  %v1471 = vadd.f32 %v1415, %v1463
  %v1472 = vadd.f32 %v1416, %v1464
  %v1473 = vadd.f32 %v1417, %v1465
  %v1474 = vadd.f32 %v1418, %v1466
  %v1475 = vadd.f32 %v1419, %v1467
  %v1476 = vadd.f32 %v1420, %v1468
  %1477 = vrot.lane.b32.xlu0 %v1019, 16
  %v1478 = vpop.permute.xlu0 %1477
  %1479 = vrot.lane.b32.xlu0 %v1023, 16
  %v1480 = vpop.permute.xlu0 %1479
  %1481 = vrot.lane.b32.xlu0 %v1020, 16
  %v1482 = vpop.permute.xlu0 %1481
  %1483 = vrot.lane.b32.xlu0 %v1024, 16
  %v1484 = vpop.permute.xlu0 %1483
  %1485 = vrot.lane.b32.xlu0 %v1021, 16
  %v1486 = vpop.permute.xlu0 %1485
  %1487 = vrot.lane.b32.xlu0 %v1025, 16
  %v1488 = vpop.permute.xlu0 %1487
  %1489 = vrot.lane.b32.xlu0 %v1022, 16
  %v1490 = vpop.permute.xlu0 %1489
  %1491 = vrot.lane.b32.xlu0 %v1026, 16
  %v1492 = vpop.permute.xlu0 %1491
  %v1493 = vsel %vm455, %v1486, %v1490
  %v1494 = vsel %vm455, %v1488, %v1492
  %v1495 = vsel %vm455, %v1482, %v1486
  %v1496 = vsel %vm455, %v1484, %v1488
  %v1497 = vsel %vm455, %v1478, %v1482
  %v1498 = vsel %vm455, %v1480, %v1484
  %v1499 = vsel %vm455, %v1490, %v1478
  %v1500 = vsel %vm455, %v1492, %v1480
  %v1501 = vmul.f32 %v1499, %v470
  %v1502 = vmul.f32 %v1497, %v474
  %v1503 = vmul.f32 %v1495, %v478
  %v1504 = vmul.f32 %v1493, %v482
  %v1505 = vmul.f32 %v1500, %v470
  %v1506 = vmul.f32 %v1498, %v474
  %v1507 = vmul.f32 %v1496, %v478
  %v1508 = vmul.f32 %v1494, %v482
  %1509 = vset.pattern.permute.xlu0 1
  %1510 = vperm.xlu0 %1509, %v1401
  %v1511 = vpop.permute.xlu0 %1510
  %1513 = vset.pattern.permute.xlu0 1
  %1514 = vperm.xlu0 %1513, %v1402
  %v1515 = vpop.permute.xlu0 %1514
  %v1517 = vmul.f32 %v1501, %v1511
  %v1518 = vmul.f32 %v1502, %v1511
  %v1519 = vmul.f32 %v1503, %v1511
  %v1520 = vmul.f32 %v1504, %v1511
  %v1521 = vmul.f32 %v1505, %v1515
  %v1522 = vmul.f32 %v1506, %v1515
  %v1523 = vmul.f32 %v1507, %v1515
  %v1524 = vmul.f32 %v1508, %v1515
  %v1525 = vadd.f32 %v1469, %v1517
  %v1526 = vadd.f32 %v1470, %v1518
  %v1527 = vadd.f32 %v1471, %v1519
  %v1528 = vadd.f32 %v1472, %v1520
  %v1529 = vadd.f32 %v1473, %v1521
  %v1530 = vadd.f32 %v1474, %v1522
  %v1531 = vadd.f32 %v1475, %v1523
  %v1532 = vadd.f32 %v1476, %v1524
  %1533 = vrot.lane.b32.xlu0 %v1019, 15
  %v1534 = vpop.permute.xlu0 %1533
  %1535 = vrot.lane.b32.xlu0 %v1023, 15
  %v1536 = vpop.permute.xlu0 %1535
  %1537 = vrot.lane.b32.xlu0 %v1020, 15
  %v1538 = vpop.permute.xlu0 %1537
  %1539 = vrot.lane.b32.xlu0 %v1024, 15
  %v1540 = vpop.permute.xlu0 %1539
  %1541 = vrot.lane.b32.xlu0 %v1021, 15
  %v1542 = vpop.permute.xlu0 %1541
  %1543 = vrot.lane.b32.xlu0 %v1025, 15
  %v1544 = vpop.permute.xlu0 %1543
  %1545 = vrot.lane.b32.xlu0 %v1022, 15
  %v1546 = vpop.permute.xlu0 %1545
  %1547 = vrot.lane.b32.xlu0 %v1026, 15
  %v1548 = vpop.permute.xlu0 %1547
  %v1549 = vsel %vm535, %v1542, %v1546
  %v1550 = vsel %vm535, %v1544, %v1548
  %v1551 = vsel %vm535, %v1538, %v1542
  %v1552 = vsel %vm535, %v1540, %v1544
  %v1553 = vsel %vm535, %v1534, %v1538
  %v1554 = vsel %vm535, %v1536, %v1540
  %v1555 = vsel %vm535, %v1546, %v1534
  %v1556 = vsel %vm535, %v1548, %v1536
  %v1557 = vmul.f32 %v1555, %v550
  %v1558 = vmul.f32 %v1553, %v554
  %v1559 = vmul.f32 %v1551, %v558
  %v1560 = vmul.f32 %v1549, %v562
  %v1561 = vmul.f32 %v1556, %v550
  %v1562 = vmul.f32 %v1554, %v554
  %v1563 = vmul.f32 %v1552, %v558
  %v1564 = vmul.f32 %v1550, %v562
  %1565 = vset.pattern.permute.xlu0 2
  %1566 = vperm.xlu0 %1565, %v1401
  %v1567 = vpop.permute.xlu0 %1566
  %1569 = vset.pattern.permute.xlu0 2
  %1570 = vperm.xlu0 %1569, %v1402
  %v1571 = vpop.permute.xlu0 %1570
  %v1573 = vmul.f32 %v1557, %v1567
  %v1574 = vmul.f32 %v1558, %v1567
  %v1575 = vmul.f32 %v1559, %v1567
  %v1576 = vmul.f32 %v1560, %v1567
  %v1577 = vmul.f32 %v1561, %v1571
  %v1578 = vmul.f32 %v1562, %v1571
  %v1579 = vmul.f32 %v1563, %v1571
  %v1580 = vmul.f32 %v1564, %v1571
  %v1581 = vadd.f32 %v1525, %v1573
  %v1582 = vadd.f32 %v1526, %v1574
  %v1583 = vadd.f32 %v1527, %v1575
  %v1584 = vadd.f32 %v1528, %v1576
  %v1585 = vadd.f32 %v1529, %v1577
  %v1586 = vadd.f32 %v1530, %v1578
  %v1587 = vadd.f32 %v1531, %v1579
  %v1588 = vadd.f32 %v1532, %v1580
  %1589 = vrot.lane.b32.xlu0 %v1019, 1
  %v1590 = vpop.permute.xlu0 %1589
  %1591 = vrot.lane.b32.xlu0 %v1023, 1
  %v1592 = vpop.permute.xlu0 %1591
  %1593 = vrot.lane.b32.xlu0 %v1020, 1
  %v1594 = vpop.permute.xlu0 %1593
  %1595 = vrot.lane.b32.xlu0 %v1024, 1
  %v1596 = vpop.permute.xlu0 %1595
  %1597 = vrot.lane.b32.xlu0 %v1021, 1
  %v1598 = vpop.permute.xlu0 %1597
  %1599 = vrot.lane.b32.xlu0 %v1025, 1
  %v1600 = vpop.permute.xlu0 %1599
  %1601 = vrot.lane.b32.xlu0 %v1022, 1
  %v1602 = vpop.permute.xlu0 %1601
  %1603 = vrot.lane.b32.xlu0 %v1026, 1
  %v1604 = vpop.permute.xlu0 %1603
  %v1605 = vsel %vm615, %v1598, %v1602
  %v1606 = vsel %vm615, %v1600, %v1604
  %v1607 = vsel %vm615, %v1594, %v1598
  %v1608 = vsel %vm615, %v1596, %v1600
  %v1609 = vsel %vm615, %v1590, %v1594
  %v1610 = vsel %vm615, %v1592, %v1596
  %v1611 = vsel %vm615, %v1602, %v1590
  %v1612 = vsel %vm615, %v1604, %v1592
  %v1613 = vmul.f32 %v1611, %v630
  %v1614 = vmul.f32 %v1609, %v634
  %v1615 = vmul.f32 %v1607, %v638
  %v1616 = vmul.f32 %v1605, %v642
  %v1617 = vmul.f32 %v1612, %v630
  %v1618 = vmul.f32 %v1610, %v634
  %v1619 = vmul.f32 %v1608, %v638
  %v1620 = vmul.f32 %v1606, %v642
  %1621 = vset.pattern.permute.xlu0 3
  %1622 = vperm.xlu0 %1621, %v1401
  %v1623 = vpop.permute.xlu0 %1622
  %1625 = vset.pattern.permute.xlu0 3
  %1626 = vperm.xlu0 %1625, %v1402
  %v1627 = vpop.permute.xlu0 %1626
  %v1629 = vmul.f32 %v1613, %v1623
  %v1630 = vmul.f32 %v1614, %v1623
  %v1631 = vmul.f32 %v1615, %v1623
  %v1632 = vmul.f32 %v1616, %v1623
  %v1633 = vmul.f32 %v1617, %v1627
  %v1634 = vmul.f32 %v1618, %v1627
  %v1635 = vmul.f32 %v1619, %v1627
  %v1636 = vmul.f32 %v1620, %v1627
  %v1637 = vadd.f32 %v1581, %v1629
  %v1638 = vadd.f32 %v1582, %v1630
  %v1639 = vadd.f32 %v1583, %v1631
  %v1640 = vadd.f32 %v1584, %v1632
  %v1641 = vadd.f32 %v1585, %v1633
  %v1642 = vadd.f32 %v1586, %v1634
  %v1643 = vadd.f32 %v1587, %v1635
  %v1644 = vadd.f32 %v1588, %v1636
  %1645 = vrot.lane.b32.xlu0 %v1019, 127
  %v1646 = vpop.permute.xlu0 %1645
  %1647 = vrot.lane.b32.xlu0 %v1023, 127
  %v1648 = vpop.permute.xlu0 %1647
  %1649 = vrot.lane.b32.xlu0 %v1020, 127
  %v1650 = vpop.permute.xlu0 %1649
  %1651 = vrot.lane.b32.xlu0 %v1024, 127
  %v1652 = vpop.permute.xlu0 %1651
  %1653 = vrot.lane.b32.xlu0 %v1021, 127
  %v1654 = vpop.permute.xlu0 %1653
  %1655 = vrot.lane.b32.xlu0 %v1025, 127
  %v1656 = vpop.permute.xlu0 %1655
  %1657 = vrot.lane.b32.xlu0 %v1022, 127
  %v1658 = vpop.permute.xlu0 %1657
  %1659 = vrot.lane.b32.xlu0 %v1026, 127
  %v1660 = vpop.permute.xlu0 %1659
  %v1661 = vsel %vm695, %v1654, %v1658
  %v1662 = vsel %vm695, %v1656, %v1660
  %v1663 = vsel %vm695, %v1650, %v1654
  %v1664 = vsel %vm695, %v1652, %v1656
  %v1665 = vsel %vm695, %v1646, %v1650
  %v1666 = vsel %vm695, %v1648, %v1652
  %v1667 = vsel %vm695, %v1658, %v1646
  %v1668 = vsel %vm695, %v1660, %v1648
  %v1669 = vmul.f32 %v1665, %v710
  %v1670 = vmul.f32 %v1663, %v714
  %v1671 = vmul.f32 %v1661, %v718
  %v1672 = vmul.f32 %v1667, %v722
  %v1673 = vmul.f32 %v1666, %v710
  %v1674 = vmul.f32 %v1664, %v714
  %v1675 = vmul.f32 %v1662, %v718
  %v1676 = vmul.f32 %v1668, %v722
  %1677 = vset.pattern.permute.xlu0 5
  %1678 = vperm.xlu0 %1677, %v1401
  %v1679 = vpop.permute.xlu0 %1678
  %1681 = vset.pattern.permute.xlu0 5
  %1682 = vperm.xlu0 %1681, %v1402
  %v1683 = vpop.permute.xlu0 %1682
  %v1685 = vmul.f32 %v1669, %v1679
  %v1686 = vmul.f32 %v1670, %v1679
  %v1687 = vmul.f32 %v1671, %v1679
  %v1688 = vmul.f32 %v1672, %v1679
  %v1689 = vmul.f32 %v1673, %v1683
  %v1690 = vmul.f32 %v1674, %v1683
  %v1691 = vmul.f32 %v1675, %v1683
  %v1692 = vmul.f32 %v1676, %v1683
  %v1693 = vadd.f32 %v1637, %v1685
  %v1694 = vadd.f32 %v1638, %v1686
  %v1695 = vadd.f32 %v1639, %v1687
  %v1696 = vadd.f32 %v1640, %v1688
  %v1697 = vadd.f32 %v1641, %v1689
  %v1698 = vadd.f32 %v1642, %v1690
  %v1699 = vadd.f32 %v1643, %v1691
  %v1700 = vadd.f32 %v1644, %v1692
  %1701 = vrot.lane.b32.xlu0 %v1019, 113
  %v1702 = vpop.permute.xlu0 %1701
  %1703 = vrot.lane.b32.xlu0 %v1023, 113
  %v1704 = vpop.permute.xlu0 %1703
  %1705 = vrot.lane.b32.xlu0 %v1020, 113
  %v1706 = vpop.permute.xlu0 %1705
  %1707 = vrot.lane.b32.xlu0 %v1024, 113
  %v1708 = vpop.permute.xlu0 %1707
  %1709 = vrot.lane.b32.xlu0 %v1021, 113
  %v1710 = vpop.permute.xlu0 %1709
  %1711 = vrot.lane.b32.xlu0 %v1025, 113
  %v1712 = vpop.permute.xlu0 %1711
  %1713 = vrot.lane.b32.xlu0 %v1022, 113
  %v1714 = vpop.permute.xlu0 %1713
  %1715 = vrot.lane.b32.xlu0 %v1026, 113
  %v1716 = vpop.permute.xlu0 %1715
  %v1717 = vsel %vm775, %v1710, %v1714
  %v1718 = vsel %vm775, %v1712, %v1716
  %v1719 = vsel %vm775, %v1706, %v1710
  %v1720 = vsel %vm775, %v1708, %v1712
  %v1721 = vsel %vm775, %v1702, %v1706
  %v1722 = vsel %vm775, %v1704, %v1708
  %v1723 = vsel %vm775, %v1714, %v1702
  %v1724 = vsel %vm775, %v1716, %v1704
  %v1725 = vmul.f32 %v1721, %v790
  %v1726 = vmul.f32 %v1719, %v794
  %v1727 = vmul.f32 %v1717, %v798
  %v1728 = vmul.f32 %v1723, %v802
  %v1729 = vmul.f32 %v1722, %v790
  %v1730 = vmul.f32 %v1720, %v794
  %v1731 = vmul.f32 %v1718, %v798
  %v1732 = vmul.f32 %v1724, %v802
  %1733 = vset.pattern.permute.xlu0 6
  %1734 = vperm.xlu0 %1733, %v1401
  %v1735 = vpop.permute.xlu0 %1734
  %1737 = vset.pattern.permute.xlu0 6
  %1738 = vperm.xlu0 %1737, %v1402
  %v1739 = vpop.permute.xlu0 %1738
  %v1741 = vmul.f32 %v1725, %v1735
  %v1742 = vmul.f32 %v1726, %v1735
  %v1743 = vmul.f32 %v1727, %v1735
  %v1744 = vmul.f32 %v1728, %v1735
  %v1745 = vmul.f32 %v1729, %v1739
  %v1746 = vmul.f32 %v1730, %v1739
  %v1747 = vmul.f32 %v1731, %v1739
  %v1748 = vmul.f32 %v1732, %v1739
  %v1749 = vadd.f32 %v1693, %v1741
  %v1750 = vadd.f32 %v1694, %v1742
  %v1751 = vadd.f32 %v1695, %v1743
  %v1752 = vadd.f32 %v1696, %v1744
  %v1753 = vadd.f32 %v1697, %v1745
  %v1754 = vadd.f32 %v1698, %v1746
  %v1755 = vadd.f32 %v1699, %v1747
  %v1756 = vadd.f32 %v1700, %v1748
  %1757 = vrot.lane.b32.xlu0 %v1019, 112
  %v1758 = vpop.permute.xlu0 %1757
  %1759 = vrot.lane.b32.xlu0 %v1023, 112
  %v1760 = vpop.permute.xlu0 %1759
  %1761 = vrot.lane.b32.xlu0 %v1020, 112
  %v1762 = vpop.permute.xlu0 %1761
  %1763 = vrot.lane.b32.xlu0 %v1024, 112
  %v1764 = vpop.permute.xlu0 %1763
  %1765 = vrot.lane.b32.xlu0 %v1021, 112
  %v1766 = vpop.permute.xlu0 %1765
  %1767 = vrot.lane.b32.xlu0 %v1025, 112
  %v1768 = vpop.permute.xlu0 %1767
  %1769 = vrot.lane.b32.xlu0 %v1022, 112
  %v1770 = vpop.permute.xlu0 %1769
  %1771 = vrot.lane.b32.xlu0 %v1026, 112
  %v1772 = vpop.permute.xlu0 %1771
  %v1773 = vsel %vm855, %v1766, %v1770
  %v1774 = vsel %vm855, %v1768, %v1772
  %v1775 = vsel %vm855, %v1762, %v1766
  %v1776 = vsel %vm855, %v1764, %v1768
  %v1777 = vsel %vm855, %v1758, %v1762
  %v1778 = vsel %vm855, %v1760, %v1764
  %v1779 = vsel %vm855, %v1770, %v1758
  %v1780 = vsel %vm855, %v1772, %v1760
  %v1781 = vmul.f32 %v1777, %v870
  %v1782 = vmul.f32 %v1775, %v874
  %v1783 = vmul.f32 %v1773, %v878
  %v1784 = vmul.f32 %v1779, %v882
  %v1785 = vmul.f32 %v1778, %v870
  %v1786 = vmul.f32 %v1776, %v874
  %v1787 = vmul.f32 %v1774, %v878
  %v1788 = vmul.f32 %v1780, %v882
  %1789 = vset.pattern.permute.xlu0 7
  %1790 = vperm.xlu0 %1789, %v1401
  %v1791 = vpop.permute.xlu0 %1790
  %1793 = vset.pattern.permute.xlu0 7
  %1794 = vperm.xlu0 %1793, %v1402
  %v1795 = vpop.permute.xlu0 %1794
  %v1797 = vmul.f32 %v1781, %v1791
  %v1798 = vmul.f32 %v1782, %v1791
  %v1799 = vmul.f32 %v1783, %v1791
  %v1800 = vmul.f32 %v1784, %v1791
  %v1801 = vmul.f32 %v1785, %v1795
  %v1802 = vmul.f32 %v1786, %v1795
  %v1803 = vmul.f32 %v1787, %v1795
  %v1804 = vmul.f32 %v1788, %v1795
  %v1805 = vadd.f32 %v1749, %v1797
  %v1806 = vadd.f32 %v1750, %v1798
  %v1807 = vadd.f32 %v1751, %v1799
  %v1808 = vadd.f32 %v1752, %v1800
  %v1809 = vadd.f32 %v1753, %v1801
  %v1810 = vadd.f32 %v1754, %v1802
  %v1811 = vadd.f32 %v1755, %v1803
  %v1812 = vadd.f32 %v1756, %v1804
  %1813 = vrot.lane.b32.xlu0 %v1019, 111
  %v1814 = vpop.permute.xlu0 %1813
  %1815 = vrot.lane.b32.xlu0 %v1023, 111
  %v1816 = vpop.permute.xlu0 %1815
  %1817 = vrot.lane.b32.xlu0 %v1020, 111
  %v1818 = vpop.permute.xlu0 %1817
  %1819 = vrot.lane.b32.xlu0 %v1024, 111
  %v1820 = vpop.permute.xlu0 %1819
  %1821 = vrot.lane.b32.xlu0 %v1021, 111
  %v1822 = vpop.permute.xlu0 %1821
  %1823 = vrot.lane.b32.xlu0 %v1025, 111
  %v1824 = vpop.permute.xlu0 %1823
  %1825 = vrot.lane.b32.xlu0 %v1022, 111
  %v1826 = vpop.permute.xlu0 %1825
  %1827 = vrot.lane.b32.xlu0 %v1026, 111
  %v1828 = vpop.permute.xlu0 %1827
  %v1829 = vsel %vm935, %v1822, %v1826
  %v1830 = vsel %vm935, %v1824, %v1828
  %v1831 = vsel %vm935, %v1818, %v1822
  %v1832 = vsel %vm935, %v1820, %v1824
  %v1833 = vsel %vm935, %v1814, %v1818
  %v1834 = vsel %vm935, %v1816, %v1820
  %v1835 = vsel %vm935, %v1826, %v1814
  %v1836 = vsel %vm935, %v1828, %v1816
  %v1837 = vmul.f32 %v1833, %v950
  %v1838 = vmul.f32 %v1831, %v954
  %v1839 = vmul.f32 %v1829, %v958
  %v1840 = vmul.f32 %v1835, %v962
  %v1841 = vmul.f32 %v1834, %v950
  %v1842 = vmul.f32 %v1832, %v954
  %v1843 = vmul.f32 %v1830, %v958
  %v1844 = vmul.f32 %v1836, %v962
  %1845 = vset.pattern.permute.xlu0 8
  %1846 = vperm.xlu0 %1845, %v1401
  %v1847 = vpop.permute.xlu0 %1846
  %1849 = vset.pattern.permute.xlu0 8
  %1850 = vperm.xlu0 %1849, %v1402
  %v1851 = vpop.permute.xlu0 %1850
  %v1853 = vmul.f32 %v1837, %v1847
  %v1854 = vmul.f32 %v1838, %v1847
  %v1855 = vmul.f32 %v1839, %v1847
  %v1856 = vmul.f32 %v1840, %v1847
  %v1857 = vmul.f32 %v1841, %v1851
  %v1858 = vmul.f32 %v1842, %v1851
  %v1859 = vmul.f32 %v1843, %v1851
  %v1860 = vmul.f32 %v1844, %v1851
  %v1861 = vadd.f32 %v1805, %v1853
  %v1862 = vadd.f32 %v1806, %v1854
  %v1863 = vadd.f32 %v1807, %v1855
  %v1864 = vadd.f32 %v1808, %v1856
  %v1865 = vadd.f32 %v1809, %v1857
  %v1866 = vadd.f32 %v1810, %v1858
  %v1867 = vadd.f32 %v1811, %v1859
  %v1868 = vadd.f32 %v1812, %v1860
  %v1869 = vld [vmem:[%s13] sm:$0xff]
  %v1870 = vld [vmem:[%s13 + $0x8] sm:$0xff]
  %1872 = vset.pattern.permute.xlu0 0
  %1873 = vperm.xlu0 %1872, %v1869
  %v1874 = vpop.permute.xlu0 %1873
  %1877 = vset.pattern.permute.xlu0 0
  %1878 = vperm.xlu0 %1877, %v1870
  %v1879 = vpop.permute.xlu0 %1878
  %1881 = vmatprep.subr.mxu0 0.0
  %1882 = vmatpush1.msra.mxu0 %v106
  %1883 = vmatprep.subr.mxu0 0.0
  %1884 = vmatpush1.msra.mxu0 %v105
  %1885 = vmatprep.subr.mxu0 0.0
  %1886 = vmatpush1.msra.mxu0 %v104
  %1887 = vmatprep.subr.mxu0 0.0
  %1888 = vmatpush1.msra.mxu0 %v103
  %1889 = vmatprep.subr.mxu0 0.0
  %1890 = vmatpush1.msra.mxu0 %v102
  %1891 = vmatprep.subr.mxu0 0.0
  %1892 = vmatpush1.msra.mxu0 %v101
  %1893 = vmatprep.subr.mxu0 0.0
  %1894 = vmatpush1.msra.mxu0 %v100
  %1895 = vmatprep.subr.mxu0 0.0
  %1896 = vmatpush1.msra.mxu0 %v99
  %1897 = vmatprep.subr.mxu0 0.0
  %1898 = vmatpush1.msra.mxu0 %v98
  %1899 = vmatprep.subr.mxu0 0.0
  %1900 = vmatpush1.msra.mxu0 %v97
  %1901 = vmatprep.subr.mxu0 0.0
  %1902 = vmatpush1.msra.mxu0 %v96
  %1903 = vmatprep.subr.mxu0 0.0
  %1904 = vmatpush1.msra.mxu0 %v95
  %1905 = vmatprep.subr.mxu0 0.0
  %1906 = vmatpush1.msra.mxu0 %v94
  %1907 = vmatprep.subr.mxu0 0.0
  %1908 = vmatpush1.msra.mxu0 %v93
  %1909 = vmatprep.subr.mxu0 0.0
  %1910 = vmatpush1.msra.mxu0 %v92
  %1911 = vmatprep.subr.mxu0 0.0
  %1912 = vmatpush1.msra.mxu0 %v91
  %1913 = vmatprep.subr.mxu0 0.0
  %1914 = vmatpush2.msra.mxu0 %v122
  %1915 = vmatprep.subr.mxu0 0.0
  %1916 = vmatpush2.msra.mxu0 %v121
  %1917 = vmatprep.subr.mxu0 0.0
  %1918 = vmatpush2.msra.mxu0 %v120
  %1919 = vmatprep.subr.mxu0 0.0
  %1920 = vmatpush2.msra.mxu0 %v119
  %1921 = vmatprep.subr.mxu0 0.0
  %1922 = vmatpush2.msra.mxu0 %v118
  %1923 = vmatprep.subr.mxu0 0.0
  %1924 = vmatpush2.msra.mxu0 %v117
  %1925 = vmatprep.subr.mxu0 0.0
  %1926 = vmatpush2.msra.mxu0 %v116
  %1927 = vmatprep.subr.mxu0 0.0
  %1928 = vmatpush2.msra.mxu0 %v115
  %1929 = vmatprep.subr.mxu0 0.0
  %1930 = vmatpush2.msra.mxu0 %v114
  %1931 = vmatprep.subr.mxu0 0.0
  %1932 = vmatpush2.msra.mxu0 %v113
  %1933 = vmatprep.subr.mxu0 0.0
  %1934 = vmatpush2.msra.mxu0 %v112
  %1935 = vmatprep.subr.mxu0 0.0
  %1936 = vmatpush2.msra.mxu0 %v111
  %1937 = vmatprep.subr.mxu0 0.0
  %1938 = vmatpush2.msra.mxu0 %v110
  %1939 = vmatprep.subr.mxu0 0.0
  %1940 = vmatpush2.msra.mxu0 %v109
  %1941 = vmatprep.subr.mxu0 0.0
  %1942 = vmatpush2.msra.mxu0 %v108
  %1943 = vmatprep.subr.mxu0 0.0
  %1944 = vmatpush2.msra.mxu0 %v107
  %1945 = vmatprep.mubr.f32.mxu0 %v1862
  %1946 = vmatmul.mubr.f32.gmra.mxu0 %v1861
  %v1947 = vpop.f32.mrf.mxu0
  %v1948 = vadd.f32 %v1874, %v1947
  %v1949 = vpop.f32.mrf.mxu0
  %1950 = vmatprep.mubr.f32.mxu0 %v1866
  %1951 = vmatmul.mubr.f32.gmra.mxu0 %v1865
  %v1952 = vpop.f32.mrf.mxu0
  %v1953 = vadd.f32 %v1879, %v1952
  %v1954 = vpop.f32.mrf.mxu0
  %1955 = vdwg.mxu0
  %1956 = vmatprep.subr.mxu0 0.0
  %1957 = vmatpush1.msra.mxu0 %v138
  %1958 = vmatprep.subr.mxu0 0.0
  %1959 = vmatpush1.msra.mxu0 %v137
  %1960 = vmatprep.subr.mxu0 0.0
  %1961 = vmatpush1.msra.mxu0 %v136
  %1962 = vmatprep.subr.mxu0 0.0
  %1963 = vmatpush1.msra.mxu0 %v135
  %1964 = vmatprep.subr.mxu0 0.0
  %1965 = vmatpush1.msra.mxu0 %v134
  %1966 = vmatprep.subr.mxu0 0.0
  %1967 = vmatpush1.msra.mxu0 %v133
  %1968 = vmatprep.subr.mxu0 0.0
  %1969 = vmatpush1.msra.mxu0 %v132
  %1970 = vmatprep.subr.mxu0 0.0
  %1971 = vmatpush1.msra.mxu0 %v131
  %1972 = vmatprep.subr.mxu0 0.0
  %1973 = vmatpush1.msra.mxu0 %v130
  %1974 = vmatprep.subr.mxu0 0.0
  %1975 = vmatpush1.msra.mxu0 %v129
  %1976 = vmatprep.subr.mxu0 0.0
  %1977 = vmatpush1.msra.mxu0 %v128
  %1978 = vmatprep.subr.mxu0 0.0
  %1979 = vmatpush1.msra.mxu0 %v127
  %1980 = vmatprep.subr.mxu0 0.0
  %1981 = vmatpush1.msra.mxu0 %v126
  %1982 = vmatprep.subr.mxu0 0.0
  %1983 = vmatpush1.msra.mxu0 %v125
  %1984 = vmatprep.subr.mxu0 0.0
  %1985 = vmatpush1.msra.mxu0 %v124
  %1986 = vmatprep.subr.mxu0 0.0
  %1987 = vmatpush1.msra.mxu0 %v123
  %1988 = vmatprep.subr.mxu0 0.0
  %1989 = vmatpush2.msra.mxu0 %v154
  %1990 = vmatprep.subr.mxu0 0.0
  %1991 = vmatpush2.msra.mxu0 %v153
  %1992 = vmatprep.subr.mxu0 0.0
  %1993 = vmatpush2.msra.mxu0 %v152
  %1994 = vmatprep.subr.mxu0 0.0
  %1995 = vmatpush2.msra.mxu0 %v151
  %1996 = vmatprep.subr.mxu0 0.0
  %1997 = vmatpush2.msra.mxu0 %v150
  %1998 = vmatprep.subr.mxu0 0.0
  %1999 = vmatpush2.msra.mxu0 %v149
  %2000 = vmatprep.subr.mxu0 0.0
  %2001 = vmatpush2.msra.mxu0 %v148
  %2002 = vmatprep.subr.mxu0 0.0
  %2003 = vmatpush2.msra.mxu0 %v147
  %2004 = vmatprep.subr.mxu0 0.0
  %2005 = vmatpush2.msra.mxu0 %v146
  %2006 = vmatprep.subr.mxu0 0.0
  %2007 = vmatpush2.msra.mxu0 %v145
  %2008 = vmatprep.subr.mxu0 0.0
  %2009 = vmatpush2.msra.mxu0 %v144
  %2010 = vmatprep.subr.mxu0 0.0
  %2011 = vmatpush2.msra.mxu0 %v143
  %2012 = vmatprep.subr.mxu0 0.0
  %2013 = vmatpush2.msra.mxu0 %v142
  %2014 = vmatprep.subr.mxu0 0.0
  %2015 = vmatpush2.msra.mxu0 %v141
  %2016 = vmatprep.subr.mxu0 0.0
  %2017 = vmatpush2.msra.mxu0 %v140
  %2018 = vmatprep.subr.mxu0 0.0
  %2019 = vmatpush2.msra.mxu0 %v139
  %2020 = vmatprep.mubr.f32.mxu0 %v1864
  %2021 = vmatmul.mubr.f32.gmra.mxu0 %v1863
  %v2022 = vpop.f32.mrf.mxu0
  %v2023 = vadd.f32 %v1948, %v2022
  %v2024 = vpop.f32.mrf.mxu0
  %2025 = vmatprep.mubr.f32.mxu0 %v1868
  %2026 = vmatmul.mubr.f32.gmra.mxu0 %v1867
  %v2027 = vpop.f32.mrf.mxu0
  %v2028 = vadd.f32 %v1953, %v2027
  %v2029 = vpop.f32.mrf.mxu0
  %2030 = vdwg.mxu0
  %v2031 = vld [vmem:[%s4] sm:$0xff]
  %v2032 = vld [vmem:[%s4 + $0x8] sm:$0xff]
  %v2033 = vld [vmem:[%s4 + $0x10] sm:$0xff]
  %v2034 = vld [vmem:[%s4 + $0x18] sm:$0xff]
  %v2035 = vld [vmem:[%s4 + $0x20] sm:$0xff]
  %v2036 = vld [vmem:[%s4 + $0x28] sm:$0xff]
  %v2037 = vld [vmem:[%s4 + $0x30] sm:$0xff]
  %v2038 = vld [vmem:[%s4 + $0x38] sm:$0xff]
  %v2039 = vld [vmem:[%s4 + $0x40] sm:$0xff]
  %v2040 = vld [vmem:[%s4 + $0x48] sm:$0xff]
  %v2041 = vld [vmem:[%s4 + $0x50] sm:$0xff]
  %v2042 = vld [vmem:[%s4 + $0x58] sm:$0xff]
  %v2043 = vld [vmem:[%s4 + $0x60] sm:$0xff]
  %v2044 = vld [vmem:[%s4 + $0x68] sm:$0xff]
  %v2045 = vld [vmem:[%s4 + $0x70] sm:$0xff]
  %v2046 = vld [vmem:[%s4 + $0x78] sm:$0xff]
  %2047 = vmatprep.subr.mxu0 0.0
  %2048 = vmatpush1.msra.mxu0 %v2046
  %2049 = vmatprep.subr.mxu0 0.0
  %2050 = vmatpush1.msra.mxu0 %v2045
  %2051 = vmatprep.subr.mxu0 0.0
  %2052 = vmatpush1.msra.mxu0 %v2044
  %2053 = vmatprep.subr.mxu0 0.0
  %2054 = vmatpush1.msra.mxu0 %v2043
  %2055 = vmatprep.subr.mxu0 0.0
  %2056 = vmatpush1.msra.mxu0 %v2042
  %2057 = vmatprep.subr.mxu0 0.0
  %2058 = vmatpush1.msra.mxu0 %v2041
  %2059 = vmatprep.subr.mxu0 0.0
  %2060 = vmatpush1.msra.mxu0 %v2040
  %2061 = vmatprep.subr.mxu0 0.0
  %2062 = vmatpush1.msra.mxu0 %v2039
  %2063 = vmatprep.subr.mxu0 0.0
  %2064 = vmatpush1.msra.mxu0 %v2038
  %2065 = vmatprep.subr.mxu0 0.0
  %2066 = vmatpush1.msra.mxu0 %v2037
  %2067 = vmatprep.subr.mxu0 0.0
  %2068 = vmatpush1.msra.mxu0 %v2036
  %2069 = vmatprep.subr.mxu0 0.0
  %2070 = vmatpush1.msra.mxu0 %v2035
  %2071 = vmatprep.subr.mxu0 0.0
  %2072 = vmatpush1.msra.mxu0 %v2034
  %2073 = vmatprep.subr.mxu0 0.0
  %2074 = vmatpush1.msra.mxu0 %v2033
  %2075 = vmatprep.subr.mxu0 0.0
  %2076 = vmatpush1.msra.mxu0 %v2032
  %2077 = vmatprep.subr.mxu0 0.0
  %2078 = vmatpush1.msra.mxu0 %v2031
  %2079 = vmatprep.subr.mxu0 0.0
  %2080 = vmatpush2.msra.mxu0 0.0
  %2081 = vmatprep.subr.mxu0 0.0
  %2082 = vmatpush2.msra.mxu0 0.0
  %2083 = vmatprep.subr.mxu0 0.0
  %2084 = vmatpush2.msra.mxu0 0.0
  %2085 = vmatprep.subr.mxu0 0.0
  %2086 = vmatpush2.msra.mxu0 0.0
  %2087 = vmatprep.subr.mxu0 0.0
  %2088 = vmatpush2.msra.mxu0 0.0
  %2089 = vmatprep.subr.mxu0 0.0
  %2090 = vmatpush2.msra.mxu0 0.0
  %2091 = vmatprep.subr.mxu0 0.0
  %2092 = vmatpush2.msra.mxu0 0.0
  %2093 = vmatprep.subr.mxu0 0.0
  %2094 = vmatpush2.msra.mxu0 0.0
  %2095 = vmatprep.subr.mxu0 0.0
  %2096 = vmatpush2.msra.mxu0 0.0
  %2097 = vmatprep.subr.mxu0 0.0
  %2098 = vmatpush2.msra.mxu0 0.0
  %2099 = vmatprep.subr.mxu0 0.0
  %2100 = vmatpush2.msra.mxu0 0.0
  %2101 = vmatprep.subr.mxu0 0.0
  %2102 = vmatpush2.msra.mxu0 0.0
  %2103 = vmatprep.subr.mxu0 0.0
  %2104 = vmatpush2.msra.mxu0 0.0
  %2105 = vmatprep.subr.mxu0 0.0
  %2106 = vmatpush2.msra.mxu0 0.0
  %2107 = vmatprep.subr.mxu0 0.0
  %2108 = vmatpush2.msra.mxu0 0.0
  %2109 = vmatprep.subr.mxu0 0.0
  %2110 = vmatpush2.msra.mxu0 0.0
  %2111 = vmatprep.mubr.f32.mxu0 0.0
  %2112 = vmatmul.mubr.f32.gmra.mxu0 %v1393
  %v2113 = vpop.f32.mrf.mxu0
  %v2114 = vadd.f32 0.0, %v2113
  %v2115 = vpop.f32.mrf.mxu0
  %2116 = vmatprep.mubr.f32.mxu0 0.0
  %2117 = vmatmul.mubr.f32.gmra.mxu0 %v1398
  %v2118 = vpop.f32.mrf.mxu0
  %v2119 = vadd.f32 0.0, %v2118
  %v2120 = vpop.f32.mrf.mxu0
  %2121 = vmatprep.mubr.f32.mxu0 0.0
  %2122 = vmatmul.mubr.f32.gmra.mxu0 %v2023
  %v2123 = vpop.f32.mrf.mxu0
  %v2124 = vadd.f32 0.0, %v2123
  %v2125 = vpop.f32.mrf.mxu0
  %2126 = vmatprep.mubr.f32.mxu0 0.0
  %2127 = vmatmul.mubr.f32.gmra.mxu0 %v2028
  %v2128 = vpop.f32.mrf.mxu0
  %v2129 = vadd.f32 0.0, %v2128
  %v2130 = vpop.f32.mrf.mxu0
  %2131 = vdwg.mxu0
  %v2132 = vld [vmem:[%s14] sm:$0xff]
  %v2133 = vld [vmem:[%s15] sm:$0xff]
  %2135 = vset.pattern.permute.xlu0 0
  %2136 = vperm.xlu0 %2135, %v2133
  %v2137 = vpop.permute.xlu0 %2136
  %vm2139 = vcmask 261120
  %v2141 = vsel %vm2139, %v2132, 0
  %2143 = vmatprep.subr.mxu0 0.0
  %2144 = vmatpush1.msra.mxu0 0.0
  %2145 = vmatprep.subr.mxu0 0.0
  %2146 = vmatpush1.msra.mxu0 0.0
  %2147 = vmatprep.subr.mxu0 0.0
  %2148 = vmatpush1.msra.mxu0 0.0
  %2149 = vmatprep.subr.mxu0 0.0
  %2150 = vmatpush1.msra.mxu0 0.0
  %2151 = vmatprep.subr.mxu0 0.0
  %2152 = vmatpush1.msra.mxu0 0.0
  %2153 = vmatprep.subr.mxu0 0.0
  %2154 = vmatpush1.msra.mxu0 0.0
  %2155 = vmatprep.subr.mxu0 0.0
  %2156 = vmatpush1.msra.mxu0 0.0
  %2157 = vmatprep.subr.mxu0 0.0
  %2158 = vmatpush1.msra.mxu0 0.0
  %2159 = vmatprep.subr.mxu0 0.0
  %2160 = vmatpush1.msra.mxu0 0.0
  %2161 = vmatprep.subr.mxu0 0.0
  %2162 = vmatpush1.msra.mxu0 0.0
  %2163 = vmatprep.subr.mxu0 0.0
  %2164 = vmatpush1.msra.mxu0 0.0
  %2165 = vmatprep.subr.mxu0 0.0
  %2166 = vmatpush1.msra.mxu0 0.0
  %2167 = vmatprep.subr.mxu0 0.0
  %2168 = vmatpush1.msra.mxu0 %v2129
  %2169 = vmatprep.subr.mxu0 0.0
  %2170 = vmatpush1.msra.mxu0 %v2124
  %2171 = vmatprep.subr.mxu0 0.0
  %2172 = vmatpush1.msra.mxu0 %v2119
  %2173 = vmatprep.subr.mxu0 0.0
  %2174 = vmatpush1.msra.mxu0 %v2114
  %2175 = vmatprep.subr.mxu0 0.0
  %2176 = vmatpush2.msra.mxu0 0.0
  %2177 = vmatprep.subr.mxu0 0.0
  %2178 = vmatpush2.msra.mxu0 0.0
  %2179 = vmatprep.subr.mxu0 0.0
  %2180 = vmatpush2.msra.mxu0 0.0
  %2181 = vmatprep.subr.mxu0 0.0
  %2182 = vmatpush2.msra.mxu0 0.0
  %2183 = vmatprep.subr.mxu0 0.0
  %2184 = vmatpush2.msra.mxu0 0.0
  %2185 = vmatprep.subr.mxu0 0.0
  %2186 = vmatpush2.msra.mxu0 0.0
  %2187 = vmatprep.subr.mxu0 0.0
  %2188 = vmatpush2.msra.mxu0 0.0
  %2189 = vmatprep.subr.mxu0 0.0
  %2190 = vmatpush2.msra.mxu0 0.0
  %2191 = vmatprep.subr.mxu0 0.0
  %2192 = vmatpush2.msra.mxu0 0.0
  %2193 = vmatprep.subr.mxu0 0.0
  %2194 = vmatpush2.msra.mxu0 0.0
  %2195 = vmatprep.subr.mxu0 0.0
  %2196 = vmatpush2.msra.mxu0 0.0
  %2197 = vmatprep.subr.mxu0 0.0
  %2198 = vmatpush2.msra.mxu0 0.0
  %2199 = vmatprep.subr.mxu0 0.0
  %2200 = vmatpush2.msra.mxu0 0.0
  %2201 = vmatprep.subr.mxu0 0.0
  %2202 = vmatpush2.msra.mxu0 0.0
  %2203 = vmatprep.subr.mxu0 0.0
  %2204 = vmatpush2.msra.mxu0 0.0
  %2205 = vmatprep.subr.mxu0 0.0
  %2206 = vmatpush2.msra.mxu0 0.0
  %2207 = vmatprep.mubr.f32.mxu0 0.0
  %2208 = vmatmul.mubr.f32.gmra.mxu0 %v2141
  %v2209 = vpop.f32.mrf.mxu0
  %v2210 = vadd.f32 %v2137, %v2209
  %v2211 = vpop.f32.mrf.mxu0
  %2212 = vdwg.mxu0
  %v2213 = vmax.f32 %v2210, 0.0
  %v2214 = vld [vmem:[%s16] sm:$0xff]
  %v2215 = vld [vmem:[%s16 + $0x8] sm:$0xff]
  %v2216 = vld [vmem:[%s16 + $0x10] sm:$0xff]
  %v2217 = vld [vmem:[%s16 + $0x18] sm:$0xff]
  %v2218 = vld [vmem:[%s17] sm:$0xff]
  %v2219 = vld [vmem:[%s17 + $0x8] sm:$0xff]
  %v2220 = vld [vmem:[%s17 + $0x10] sm:$0xff]
  %v2221 = vld [vmem:[%s17 + $0x18] sm:$0xff]
  %2223 = vset.pattern.permute.xlu0 0
  %2224 = vperm.xlu0 %2223, %v2218
  %v2225 = vpop.permute.xlu0 %2224
  %2228 = vset.pattern.permute.xlu0 0
  %2229 = vperm.xlu0 %2228, %v2219
  %v2230 = vpop.permute.xlu0 %2229
  %2233 = vset.pattern.permute.xlu0 0
  %2234 = vperm.xlu0 %2233, %v2220
  %v2235 = vpop.permute.xlu0 %2234
  %2238 = vset.pattern.permute.xlu0 0
  %2239 = vperm.xlu0 %2238, %v2221
  %v2240 = vpop.permute.xlu0 %2239
  %vm2242 = vcmask 64512
  %v2244 = vsel %vm2242, %v2214, 0
  %v2247 = vsel %vm2242, %v2215, 0
  %v2250 = vsel %vm2242, %v2216, 0
  %v2253 = vsel %vm2242, %v2217, 0
  %2255 = vmatprep.subr.mxu0 0.0
  %2256 = vmatpush1.msra.mxu0 0.0
  %2257 = vmatprep.subr.mxu0 0.0
  %2258 = vmatpush1.msra.mxu0 0.0
  %2259 = vmatprep.subr.mxu0 0.0
  %2260 = vmatpush1.msra.mxu0 0.0
  %2261 = vmatprep.subr.mxu0 0.0
  %2262 = vmatpush1.msra.mxu0 0.0
  %2263 = vmatprep.subr.mxu0 0.0
  %2264 = vmatpush1.msra.mxu0 0.0
  %2265 = vmatprep.subr.mxu0 0.0
  %2266 = vmatpush1.msra.mxu0 0.0
  %2267 = vmatprep.subr.mxu0 0.0
  %2268 = vmatpush1.msra.mxu0 0.0
  %2269 = vmatprep.subr.mxu0 0.0
  %2270 = vmatpush1.msra.mxu0 0.0
  %2271 = vmatprep.subr.mxu0 0.0
  %2272 = vmatpush1.msra.mxu0 0.0
  %2273 = vmatprep.subr.mxu0 0.0
  %2274 = vmatpush1.msra.mxu0 0.0
  %2275 = vmatprep.subr.mxu0 0.0
  %2276 = vmatpush1.msra.mxu0 0.0
  %2277 = vmatprep.subr.mxu0 0.0
  %2278 = vmatpush1.msra.mxu0 0.0
  %2279 = vmatprep.subr.mxu0 0.0
  %2280 = vmatpush1.msra.mxu0 0.0
  %2281 = vmatprep.subr.mxu0 0.0
  %2282 = vmatpush1.msra.mxu0 0.0
  %2283 = vmatprep.subr.mxu0 0.0
  %2284 = vmatpush1.msra.mxu0 0.0
  %2285 = vmatprep.subr.mxu0 0.0
  %2286 = vmatpush1.msra.mxu0 %v2213
  %2287 = vmatprep.subr.mxu0 0.0
  %2288 = vmatpush2.msra.mxu0 0.0
  %2289 = vmatprep.subr.mxu0 0.0
  %2290 = vmatpush2.msra.mxu0 0.0
  %2291 = vmatprep.subr.mxu0 0.0
  %2292 = vmatpush2.msra.mxu0 0.0
  %2293 = vmatprep.subr.mxu0 0.0
  %2294 = vmatpush2.msra.mxu0 0.0
  %2295 = vmatprep.subr.mxu0 0.0
  %2296 = vmatpush2.msra.mxu0 0.0
  %2297 = vmatprep.subr.mxu0 0.0
  %2298 = vmatpush2.msra.mxu0 0.0
  %2299 = vmatprep.subr.mxu0 0.0
  %2300 = vmatpush2.msra.mxu0 0.0
  %2301 = vmatprep.subr.mxu0 0.0
  %2302 = vmatpush2.msra.mxu0 0.0
  %2303 = vmatprep.subr.mxu0 0.0
  %2304 = vmatpush2.msra.mxu0 0.0
  %2305 = vmatprep.subr.mxu0 0.0
  %2306 = vmatpush2.msra.mxu0 0.0
  %2307 = vmatprep.subr.mxu0 0.0
  %2308 = vmatpush2.msra.mxu0 0.0
  %2309 = vmatprep.subr.mxu0 0.0
  %2310 = vmatpush2.msra.mxu0 0.0
  %2311 = vmatprep.subr.mxu0 0.0
  %2312 = vmatpush2.msra.mxu0 0.0
  %2313 = vmatprep.subr.mxu0 0.0
  %2314 = vmatpush2.msra.mxu0 0.0
  %2315 = vmatprep.subr.mxu0 0.0
  %2316 = vmatpush2.msra.mxu0 0.0
  %2317 = vmatprep.subr.mxu0 0.0
  %2318 = vmatpush2.msra.mxu0 0.0
  %2319 = vmatprep.mubr.f32.mxu0 0.0
  %2320 = vmatmul.mubr.f32.gmra.mxu0 %v2244
  %v2321 = vpop.f32.mrf.mxu0
  %v2322 = vadd.f32 %v2225, %v2321
  %v2323 = vpop.f32.mrf.mxu0
  %2324 = vmatprep.mubr.f32.mxu0 0.0
  %2325 = vmatmul.mubr.f32.gmra.mxu0 %v2247
  %v2326 = vpop.f32.mrf.mxu0
  %v2327 = vadd.f32 %v2230, %v2326
  %v2328 = vpop.f32.mrf.mxu0
  %2329 = vmatprep.mubr.f32.mxu0 0.0
  %2330 = vmatmul.mubr.f32.gmra.mxu0 %v2250
  %v2331 = vpop.f32.mrf.mxu0
  %v2332 = vadd.f32 %v2235, %v2331
  %v2333 = vpop.f32.mrf.mxu0
  %2334 = vmatprep.mubr.f32.mxu0 0.0
  %2335 = vmatmul.mubr.f32.gmra.mxu0 %v2253
  %v2336 = vpop.f32.mrf.mxu0
  %v2337 = vadd.f32 %v2240, %v2336
  %v2338 = vpop.f32.mrf.mxu0
  %2339 = vdwg.mxu0
  %v2340 = vmax.f32 %v2322, 0.0
  %v2341 = vmax.f32 %v2327, 0.0
  %v2342 = vmax.f32 %v2332, 0.0
  %v2343 = vmax.f32 %v2337, 0.0
  %v2344 = vmin.f32 %v2340, 1.0
  %v2345 = vmin.f32 %v2341, 1.0
  %v2346 = vmin.f32 %v2342, 1.0
  %v2347 = vmin.f32 %v2343, 1.0
  %v2348 = vld [vmem:[%s5] sm:$0x3]
  %vm2349 = vcmask 15360
  %v2351 = vsel %vm2349, %v2344, 0
  %v2354 = vsel %vm2349, %v2345, 0
  %v2357 = vsel %vm2349, %v2346, 0
  %v2360 = vsel %vm2349, %v2347, 0
  %vm2362 = vcmask 1041408
  %v2364 = vsel %vm2362, %v2348, 0
  %2366 = vmatprep.subr.mxu0 0.0
  %2367 = vmatpush1.msra.mxu0 0.0
  %2368 = vmatprep.subr.mxu0 0.0
  %2369 = vmatpush1.msra.mxu0 0.0
  %2370 = vmatprep.subr.mxu0 0.0
  %2371 = vmatpush1.msra.mxu0 0.0
  %2372 = vmatprep.subr.mxu0 0.0
  %2373 = vmatpush1.msra.mxu0 0.0
  %2374 = vmatprep.subr.mxu0 0.0
  %2375 = vmatpush1.msra.mxu0 0.0
  %2376 = vmatprep.subr.mxu0 0.0
  %2377 = vmatpush1.msra.mxu0 0.0
  %2378 = vmatprep.subr.mxu0 0.0
  %2379 = vmatpush1.msra.mxu0 0.0
  %2380 = vmatprep.subr.mxu0 0.0
  %2381 = vmatpush1.msra.mxu0 0.0
  %2382 = vmatprep.subr.mxu0 0.0
  %2383 = vmatpush1.msra.mxu0 0.0
  %2384 = vmatprep.subr.mxu0 0.0
  %2385 = vmatpush1.msra.mxu0 0.0
  %2386 = vmatprep.subr.mxu0 0.0
  %2387 = vmatpush1.msra.mxu0 0.0
  %2388 = vmatprep.subr.mxu0 0.0
  %2389 = vmatpush1.msra.mxu0 0.0
  %2390 = vmatprep.subr.mxu0 0.0
  %2391 = vmatpush1.msra.mxu0 0.0
  %2392 = vmatprep.subr.mxu0 0.0
  %2393 = vmatpush1.msra.mxu0 0.0
  %2394 = vmatprep.subr.mxu0 0.0
  %2395 = vmatpush1.msra.mxu0 0.0
  %2396 = vmatprep.subr.mxu0 0.0
  %2397 = vmatpush1.msra.mxu0 %v2364
  %2398 = vmatprep.subr.mxu0 0.0
  %2399 = vmatpush2.msra.mxu0 0.0
  %2400 = vmatprep.subr.mxu0 0.0
  %2401 = vmatpush2.msra.mxu0 0.0
  %2402 = vmatprep.subr.mxu0 0.0
  %2403 = vmatpush2.msra.mxu0 0.0
  %2404 = vmatprep.subr.mxu0 0.0
  %2405 = vmatpush2.msra.mxu0 0.0
  %2406 = vmatprep.subr.mxu0 0.0
  %2407 = vmatpush2.msra.mxu0 0.0
  %2408 = vmatprep.subr.mxu0 0.0
  %2409 = vmatpush2.msra.mxu0 0.0
  %2410 = vmatprep.subr.mxu0 0.0
  %2411 = vmatpush2.msra.mxu0 0.0
  %2412 = vmatprep.subr.mxu0 0.0
  %2413 = vmatpush2.msra.mxu0 0.0
  %2414 = vmatprep.subr.mxu0 0.0
  %2415 = vmatpush2.msra.mxu0 0.0
  %2416 = vmatprep.subr.mxu0 0.0
  %2417 = vmatpush2.msra.mxu0 0.0
  %2418 = vmatprep.subr.mxu0 0.0
  %2419 = vmatpush2.msra.mxu0 0.0
  %2420 = vmatprep.subr.mxu0 0.0
  %2421 = vmatpush2.msra.mxu0 0.0
  %2422 = vmatprep.subr.mxu0 0.0
  %2423 = vmatpush2.msra.mxu0 0.0
  %2424 = vmatprep.subr.mxu0 0.0
  %2425 = vmatpush2.msra.mxu0 0.0
  %2426 = vmatprep.subr.mxu0 0.0
  %2427 = vmatpush2.msra.mxu0 0.0
  %2428 = vmatprep.subr.mxu0 0.0
  %2429 = vmatpush2.msra.mxu0 0.0
  %2430 = vmatprep.mubr.f32.mxu0 0.0
  %2431 = vmatmul.mubr.f32.gmra.mxu0 %v2351
  %v2432 = vpop.f32.mrf.mxu0
  %v2433 = vadd.f32 0.0, %v2432
  %v2434 = vpop.f32.mrf.mxu0
  %2435 = vmatprep.mubr.f32.mxu0 0.0
  %2436 = vmatmul.mubr.f32.gmra.mxu0 %v2354
  %v2437 = vpop.f32.mrf.mxu0
  %v2438 = vadd.f32 0.0, %v2437
  %v2439 = vpop.f32.mrf.mxu0
  %2440 = vmatprep.mubr.f32.mxu0 0.0
  %2441 = vmatmul.mubr.f32.gmra.mxu0 %v2357
  %v2442 = vpop.f32.mrf.mxu0
  %v2443 = vadd.f32 0.0, %v2442
  %v2444 = vpop.f32.mrf.mxu0
  %2445 = vmatprep.mubr.f32.mxu0 0.0
  %2446 = vmatmul.mubr.f32.gmra.mxu0 %v2360
  %v2447 = vpop.f32.mrf.mxu0
  %v2448 = vadd.f32 0.0, %v2447
  %v2449 = vpop.f32.mrf.mxu0
  %2450 = vdwg.mxu0
  %v2451 = vmul.f32 %v1393, %v2433
  %v2452 = vmul.f32 %v1398, %v2438
  %v2453 = vmul.f32 %v2023, %v2443
  %v2454 = vmul.f32 %v2028, %v2448
  %v2455 = vld [vmem:[%s18] sm:$0xff]
  %v2456 = vld [vmem:[%s19] sm:$0xff]
  %2458 = vset.pattern.permute.xlu0 0
  %2459 = vperm.xlu0 %2458, %v2456
  %v2460 = vpop.permute.xlu0 %2459
  %v2463 = vsel %vm2139, %v2455, 0
  %2465 = vmatprep.subr.mxu0 0.0
  %2466 = vmatpush1.msra.mxu0 0.0
  %2467 = vmatprep.subr.mxu0 0.0
  %2468 = vmatpush1.msra.mxu0 0.0
  %2469 = vmatprep.subr.mxu0 0.0
  %2470 = vmatpush1.msra.mxu0 0.0
  %2471 = vmatprep.subr.mxu0 0.0
  %2472 = vmatpush1.msra.mxu0 0.0
  %2473 = vmatprep.subr.mxu0 0.0
  %2474 = vmatpush1.msra.mxu0 0.0
  %2475 = vmatprep.subr.mxu0 0.0
  %2476 = vmatpush1.msra.mxu0 0.0
  %2477 = vmatprep.subr.mxu0 0.0
  %2478 = vmatpush1.msra.mxu0 0.0
  %2479 = vmatprep.subr.mxu0 0.0
  %2480 = vmatpush1.msra.mxu0 0.0
  %2481 = vmatprep.subr.mxu0 0.0
  %2482 = vmatpush1.msra.mxu0 0.0
  %2483 = vmatprep.subr.mxu0 0.0
  %2484 = vmatpush1.msra.mxu0 0.0
  %2485 = vmatprep.subr.mxu0 0.0
  %2486 = vmatpush1.msra.mxu0 0.0
  %2487 = vmatprep.subr.mxu0 0.0
  %2488 = vmatpush1.msra.mxu0 0.0
  %2489 = vmatprep.subr.mxu0 0.0
  %2490 = vmatpush1.msra.mxu0 %v2454
  %2491 = vmatprep.subr.mxu0 0.0
  %2492 = vmatpush1.msra.mxu0 %v2453
  %2493 = vmatprep.subr.mxu0 0.0
  %2494 = vmatpush1.msra.mxu0 %v2452
  %2495 = vmatprep.subr.mxu0 0.0
  %2496 = vmatpush1.msra.mxu0 %v2451
  %2497 = vmatprep.subr.mxu0 0.0
  %2498 = vmatpush2.msra.mxu0 0.0
  %2499 = vmatprep.subr.mxu0 0.0
  %2500 = vmatpush2.msra.mxu0 0.0
  %2501 = vmatprep.subr.mxu0 0.0
  %2502 = vmatpush2.msra.mxu0 0.0
  %2503 = vmatprep.subr.mxu0 0.0
  %2504 = vmatpush2.msra.mxu0 0.0
  %2505 = vmatprep.subr.mxu0 0.0
  %2506 = vmatpush2.msra.mxu0 0.0
  %2507 = vmatprep.subr.mxu0 0.0
  %2508 = vmatpush2.msra.mxu0 0.0
  %2509 = vmatprep.subr.mxu0 0.0
  %2510 = vmatpush2.msra.mxu0 0.0
  %2511 = vmatprep.subr.mxu0 0.0
  %2512 = vmatpush2.msra.mxu0 0.0
  %2513 = vmatprep.subr.mxu0 0.0
  %2514 = vmatpush2.msra.mxu0 0.0
  %2515 = vmatprep.subr.mxu0 0.0
  %2516 = vmatpush2.msra.mxu0 0.0
  %2517 = vmatprep.subr.mxu0 0.0
  %2518 = vmatpush2.msra.mxu0 0.0
  %2519 = vmatprep.subr.mxu0 0.0
  %2520 = vmatpush2.msra.mxu0 0.0
  %2521 = vmatprep.subr.mxu0 0.0
  %2522 = vmatpush2.msra.mxu0 0.0
  %2523 = vmatprep.subr.mxu0 0.0
  %2524 = vmatpush2.msra.mxu0 0.0
  %2525 = vmatprep.subr.mxu0 0.0
  %2526 = vmatpush2.msra.mxu0 0.0
  %2527 = vmatprep.subr.mxu0 0.0
  %2528 = vmatpush2.msra.mxu0 0.0
  %2529 = vmatprep.mubr.f32.mxu0 0.0
  %2530 = vmatmul.mubr.f32.gmra.mxu0 %v2463
  %v2531 = vpop.f32.mrf.mxu0
  %v2532 = vadd.f32 %v2460, %v2531
  %v2533 = vpop.f32.mrf.mxu0
  %2534 = vdwg.mxu0
  %v2535 = vld [vmem:[%s20] sm:$0xff]
  %2537 = vset.pattern.permute.xlu0 4
  %2538 = vperm.xlu0 %2537, %v2535
  %v2539 = vpop.permute.xlu0 %2538
  %v2541 = vmul.f32 %v2532, %v2539
  %2542 = vrot.lane.b32.xlu0 %v2532, 9
  %v2543 = vpop.permute.xlu0 %2542
  %v2544 = vld [vmem:[%s2] sm:$0x1]
  %v2545 = vlaneseq
  %v2546 = vshrl.u32 %v2545, 7
  %v2547 = vsub.s32 0, %v2546
  %v2548 = vrot.slane %v2544, %v2547
  %v2549 = vmul.f32 %v2543, %v2548
  %2550 = vset.pattern.permute.xlu0 0
  %2551 = vperm.xlu0 %2550, %v2535
  %v2552 = vpop.permute.xlu0 %2551
  %v2554 = vmul.f32 %v2549, %v2552
  %v2555 = vadd.f32 %v2541, %v2554
  %2556 = vrot.lane.b32.xlu0 %v2532, 8
  %v2557 = vpop.permute.xlu0 %2556
  %v2558 = vld [vmem:[%s2 + $0x1] sm:$0x1]
  %v2559 = vlaneseq
  %v2560 = vshrl.u32 %v2559, 7
  %v2561 = vsub.s32 0, %v2560
  %v2562 = vrot.slane %v2558, %v2561
  %v2563 = vmul.f32 %v2557, %v2562
  %2564 = vset.pattern.permute.xlu0 1
  %2565 = vperm.xlu0 %2564, %v2535
  %v2566 = vpop.permute.xlu0 %2565
  %v2568 = vmul.f32 %v2563, %v2566
  %v2569 = vadd.f32 %v2555, %v2568
  %2570 = vrot.lane.b32.xlu0 %v2532, 7
  %v2571 = vpop.permute.xlu0 %2570
  %v2572 = vld [vmem:[%s2 + $0x2] sm:$0x1]
  %v2573 = vlaneseq
  %v2574 = vshrl.u32 %v2573, 7
  %v2575 = vsub.s32 0, %v2574
  %v2576 = vrot.slane %v2572, %v2575
  %v2577 = vmul.f32 %v2571, %v2576
  %2578 = vset.pattern.permute.xlu0 2
  %2579 = vperm.xlu0 %2578, %v2535
  %v2580 = vpop.permute.xlu0 %2579
  %v2582 = vmul.f32 %v2577, %v2580
  %v2583 = vadd.f32 %v2569, %v2582
  %2584 = vrot.lane.b32.xlu0 %v2532, 1
  %v2585 = vpop.permute.xlu0 %2584
  %v2586 = vld [vmem:[%s2 + $0x3] sm:$0x1]
  %v2587 = vlaneseq
  %v2588 = vshrl.u32 %v2587, 7
  %v2589 = vsub.s32 0, %v2588
  %v2590 = vrot.slane %v2586, %v2589
  %v2591 = vmul.f32 %v2585, %v2590
  %2592 = vset.pattern.permute.xlu0 3
  %2593 = vperm.xlu0 %2592, %v2535
  %v2594 = vpop.permute.xlu0 %2593
  %v2596 = vmul.f32 %v2591, %v2594
  %v2597 = vadd.f32 %v2583, %v2596
  %2598 = vrot.lane.b32.xlu0 %v2532, 127
  %v2599 = vpop.permute.xlu0 %2598
  %v2600 = vld [vmem:[%s2 + $0x5] sm:$0x1]
  %v2601 = vlaneseq
  %v2602 = vshrl.u32 %v2601, 7
  %v2603 = vsub.s32 0, %v2602
  %v2604 = vrot.slane %v2600, %v2603
  %v2605 = vmul.f32 %v2599, %v2604
  %2606 = vset.pattern.permute.xlu0 5
  %2607 = vperm.xlu0 %2606, %v2535
  %v2608 = vpop.permute.xlu0 %2607
  %v2610 = vmul.f32 %v2605, %v2608
  %v2611 = vadd.f32 %v2597, %v2610
  %2612 = vrot.lane.b32.xlu0 %v2532, 121
  %v2613 = vpop.permute.xlu0 %2612
  %v2614 = vld [vmem:[%s2 + $0x6] sm:$0x1]
  %v2615 = vlaneseq
  %v2616 = vshrl.u32 %v2615, 7
  %v2617 = vsub.s32 0, %v2616
  %v2618 = vrot.slane %v2614, %v2617
  %v2619 = vmul.f32 %v2613, %v2618
  %2620 = vset.pattern.permute.xlu0 6
  %2621 = vperm.xlu0 %2620, %v2535
  %v2622 = vpop.permute.xlu0 %2621
  %v2624 = vmul.f32 %v2619, %v2622
  %v2625 = vadd.f32 %v2611, %v2624
  %2626 = vrot.lane.b32.xlu0 %v2532, 120
  %v2627 = vpop.permute.xlu0 %2626
  %v2628 = vld [vmem:[%s2 + $0x7] sm:$0x1]
  %v2629 = vlaneseq
  %v2630 = vshrl.u32 %v2629, 7
  %v2631 = vsub.s32 0, %v2630
  %v2632 = vrot.slane %v2628, %v2631
  %v2633 = vmul.f32 %v2627, %v2632
  %2634 = vset.pattern.permute.xlu0 7
  %2635 = vperm.xlu0 %2634, %v2535
  %v2636 = vpop.permute.xlu0 %2635
  %v2638 = vmul.f32 %v2633, %v2636
  %v2639 = vadd.f32 %v2625, %v2638
  %2640 = vrot.lane.b32.xlu0 %v2532, 119
  %v2641 = vpop.permute.xlu0 %2640
  %v2642 = vld [vmem:[%s2 + $0x8] sm:$0x1]
  %v2643 = vlaneseq
  %v2644 = vshrl.u32 %v2643, 7
  %v2645 = vsub.s32 0, %v2644
  %v2646 = vrot.slane %v2642, %v2645
  %v2647 = vmul.f32 %v2641, %v2646
  %2648 = vset.pattern.permute.xlu0 8
  %2649 = vperm.xlu0 %2648, %v2535
  %v2650 = vpop.permute.xlu0 %2649
  %v2652 = vmul.f32 %v2647, %v2650
  %v2653 = vadd.f32 %v2639, %v2652
  %v2654 = vld [vmem:[%s21] sm:$0xff]
  %2656 = vset.pattern.permute.xlu0 0
  %2657 = vperm.xlu0 %2656, %v2654
  %v2658 = vpop.permute.xlu0 %2657
  %v2660 = vadd.f32 %v2653, %v2658
  %v2661 = vld [vmem:[%s22] sm:$0xff]
  %v2662 = vld [vmem:[%s22 + $0x8] sm:$0xff]
  %2664 = vset.pattern.permute.xlu0 4
  %2665 = vperm.xlu0 %2664, %v2661
  %v2666 = vpop.permute.xlu0 %2665
  %2669 = vset.pattern.permute.xlu0 4
  %2670 = vperm.xlu0 %2669, %v2662
  %v2671 = vpop.permute.xlu0 %2670
  %v2673 = vmul.f32 %v83, %v2666
  %v2674 = vmul.f32 %v84, %v2666
  %v2675 = vmul.f32 %v85, %v2666
  %v2676 = vmul.f32 %v86, %v2666
  %v2677 = vmul.f32 %v87, %v2671
  %v2678 = vmul.f32 %v88, %v2671
  %v2679 = vmul.f32 %v89, %v2671
  %v2680 = vmul.f32 %v90, %v2671
  %2681 = vrot.lane.b32.xlu0 %v83, 17
  %v2682 = vpop.permute.xlu0 %2681
  %2683 = vrot.lane.b32.xlu0 %v87, 17
  %v2684 = vpop.permute.xlu0 %2683
  %2685 = vrot.lane.b32.xlu0 %v84, 17
  %v2686 = vpop.permute.xlu0 %2685
  %2687 = vrot.lane.b32.xlu0 %v88, 17
  %v2688 = vpop.permute.xlu0 %2687
  %2689 = vrot.lane.b32.xlu0 %v85, 17
  %v2690 = vpop.permute.xlu0 %2689
  %2691 = vrot.lane.b32.xlu0 %v89, 17
  %v2692 = vpop.permute.xlu0 %2691
  %2693 = vrot.lane.b32.xlu0 %v86, 17
  %v2694 = vpop.permute.xlu0 %2693
  %2695 = vrot.lane.b32.xlu0 %v90, 17
  %v2696 = vpop.permute.xlu0 %2695
  %v2697 = vsel %vm376, %v2690, %v2694
  %v2698 = vsel %vm376, %v2692, %v2696
  %v2699 = vsel %vm376, %v2686, %v2690
  %v2700 = vsel %vm376, %v2688, %v2692
  %v2701 = vsel %vm376, %v2682, %v2686
  %v2702 = vsel %vm376, %v2684, %v2688
  %v2703 = vsel %vm376, %v2694, %v2682
  %v2704 = vsel %vm376, %v2696, %v2684
  %v2705 = vmul.f32 %v2703, %v390
  %v2706 = vmul.f32 %v2701, %v394
  %v2707 = vmul.f32 %v2699, %v398
  %v2708 = vmul.f32 %v2697, %v402
  %v2709 = vmul.f32 %v2704, %v390
  %v2710 = vmul.f32 %v2702, %v394
  %v2711 = vmul.f32 %v2700, %v398
  %v2712 = vmul.f32 %v2698, %v402
  %2713 = vset.pattern.permute.xlu0 0
  %2714 = vperm.xlu0 %2713, %v2661
  %v2715 = vpop.permute.xlu0 %2714
  %2717 = vset.pattern.permute.xlu0 0
  %2718 = vperm.xlu0 %2717, %v2662
  %v2719 = vpop.permute.xlu0 %2718
  %v2721 = vmul.f32 %v2705, %v2715
  %v2722 = vmul.f32 %v2706, %v2715
  %v2723 = vmul.f32 %v2707, %v2715
  %v2724 = vmul.f32 %v2708, %v2715
  %v2725 = vmul.f32 %v2709, %v2719
  %v2726 = vmul.f32 %v2710, %v2719
  %v2727 = vmul.f32 %v2711, %v2719
  %v2728 = vmul.f32 %v2712, %v2719
  %v2729 = vadd.f32 %v2673, %v2721
  %v2730 = vadd.f32 %v2674, %v2722
  %v2731 = vadd.f32 %v2675, %v2723
  %v2732 = vadd.f32 %v2676, %v2724
  %v2733 = vadd.f32 %v2677, %v2725
  %v2734 = vadd.f32 %v2678, %v2726
  %v2735 = vadd.f32 %v2679, %v2727
  %v2736 = vadd.f32 %v2680, %v2728
  %2737 = vrot.lane.b32.xlu0 %v83, 16
  %v2738 = vpop.permute.xlu0 %2737
  %2739 = vrot.lane.b32.xlu0 %v87, 16
  %v2740 = vpop.permute.xlu0 %2739
  %2741 = vrot.lane.b32.xlu0 %v84, 16
  %v2742 = vpop.permute.xlu0 %2741
  %2743 = vrot.lane.b32.xlu0 %v88, 16
  %v2744 = vpop.permute.xlu0 %2743
  %2745 = vrot.lane.b32.xlu0 %v85, 16
  %v2746 = vpop.permute.xlu0 %2745
  %2747 = vrot.lane.b32.xlu0 %v89, 16
  %v2748 = vpop.permute.xlu0 %2747
  %2749 = vrot.lane.b32.xlu0 %v86, 16
  %v2750 = vpop.permute.xlu0 %2749
  %2751 = vrot.lane.b32.xlu0 %v90, 16
  %v2752 = vpop.permute.xlu0 %2751
  %v2753 = vsel %vm455, %v2746, %v2750
  %v2754 = vsel %vm455, %v2748, %v2752
  %v2755 = vsel %vm455, %v2742, %v2746
  %v2756 = vsel %vm455, %v2744, %v2748
  %v2757 = vsel %vm455, %v2738, %v2742
  %v2758 = vsel %vm455, %v2740, %v2744
  %v2759 = vsel %vm455, %v2750, %v2738
  %v2760 = vsel %vm455, %v2752, %v2740
  %v2761 = vmul.f32 %v2759, %v470
  %v2762 = vmul.f32 %v2757, %v474
  %v2763 = vmul.f32 %v2755, %v478
  %v2764 = vmul.f32 %v2753, %v482
  %v2765 = vmul.f32 %v2760, %v470
  %v2766 = vmul.f32 %v2758, %v474
  %v2767 = vmul.f32 %v2756, %v478
  %v2768 = vmul.f32 %v2754, %v482
  %2769 = vset.pattern.permute.xlu0 1
  %2770 = vperm.xlu0 %2769, %v2661
  %v2771 = vpop.permute.xlu0 %2770
  %2773 = vset.pattern.permute.xlu0 1
  %2774 = vperm.xlu0 %2773, %v2662
  %v2775 = vpop.permute.xlu0 %2774
  %v2777 = vmul.f32 %v2761, %v2771
  %v2778 = vmul.f32 %v2762, %v2771
  %v2779 = vmul.f32 %v2763, %v2771
  %v2780 = vmul.f32 %v2764, %v2771
  %v2781 = vmul.f32 %v2765, %v2775
  %v2782 = vmul.f32 %v2766, %v2775
  %v2783 = vmul.f32 %v2767, %v2775
  %v2784 = vmul.f32 %v2768, %v2775
  %v2785 = vadd.f32 %v2729, %v2777
  %v2786 = vadd.f32 %v2730, %v2778
  %v2787 = vadd.f32 %v2731, %v2779
  %v2788 = vadd.f32 %v2732, %v2780
  %v2789 = vadd.f32 %v2733, %v2781
  %v2790 = vadd.f32 %v2734, %v2782
  %v2791 = vadd.f32 %v2735, %v2783
  %v2792 = vadd.f32 %v2736, %v2784
  %2793 = vrot.lane.b32.xlu0 %v83, 15
  %v2794 = vpop.permute.xlu0 %2793
  %2795 = vrot.lane.b32.xlu0 %v87, 15
  %v2796 = vpop.permute.xlu0 %2795
  %2797 = vrot.lane.b32.xlu0 %v84, 15
  %v2798 = vpop.permute.xlu0 %2797
  %2799 = vrot.lane.b32.xlu0 %v88, 15
  %v2800 = vpop.permute.xlu0 %2799
  %2801 = vrot.lane.b32.xlu0 %v85, 15
  %v2802 = vpop.permute.xlu0 %2801
  %2803 = vrot.lane.b32.xlu0 %v89, 15
  %v2804 = vpop.permute.xlu0 %2803
  %2805 = vrot.lane.b32.xlu0 %v86, 15
  %v2806 = vpop.permute.xlu0 %2805
  %2807 = vrot.lane.b32.xlu0 %v90, 15
  %v2808 = vpop.permute.xlu0 %2807
  %v2809 = vsel %vm535, %v2802, %v2806
  %v2810 = vsel %vm535, %v2804, %v2808
  %v2811 = vsel %vm535, %v2798, %v2802
  %v2812 = vsel %vm535, %v2800, %v2804
  %v2813 = vsel %vm535, %v2794, %v2798
  %v2814 = vsel %vm535, %v2796, %v2800
  %v2815 = vsel %vm535, %v2806, %v2794
  %v2816 = vsel %vm535, %v2808, %v2796
  %v2817 = vmul.f32 %v2815, %v550
  %v2818 = vmul.f32 %v2813, %v554
  %v2819 = vmul.f32 %v2811, %v558
  %v2820 = vmul.f32 %v2809, %v562
  %v2821 = vmul.f32 %v2816, %v550
  %v2822 = vmul.f32 %v2814, %v554
  %v2823 = vmul.f32 %v2812, %v558
  %v2824 = vmul.f32 %v2810, %v562
  %2825 = vset.pattern.permute.xlu0 2
  %2826 = vperm.xlu0 %2825, %v2661
  %v2827 = vpop.permute.xlu0 %2826
  %2829 = vset.pattern.permute.xlu0 2
  %2830 = vperm.xlu0 %2829, %v2662
  %v2831 = vpop.permute.xlu0 %2830
  %v2833 = vmul.f32 %v2817, %v2827
  %v2834 = vmul.f32 %v2818, %v2827
  %v2835 = vmul.f32 %v2819, %v2827
  %v2836 = vmul.f32 %v2820, %v2827
  %v2837 = vmul.f32 %v2821, %v2831
  %v2838 = vmul.f32 %v2822, %v2831
  %v2839 = vmul.f32 %v2823, %v2831
  %v2840 = vmul.f32 %v2824, %v2831
  %v2841 = vadd.f32 %v2785, %v2833
  %v2842 = vadd.f32 %v2786, %v2834
  %v2843 = vadd.f32 %v2787, %v2835
  %v2844 = vadd.f32 %v2788, %v2836
  %v2845 = vadd.f32 %v2789, %v2837
  %v2846 = vadd.f32 %v2790, %v2838
  %v2847 = vadd.f32 %v2791, %v2839
  %v2848 = vadd.f32 %v2792, %v2840
  %2849 = vrot.lane.b32.xlu0 %v83, 1
  %v2850 = vpop.permute.xlu0 %2849
  %2851 = vrot.lane.b32.xlu0 %v87, 1
  %v2852 = vpop.permute.xlu0 %2851
  %2853 = vrot.lane.b32.xlu0 %v84, 1
  %v2854 = vpop.permute.xlu0 %2853
  %2855 = vrot.lane.b32.xlu0 %v88, 1
  %v2856 = vpop.permute.xlu0 %2855
  %2857 = vrot.lane.b32.xlu0 %v85, 1
  %v2858 = vpop.permute.xlu0 %2857
  %2859 = vrot.lane.b32.xlu0 %v89, 1
  %v2860 = vpop.permute.xlu0 %2859
  %2861 = vrot.lane.b32.xlu0 %v86, 1
  %v2862 = vpop.permute.xlu0 %2861
  %2863 = vrot.lane.b32.xlu0 %v90, 1
  %v2864 = vpop.permute.xlu0 %2863
  %v2865 = vsel %vm615, %v2858, %v2862
  %v2866 = vsel %vm615, %v2860, %v2864
  %v2867 = vsel %vm615, %v2854, %v2858
  %v2868 = vsel %vm615, %v2856, %v2860
  %v2869 = vsel %vm615, %v2850, %v2854
  %v2870 = vsel %vm615, %v2852, %v2856
  %v2871 = vsel %vm615, %v2862, %v2850
  %v2872 = vsel %vm615, %v2864, %v2852
  %v2873 = vmul.f32 %v2871, %v630
  %v2874 = vmul.f32 %v2869, %v634
  %v2875 = vmul.f32 %v2867, %v638
  %v2876 = vmul.f32 %v2865, %v642
  %v2877 = vmul.f32 %v2872, %v630
  %v2878 = vmul.f32 %v2870, %v634
  %v2879 = vmul.f32 %v2868, %v638
  %v2880 = vmul.f32 %v2866, %v642
  %2881 = vset.pattern.permute.xlu0 3
  %2882 = vperm.xlu0 %2881, %v2661
  %v2883 = vpop.permute.xlu0 %2882
  %2885 = vset.pattern.permute.xlu0 3
  %2886 = vperm.xlu0 %2885, %v2662
  %v2887 = vpop.permute.xlu0 %2886
  %v2889 = vmul.f32 %v2873, %v2883
  %v2890 = vmul.f32 %v2874, %v2883
  %v2891 = vmul.f32 %v2875, %v2883
  %v2892 = vmul.f32 %v2876, %v2883
  %v2893 = vmul.f32 %v2877, %v2887
  %v2894 = vmul.f32 %v2878, %v2887
  %v2895 = vmul.f32 %v2879, %v2887
  %v2896 = vmul.f32 %v2880, %v2887
  %v2897 = vadd.f32 %v2841, %v2889
  %v2898 = vadd.f32 %v2842, %v2890
  %v2899 = vadd.f32 %v2843, %v2891
  %v2900 = vadd.f32 %v2844, %v2892
  %v2901 = vadd.f32 %v2845, %v2893
  %v2902 = vadd.f32 %v2846, %v2894
  %v2903 = vadd.f32 %v2847, %v2895
  %v2904 = vadd.f32 %v2848, %v2896
  %2905 = vrot.lane.b32.xlu0 %v83, 127
  %v2906 = vpop.permute.xlu0 %2905
  %2907 = vrot.lane.b32.xlu0 %v87, 127
  %v2908 = vpop.permute.xlu0 %2907
  %2909 = vrot.lane.b32.xlu0 %v84, 127
  %v2910 = vpop.permute.xlu0 %2909
  %2911 = vrot.lane.b32.xlu0 %v88, 127
  %v2912 = vpop.permute.xlu0 %2911
  %2913 = vrot.lane.b32.xlu0 %v85, 127
  %v2914 = vpop.permute.xlu0 %2913
  %2915 = vrot.lane.b32.xlu0 %v89, 127
  %v2916 = vpop.permute.xlu0 %2915
  %2917 = vrot.lane.b32.xlu0 %v86, 127
  %v2918 = vpop.permute.xlu0 %2917
  %2919 = vrot.lane.b32.xlu0 %v90, 127
  %v2920 = vpop.permute.xlu0 %2919
  %v2921 = vsel %vm695, %v2914, %v2918
  %v2922 = vsel %vm695, %v2916, %v2920
  %v2923 = vsel %vm695, %v2910, %v2914
  %v2924 = vsel %vm695, %v2912, %v2916
  %v2925 = vsel %vm695, %v2906, %v2910
  %v2926 = vsel %vm695, %v2908, %v2912
  %v2927 = vsel %vm695, %v2918, %v2906
  %v2928 = vsel %vm695, %v2920, %v2908
  %v2929 = vmul.f32 %v2925, %v710
  %v2930 = vmul.f32 %v2923, %v714
  %v2931 = vmul.f32 %v2921, %v718
  %v2932 = vmul.f32 %v2927, %v722
  %v2933 = vmul.f32 %v2926, %v710
  %v2934 = vmul.f32 %v2924, %v714
  %v2935 = vmul.f32 %v2922, %v718
  %v2936 = vmul.f32 %v2928, %v722
  %2937 = vset.pattern.permute.xlu0 5
  %2938 = vperm.xlu0 %2937, %v2661
  %v2939 = vpop.permute.xlu0 %2938
  %2941 = vset.pattern.permute.xlu0 5
  %2942 = vperm.xlu0 %2941, %v2662
  %v2943 = vpop.permute.xlu0 %2942
  %v2945 = vmul.f32 %v2929, %v2939
  %v2946 = vmul.f32 %v2930, %v2939
  %v2947 = vmul.f32 %v2931, %v2939
  %v2948 = vmul.f32 %v2932, %v2939
  %v2949 = vmul.f32 %v2933, %v2943
  %v2950 = vmul.f32 %v2934, %v2943
  %v2951 = vmul.f32 %v2935, %v2943
  %v2952 = vmul.f32 %v2936, %v2943
  %v2953 = vadd.f32 %v2897, %v2945
  %v2954 = vadd.f32 %v2898, %v2946
  %v2955 = vadd.f32 %v2899, %v2947
  %v2956 = vadd.f32 %v2900, %v2948
  %v2957 = vadd.f32 %v2901, %v2949
  %v2958 = vadd.f32 %v2902, %v2950
  %v2959 = vadd.f32 %v2903, %v2951
  %v2960 = vadd.f32 %v2904, %v2952
  %2961 = vrot.lane.b32.xlu0 %v83, 113
  %v2962 = vpop.permute.xlu0 %2961
  %2963 = vrot.lane.b32.xlu0 %v87, 113
  %v2964 = vpop.permute.xlu0 %2963
  %2965 = vrot.lane.b32.xlu0 %v84, 113
  %v2966 = vpop.permute.xlu0 %2965
  %2967 = vrot.lane.b32.xlu0 %v88, 113
  %v2968 = vpop.permute.xlu0 %2967
  %2969 = vrot.lane.b32.xlu0 %v85, 113
  %v2970 = vpop.permute.xlu0 %2969
  %2971 = vrot.lane.b32.xlu0 %v89, 113
  %v2972 = vpop.permute.xlu0 %2971
  %2973 = vrot.lane.b32.xlu0 %v86, 113
  %v2974 = vpop.permute.xlu0 %2973
  %2975 = vrot.lane.b32.xlu0 %v90, 113
  %v2976 = vpop.permute.xlu0 %2975
  %v2977 = vsel %vm775, %v2970, %v2974
  %v2978 = vsel %vm775, %v2972, %v2976
  %v2979 = vsel %vm775, %v2966, %v2970
  %v2980 = vsel %vm775, %v2968, %v2972
  %v2981 = vsel %vm775, %v2962, %v2966
  %v2982 = vsel %vm775, %v2964, %v2968
  %v2983 = vsel %vm775, %v2974, %v2962
  %v2984 = vsel %vm775, %v2976, %v2964
  %v2985 = vmul.f32 %v2981, %v790
  %v2986 = vmul.f32 %v2979, %v794
  %v2987 = vmul.f32 %v2977, %v798
  %v2988 = vmul.f32 %v2983, %v802
  %v2989 = vmul.f32 %v2982, %v790
  %v2990 = vmul.f32 %v2980, %v794
  %v2991 = vmul.f32 %v2978, %v798
  %v2992 = vmul.f32 %v2984, %v802
  %2993 = vset.pattern.permute.xlu0 6
  %2994 = vperm.xlu0 %2993, %v2661
  %v2995 = vpop.permute.xlu0 %2994
  %2997 = vset.pattern.permute.xlu0 6
  %2998 = vperm.xlu0 %2997, %v2662
  %v2999 = vpop.permute.xlu0 %2998
  %v3001 = vmul.f32 %v2985, %v2995
  %v3002 = vmul.f32 %v2986, %v2995
  %v3003 = vmul.f32 %v2987, %v2995
  %v3004 = vmul.f32 %v2988, %v2995
  %v3005 = vmul.f32 %v2989, %v2999
  %v3006 = vmul.f32 %v2990, %v2999
  %v3007 = vmul.f32 %v2991, %v2999
  %v3008 = vmul.f32 %v2992, %v2999
  %v3009 = vadd.f32 %v2953, %v3001
  %v3010 = vadd.f32 %v2954, %v3002
  %v3011 = vadd.f32 %v2955, %v3003
  %v3012 = vadd.f32 %v2956, %v3004
  %v3013 = vadd.f32 %v2957, %v3005
  %v3014 = vadd.f32 %v2958, %v3006
  %v3015 = vadd.f32 %v2959, %v3007
  %v3016 = vadd.f32 %v2960, %v3008
  %3017 = vrot.lane.b32.xlu0 %v83, 112
  %v3018 = vpop.permute.xlu0 %3017
  %3019 = vrot.lane.b32.xlu0 %v87, 112
  %v3020 = vpop.permute.xlu0 %3019
  %3021 = vrot.lane.b32.xlu0 %v84, 112
  %v3022 = vpop.permute.xlu0 %3021
  %3023 = vrot.lane.b32.xlu0 %v88, 112
  %v3024 = vpop.permute.xlu0 %3023
  %3025 = vrot.lane.b32.xlu0 %v85, 112
  %v3026 = vpop.permute.xlu0 %3025
  %3027 = vrot.lane.b32.xlu0 %v89, 112
  %v3028 = vpop.permute.xlu0 %3027
  %3029 = vrot.lane.b32.xlu0 %v86, 112
  %v3030 = vpop.permute.xlu0 %3029
  %3031 = vrot.lane.b32.xlu0 %v90, 112
  %v3032 = vpop.permute.xlu0 %3031
  %v3033 = vsel %vm855, %v3026, %v3030
  %v3034 = vsel %vm855, %v3028, %v3032
  %v3035 = vsel %vm855, %v3022, %v3026
  %v3036 = vsel %vm855, %v3024, %v3028
  %v3037 = vsel %vm855, %v3018, %v3022
  %v3038 = vsel %vm855, %v3020, %v3024
  %v3039 = vsel %vm855, %v3030, %v3018
  %v3040 = vsel %vm855, %v3032, %v3020
  %v3041 = vmul.f32 %v3037, %v870
  %v3042 = vmul.f32 %v3035, %v874
  %v3043 = vmul.f32 %v3033, %v878
  %v3044 = vmul.f32 %v3039, %v882
  %v3045 = vmul.f32 %v3038, %v870
  %v3046 = vmul.f32 %v3036, %v874
  %v3047 = vmul.f32 %v3034, %v878
  %v3048 = vmul.f32 %v3040, %v882
  %3049 = vset.pattern.permute.xlu0 7
  %3050 = vperm.xlu0 %3049, %v2661
  %v3051 = vpop.permute.xlu0 %3050
  %3053 = vset.pattern.permute.xlu0 7
  %3054 = vperm.xlu0 %3053, %v2662
  %v3055 = vpop.permute.xlu0 %3054
  %v3057 = vmul.f32 %v3041, %v3051
  %v3058 = vmul.f32 %v3042, %v3051
  %v3059 = vmul.f32 %v3043, %v3051
  %v3060 = vmul.f32 %v3044, %v3051
  %v3061 = vmul.f32 %v3045, %v3055
  %v3062 = vmul.f32 %v3046, %v3055
  %v3063 = vmul.f32 %v3047, %v3055
  %v3064 = vmul.f32 %v3048, %v3055
  %v3065 = vadd.f32 %v3009, %v3057
  %v3066 = vadd.f32 %v3010, %v3058
  %v3067 = vadd.f32 %v3011, %v3059
  %v3068 = vadd.f32 %v3012, %v3060
  %v3069 = vadd.f32 %v3013, %v3061
  %v3070 = vadd.f32 %v3014, %v3062
  %v3071 = vadd.f32 %v3015, %v3063
  %v3072 = vadd.f32 %v3016, %v3064
  %3073 = vrot.lane.b32.xlu0 %v83, 111
  %v3074 = vpop.permute.xlu0 %3073
  %3075 = vrot.lane.b32.xlu0 %v87, 111
  %v3076 = vpop.permute.xlu0 %3075
  %3077 = vrot.lane.b32.xlu0 %v84, 111
  %v3078 = vpop.permute.xlu0 %3077
  %3079 = vrot.lane.b32.xlu0 %v88, 111
  %v3080 = vpop.permute.xlu0 %3079
  %3081 = vrot.lane.b32.xlu0 %v85, 111
  %v3082 = vpop.permute.xlu0 %3081
  %3083 = vrot.lane.b32.xlu0 %v89, 111
  %v3084 = vpop.permute.xlu0 %3083
  %3085 = vrot.lane.b32.xlu0 %v86, 111
  %v3086 = vpop.permute.xlu0 %3085
  %3087 = vrot.lane.b32.xlu0 %v90, 111
  %v3088 = vpop.permute.xlu0 %3087
  %v3089 = vsel %vm935, %v3082, %v3086
  %v3090 = vsel %vm935, %v3084, %v3088
  %v3091 = vsel %vm935, %v3078, %v3082
  %v3092 = vsel %vm935, %v3080, %v3084
  %v3093 = vsel %vm935, %v3074, %v3078
  %v3094 = vsel %vm935, %v3076, %v3080
  %v3095 = vsel %vm935, %v3086, %v3074
  %v3096 = vsel %vm935, %v3088, %v3076
  %v3097 = vmul.f32 %v3093, %v950
  %v3098 = vmul.f32 %v3091, %v954
  %v3099 = vmul.f32 %v3089, %v958
  %v3100 = vmul.f32 %v3095, %v962
  %v3101 = vmul.f32 %v3094, %v950
  %v3102 = vmul.f32 %v3092, %v954
  %v3103 = vmul.f32 %v3090, %v958
  %v3104 = vmul.f32 %v3096, %v962
  %3105 = vset.pattern.permute.xlu0 8
  %3106 = vperm.xlu0 %3105, %v2661
  %v3107 = vpop.permute.xlu0 %3106
  %3109 = vset.pattern.permute.xlu0 8
  %3110 = vperm.xlu0 %3109, %v2662
  %v3111 = vpop.permute.xlu0 %3110
  %v3113 = vmul.f32 %v3097, %v3107
  %v3114 = vmul.f32 %v3098, %v3107
  %v3115 = vmul.f32 %v3099, %v3107
  %v3116 = vmul.f32 %v3100, %v3107
  %v3117 = vmul.f32 %v3101, %v3111
  %v3118 = vmul.f32 %v3102, %v3111
  %v3119 = vmul.f32 %v3103, %v3111
  %v3120 = vmul.f32 %v3104, %v3111
  %v3121 = vadd.f32 %v3065, %v3113
  %v3122 = vadd.f32 %v3066, %v3114
  %v3123 = vadd.f32 %v3067, %v3115
  %v3124 = vadd.f32 %v3068, %v3116
  %v3125 = vadd.f32 %v3069, %v3117
  %v3126 = vadd.f32 %v3070, %v3118
  %v3127 = vadd.f32 %v3071, %v3119
  %v3128 = vadd.f32 %v3072, %v3120
  %v3129 = vld [vmem:[%s23] sm:$0xff]
  %v3130 = vld [vmem:[%s23 + $0x8] sm:$0xff]
  %3132 = vset.pattern.permute.xlu0 0
  %3133 = vperm.xlu0 %3132, %v3129
  %v3134 = vpop.permute.xlu0 %3133
  %3137 = vset.pattern.permute.xlu0 0
  %3138 = vperm.xlu0 %3137, %v3130
  %v3139 = vpop.permute.xlu0 %3138
  %3141 = vmatprep.subr.mxu0 0.0
  %3142 = vmatpush1.msra.mxu0 %v106
  %3143 = vmatprep.subr.mxu0 0.0
  %3144 = vmatpush1.msra.mxu0 %v105
  %3145 = vmatprep.subr.mxu0 0.0
  %3146 = vmatpush1.msra.mxu0 %v104
  %3147 = vmatprep.subr.mxu0 0.0
  %3148 = vmatpush1.msra.mxu0 %v103
  %3149 = vmatprep.subr.mxu0 0.0
  %3150 = vmatpush1.msra.mxu0 %v102
  %3151 = vmatprep.subr.mxu0 0.0
  %3152 = vmatpush1.msra.mxu0 %v101
  %3153 = vmatprep.subr.mxu0 0.0
  %3154 = vmatpush1.msra.mxu0 %v100
  %3155 = vmatprep.subr.mxu0 0.0
  %3156 = vmatpush1.msra.mxu0 %v99
  %3157 = vmatprep.subr.mxu0 0.0
  %3158 = vmatpush1.msra.mxu0 %v98
  %3159 = vmatprep.subr.mxu0 0.0
  %3160 = vmatpush1.msra.mxu0 %v97
  %3161 = vmatprep.subr.mxu0 0.0
  %3162 = vmatpush1.msra.mxu0 %v96
  %3163 = vmatprep.subr.mxu0 0.0
  %3164 = vmatpush1.msra.mxu0 %v95
  %3165 = vmatprep.subr.mxu0 0.0
  %3166 = vmatpush1.msra.mxu0 %v94
  %3167 = vmatprep.subr.mxu0 0.0
  %3168 = vmatpush1.msra.mxu0 %v93
  %3169 = vmatprep.subr.mxu0 0.0
  %3170 = vmatpush1.msra.mxu0 %v92
  %3171 = vmatprep.subr.mxu0 0.0
  %3172 = vmatpush1.msra.mxu0 %v91
  %3173 = vmatprep.subr.mxu0 0.0
  %3174 = vmatpush2.msra.mxu0 %v122
  %3175 = vmatprep.subr.mxu0 0.0
  %3176 = vmatpush2.msra.mxu0 %v121
  %3177 = vmatprep.subr.mxu0 0.0
  %3178 = vmatpush2.msra.mxu0 %v120
  %3179 = vmatprep.subr.mxu0 0.0
  %3180 = vmatpush2.msra.mxu0 %v119
  %3181 = vmatprep.subr.mxu0 0.0
  %3182 = vmatpush2.msra.mxu0 %v118
  %3183 = vmatprep.subr.mxu0 0.0
  %3184 = vmatpush2.msra.mxu0 %v117
  %3185 = vmatprep.subr.mxu0 0.0
  %3186 = vmatpush2.msra.mxu0 %v116
  %3187 = vmatprep.subr.mxu0 0.0
  %3188 = vmatpush2.msra.mxu0 %v115
  %3189 = vmatprep.subr.mxu0 0.0
  %3190 = vmatpush2.msra.mxu0 %v114
  %3191 = vmatprep.subr.mxu0 0.0
  %3192 = vmatpush2.msra.mxu0 %v113
  %3193 = vmatprep.subr.mxu0 0.0
  %3194 = vmatpush2.msra.mxu0 %v112
  %3195 = vmatprep.subr.mxu0 0.0
  %3196 = vmatpush2.msra.mxu0 %v111
  %3197 = vmatprep.subr.mxu0 0.0
  %3198 = vmatpush2.msra.mxu0 %v110
  %3199 = vmatprep.subr.mxu0 0.0
  %3200 = vmatpush2.msra.mxu0 %v109
  %3201 = vmatprep.subr.mxu0 0.0
  %3202 = vmatpush2.msra.mxu0 %v108
  %3203 = vmatprep.subr.mxu0 0.0
  %3204 = vmatpush2.msra.mxu0 %v107
  %3205 = vmatprep.mubr.f32.mxu0 %v3122
  %3206 = vmatmul.mubr.f32.gmra.mxu0 %v3121
  %v3207 = vpop.f32.mrf.mxu0
  %v3208 = vadd.f32 %v3134, %v3207
  %v3209 = vpop.f32.mrf.mxu0
  %3210 = vmatprep.mubr.f32.mxu0 %v3126
  %3211 = vmatmul.mubr.f32.gmra.mxu0 %v3125
  %v3212 = vpop.f32.mrf.mxu0
  %v3213 = vadd.f32 %v3139, %v3212
  %v3214 = vpop.f32.mrf.mxu0
  %3215 = vdwg.mxu0
  %3216 = vmatprep.subr.mxu0 0.0
  %3217 = vmatpush1.msra.mxu0 %v138
  %3218 = vmatprep.subr.mxu0 0.0
  %3219 = vmatpush1.msra.mxu0 %v137
  %3220 = vmatprep.subr.mxu0 0.0
  %3221 = vmatpush1.msra.mxu0 %v136
  %3222 = vmatprep.subr.mxu0 0.0
  %3223 = vmatpush1.msra.mxu0 %v135
  %3224 = vmatprep.subr.mxu0 0.0
  %3225 = vmatpush1.msra.mxu0 %v134
  %3226 = vmatprep.subr.mxu0 0.0
  %3227 = vmatpush1.msra.mxu0 %v133
  %3228 = vmatprep.subr.mxu0 0.0
  %3229 = vmatpush1.msra.mxu0 %v132
  %3230 = vmatprep.subr.mxu0 0.0
  %3231 = vmatpush1.msra.mxu0 %v131
  %3232 = vmatprep.subr.mxu0 0.0
  %3233 = vmatpush1.msra.mxu0 %v130
  %3234 = vmatprep.subr.mxu0 0.0
  %3235 = vmatpush1.msra.mxu0 %v129
  %3236 = vmatprep.subr.mxu0 0.0
  %3237 = vmatpush1.msra.mxu0 %v128
  %3238 = vmatprep.subr.mxu0 0.0
  %3239 = vmatpush1.msra.mxu0 %v127
  %3240 = vmatprep.subr.mxu0 0.0
  %3241 = vmatpush1.msra.mxu0 %v126
  %3242 = vmatprep.subr.mxu0 0.0
  %3243 = vmatpush1.msra.mxu0 %v125
  %3244 = vmatprep.subr.mxu0 0.0
  %3245 = vmatpush1.msra.mxu0 %v124
  %3246 = vmatprep.subr.mxu0 0.0
  %3247 = vmatpush1.msra.mxu0 %v123
  %3248 = vmatprep.subr.mxu0 0.0
  %3249 = vmatpush2.msra.mxu0 %v154
  %3250 = vmatprep.subr.mxu0 0.0
  %3251 = vmatpush2.msra.mxu0 %v153
  %3252 = vmatprep.subr.mxu0 0.0
  %3253 = vmatpush2.msra.mxu0 %v152
  %3254 = vmatprep.subr.mxu0 0.0
  %3255 = vmatpush2.msra.mxu0 %v151
  %3256 = vmatprep.subr.mxu0 0.0
  %3257 = vmatpush2.msra.mxu0 %v150
  %3258 = vmatprep.subr.mxu0 0.0
  %3259 = vmatpush2.msra.mxu0 %v149
  %3260 = vmatprep.subr.mxu0 0.0
  %3261 = vmatpush2.msra.mxu0 %v148
  %3262 = vmatprep.subr.mxu0 0.0
  %3263 = vmatpush2.msra.mxu0 %v147
  %3264 = vmatprep.subr.mxu0 0.0
  %3265 = vmatpush2.msra.mxu0 %v146
  %3266 = vmatprep.subr.mxu0 0.0
  %3267 = vmatpush2.msra.mxu0 %v145
  %3268 = vmatprep.subr.mxu0 0.0
  %3269 = vmatpush2.msra.mxu0 %v144
  %3270 = vmatprep.subr.mxu0 0.0
  %3271 = vmatpush2.msra.mxu0 %v143
  %3272 = vmatprep.subr.mxu0 0.0
  %3273 = vmatpush2.msra.mxu0 %v142
  %3274 = vmatprep.subr.mxu0 0.0
  %3275 = vmatpush2.msra.mxu0 %v141
  %3276 = vmatprep.subr.mxu0 0.0
  %3277 = vmatpush2.msra.mxu0 %v140
  %3278 = vmatprep.subr.mxu0 0.0
  %3279 = vmatpush2.msra.mxu0 %v139
  %3280 = vmatprep.mubr.f32.mxu0 %v3124
  %3281 = vmatmul.mubr.f32.gmra.mxu0 %v3123
  %v3282 = vpop.f32.mrf.mxu0
  %v3283 = vadd.f32 %v3208, %v3282
  %v3284 = vpop.f32.mrf.mxu0
  %3285 = vmatprep.mubr.f32.mxu0 %v3128
  %3286 = vmatmul.mubr.f32.gmra.mxu0 %v3127
  %v3287 = vpop.f32.mrf.mxu0
  %v3288 = vadd.f32 %v3213, %v3287
  %v3289 = vpop.f32.mrf.mxu0
  %3290 = vdwg.mxu0
  %v3291 = vmax.f32 %v3283, 0.0
  %v3292 = vmax.f32 %v3288, 0.0
  %v3293 = vld [vmem:[%s24] sm:$0xff]
  %v3294 = vld [vmem:[%s24 + $0x8] sm:$0xff]
  %v3295 = vld [vmem:[%s25] sm:$0xff]
  %v3296 = vld [vmem:[%s25 + $0x8] sm:$0xff]
  %3298 = vset.pattern.permute.xlu0 0
  %3299 = vperm.xlu0 %3298, %v3295
  %v3300 = vpop.permute.xlu0 %3299
  %3303 = vset.pattern.permute.xlu0 0
  %3304 = vperm.xlu0 %3303, %v3296
  %v3305 = vpop.permute.xlu0 %3304
  %v3308 = vsel %vm169, %v3293, 0
  %v3311 = vsel %vm169, %v3294, 0
  %3313 = vmatprep.subr.mxu0 0.0
  %3314 = vmatpush1.msra.mxu0 0.0
  %3315 = vmatprep.subr.mxu0 0.0
  %3316 = vmatpush1.msra.mxu0 0.0
  %3317 = vmatprep.subr.mxu0 0.0
  %3318 = vmatpush1.msra.mxu0 0.0
  %3319 = vmatprep.subr.mxu0 0.0
  %3320 = vmatpush1.msra.mxu0 0.0
  %3321 = vmatprep.subr.mxu0 0.0
  %3322 = vmatpush1.msra.mxu0 0.0
  %3323 = vmatprep.subr.mxu0 0.0
  %3324 = vmatpush1.msra.mxu0 0.0
  %3325 = vmatprep.subr.mxu0 0.0
  %3326 = vmatpush1.msra.mxu0 0.0
  %3327 = vmatprep.subr.mxu0 0.0
  %3328 = vmatpush1.msra.mxu0 0.0
  %3329 = vmatprep.subr.mxu0 0.0
  %3330 = vmatpush1.msra.mxu0 0.0
  %3331 = vmatprep.subr.mxu0 0.0
  %3332 = vmatpush1.msra.mxu0 0.0
  %3333 = vmatprep.subr.mxu0 0.0
  %3334 = vmatpush1.msra.mxu0 0.0
  %3335 = vmatprep.subr.mxu0 0.0
  %3336 = vmatpush1.msra.mxu0 0.0
  %3337 = vmatprep.subr.mxu0 0.0
  %3338 = vmatpush1.msra.mxu0 0.0
  %3339 = vmatprep.subr.mxu0 0.0
  %3340 = vmatpush1.msra.mxu0 0.0
  %3341 = vmatprep.subr.mxu0 0.0
  %3342 = vmatpush1.msra.mxu0 %v3292
  %3343 = vmatprep.subr.mxu0 0.0
  %3344 = vmatpush1.msra.mxu0 %v3291
  %3345 = vmatprep.subr.mxu0 0.0
  %3346 = vmatpush2.msra.mxu0 0.0
  %3347 = vmatprep.subr.mxu0 0.0
  %3348 = vmatpush2.msra.mxu0 0.0
  %3349 = vmatprep.subr.mxu0 0.0
  %3350 = vmatpush2.msra.mxu0 0.0
  %3351 = vmatprep.subr.mxu0 0.0
  %3352 = vmatpush2.msra.mxu0 0.0
  %3353 = vmatprep.subr.mxu0 0.0
  %3354 = vmatpush2.msra.mxu0 0.0
  %3355 = vmatprep.subr.mxu0 0.0
  %3356 = vmatpush2.msra.mxu0 0.0
  %3357 = vmatprep.subr.mxu0 0.0
  %3358 = vmatpush2.msra.mxu0 0.0
  %3359 = vmatprep.subr.mxu0 0.0
  %3360 = vmatpush2.msra.mxu0 0.0
  %3361 = vmatprep.subr.mxu0 0.0
  %3362 = vmatpush2.msra.mxu0 0.0
  %3363 = vmatprep.subr.mxu0 0.0
  %3364 = vmatpush2.msra.mxu0 0.0
  %3365 = vmatprep.subr.mxu0 0.0
  %3366 = vmatpush2.msra.mxu0 0.0
  %3367 = vmatprep.subr.mxu0 0.0
  %3368 = vmatpush2.msra.mxu0 0.0
  %3369 = vmatprep.subr.mxu0 0.0
  %3370 = vmatpush2.msra.mxu0 0.0
  %3371 = vmatprep.subr.mxu0 0.0
  %3372 = vmatpush2.msra.mxu0 0.0
  %3373 = vmatprep.subr.mxu0 0.0
  %3374 = vmatpush2.msra.mxu0 0.0
  %3375 = vmatprep.subr.mxu0 0.0
  %3376 = vmatpush2.msra.mxu0 0.0
  %3377 = vmatprep.mubr.f32.mxu0 0.0
  %3378 = vmatmul.mubr.f32.gmra.mxu0 %v3308
  %v3379 = vpop.f32.mrf.mxu0
  %v3380 = vadd.f32 %v3300, %v3379
  %v3381 = vpop.f32.mrf.mxu0
  %3382 = vmatprep.mubr.f32.mxu0 0.0
  %3383 = vmatmul.mubr.f32.gmra.mxu0 %v3311
  %v3384 = vpop.f32.mrf.mxu0
  %v3385 = vadd.f32 %v3305, %v3384
  %v3386 = vpop.f32.mrf.mxu0
  %3387 = vdwg.mxu0
  %v3388 = vadd.f32 %v2532, %v3380
  %3389 = vst [vmem:[%s26] sm:$0xff] %v3388
  %v3390 = vadd.f32 %v2660, %v3385
  %3391 = vst [vmem:[%s26 + $0x8] sm:$0xff] %v3390
  // Predicated region
  $region106: #{ghost_bottleneck_forward.1} parent=0 // pred_check
    _
  $region107: #{ghost_bottleneck_forward.1} parent=0 // pred_check_branch
    %3393 = sbr.rel (0) target = $region109
  $region108: #{ghost_bottleneck_forward.1} parent=0 // pred_region
    _
  $region109: #{ghost_bottleneck_forward.1} parent=0 // pred_fallthru
    _
  // Predicated region
  $region110: #{ghost_bottleneck_forward.1} parent=0 // pred_check
    _
  $region111: #{ghost_bottleneck_forward.1} parent=0 // pred_check_branch
    %3395 = sbr.rel (0) target = $region113
  $region112: #{ghost_bottleneck_forward.1} parent=0 // pred_region
    _
  $region113: #{ghost_bottleneck_forward.1} parent=0 // pred_fallthru
    _

</llo_original>
